<compile_context>
chip_gen: v5e
topology: v5e:2x2
jax: 0.10.0
libtpu: 0.0.40
codegen_flags: <defaults>
</compile_context>

<pallas_src>
import math

import numpy as np
import jax
import jax.numpy as jnp
from jax import lax
from jax.experimental import pallas as pl
from jax.experimental.pallas import tpu as pltpu

LEAKY_SLOPE = 0.01  # nn.LeakyReLU() default negative_slope


def _round_up(v, m):
    return ((v + m - 1) // m) * m


# ----------------------- host-side constant builders ------------------------

def _interior_mask(hc, wc, h, w, p_pad, b_tile):
    """(1, b_tile*p_pad) f32 mask: ones on the h x w content block at canvas offset
    (1,1) of each image's padded canvas, zeros on halo + lane padding."""
    m = np.zeros((hc, wc), np.float32)
    m[1:1 + h, 1:1 + w] = 1.0
    mp = np.zeros((p_pad,), np.float32)
    mp[:hc * wc] = m.reshape(-1)
    return jnp.asarray(np.tile(mp, b_tile).reshape(1, b_tile * p_pad))


def _pool_select(hc_in, wc_in, h_in, w_in):
    """0.25-weighted selection matrix implementing AvgPool2d(2) from one image's padded
    (hc_in*wc_in -> p_in_pad) canvas to the next padded canvas (zero halo kept)."""
    h_out, w_out = h_in // 2, w_in // 2
    hc_out, wc_out = h_out + 2, w_out + 2
    p_in_pad = _round_up(hc_in * wc_in, 128)
    p_out_pad = _round_up(hc_out * wc_out, 128)
    s = np.zeros((p_in_pad, p_out_pad), np.float32)
    for j in range(h_out):
        for i in range(w_out):
            dst = (1 + j) * wc_out + (1 + i)
            for dy in (0, 1):
                for dx in (0, 1):
                    src = (1 + 2 * j + dy) * wc_in + (1 + 2 * i + dx)
                    s[src, dst] = 0.25
    return (jnp.asarray(s).astype(jnp.bfloat16),
            (h_out, w_out, hc_out, wc_out, p_out_pad))


# ------------------------------ fused kernel --------------------------------

def _make_fused_kernel(op_meta, n_masks, b_tile):
    """op_meta entries: ('conv', k, canvas_width, apply_act, mask_idx)
                     or ('pool', p_in_pad, p_out_pad)."""

    def kernel(*args):
        x_ref = args[0]
        out_ref = args[-1]
        pos = 1
        op_refs = []
        for meta in op_meta:
            if meta[0] == "conv":
                op_refs.append((args[pos], args[pos + 1]))
                pos += 2
            else:
                op_refs.append((args[pos],))
                pos += 1
        mask_refs = args[pos:pos + n_masks]
        pos += n_masks
        fcw_ref, segsum_ref, fcb_ref = args[pos], args[pos + 1], args[pos + 2]

        # Activations: channels in sublanes, B_TILE padded zero-halo canvases in lanes.
        x = x_ref[...]                                       # (Cin0, B*P0p) bf16
        for meta, refs in zip(op_meta, op_refs):
            if meta[0] == "conv":
                _, k, wc, act, midx = meta
                xb = x if x.dtype == jnp.bfloat16 else x.astype(jnp.bfloat16)
                if k == 1:
                    cols = xb
                else:
                    # im2col: 9 constant lane shifts.  For content pixels the shifted
                    # flat index stays inside the same image's canvas; halo / padding
                    # garbage (incl. cross-image bleed) is re-zeroed by the mask below.
                    pieces = []
                    for kh in range(k):
                        for kw in range(k):
                            s = (kh - k // 2) * wc + (kw - k // 2)
                            pieces.append(jnp.roll(xb, -s, axis=1) if s else xb)
                    cols = jnp.concatenate(pieces, axis=0)   # (k*k*Cin, B*Pp) bf16
                acc = jnp.dot(refs[0][...], cols,
                              preferred_element_type=jnp.float32)   # (Cout, B*Pp) f32
                acc = acc + refs[1][...]                             # bias (Cout, 1)
                if act:
                    acc = jnp.where(acc >= 0, acc, LEAKY_SLOPE * acc)
                x = acc * mask_refs[midx][...]               # re-zero halo/padding (f32)
            else:
                # AvgPool2d(2): per-image canvas->canvas selection matmul on static,
                # 128-aligned lane segments (keeps VMEM small vs. block-diagonal).
                _, p_in, p_out = meta
                s_mat = refs[0][...]                         # (p_in, p_out) bf16
                pieces = [jnp.dot(x[:, b * p_in:(b + 1) * p_in].astype(jnp.bfloat16),
                                  s_mat, preferred_element_type=jnp.float32)
                          for b in range(b_tile)]
                x = jnp.concatenate(pieces, axis=1) if b_tile > 1 else pieces[0]

        # FC + log_softmax epilogue.  fcw_ref is (2, latent, B*Pp): the Linear weight
        # pre-expanded onto the final canvas and tiled per image, so the PyTorch
        # (C,H,W) flatten is implicit.  One segment-sum matmul produces (2, OUT_LANES).
        z0 = jnp.sum(x * fcw_ref[0], axis=0, keepdims=True)          # (1, B*Pp)
        z1 = jnp.sum(x * fcw_ref[1], axis=0, keepdims=True)
        z = jnp.concatenate([z0, z1], axis=0)                        # (2, B*Pp)
        logits = jnp.dot(z, segsum_ref[...],
                         preferred_element_type=jnp.float32) + fcb_ref[...]
        l0 = logits[0:1, :]
        l1 = logits[1:2, :]
        m = jnp.maximum(l0, l1)
        lse = m + jnp.log(jnp.exp(l0 - m) + jnp.exp(l1 - m))
        out_ref[0] = jnp.concatenate([l0 - lse, l1 - lse],
                                     axis=0).astype(out_ref.dtype)   # (2, OUT_LANES)

    return kernel


# --------------------------------- forward ----------------------------------

def discriminator_softmax_forward(x_nchw, params, b_tile=8):
    """Matches DiscriminatorSoftmax.forward: returns (log_softmax(fc(enc(x))), None)."""
    f32, bf16 = jnp.float32, jnp.bfloat16
    N, C0, H, W = x_nchw.shape
    B = int(b_tile)
    G = -(-N // B)                       # grid steps (cdiv)
    N_pad = G * B

    # conv0 is Conv(colors->depth, 1, padding=1): its (H+2, W+2) output sits at offset
    # (1,1) of an (H+4, W+4) zero-halo canvas, so the raw input goes at (2,2).
    h_cont, w_cont = H + 2, W + 2
    hc, wc = H + 4, W + 4
    Pp = _round_up(hc * wc, 128)
    P0p = Pp
    c_pad = _round_up(max(C0, 8), 8)     # keep matmul operands 8-aligned

    x_can = jnp.zeros((N_pad, c_pad, hc, wc), f32)
    x_can = x_can.at[:N, :C0, 2:2 + H, 2:2 + W].set(x_nchw.astype(f32))
    x_can = x_can.reshape(N_pad, c_pad, hc * wc)
    x_lane = jnp.zeros((N_pad, c_pad, Pp), f32).at[:, :, :hc * wc].set(x_can)
    x_flat = jnp.transpose(x_lane, (1, 0, 2)).reshape(c_pad, N_pad * Pp).astype(bf16)

    inputs = [x_flat]
    op_meta = []
    masks = []
    mask_idx_of = {}
    cur_cin = c_pad
    flops = 0

    def _mask_idx(hc_, wc_, h_, w_, pp_):
        key = (hc_, wc_, h_, w_, pp_)
        if key not in mask_idx_of:
            mask_idx_of[key] = len(masks)
            masks.append(_interior_mask(hc_, wc_, h_, w_, pp_, B))
        return mask_idx_of[key]

    for op in params["ops"]:
        if op["type"] == "conv":
            w_pt = op["w_pt"].astype(f32)                 # (Cout, Cin, K, K)
            cout, cin, k, _ = w_pt.shape
            if cin < cur_cin:                             # first layer: pad Cin up to 8
                w_pt = jnp.concatenate(
                    [w_pt, jnp.zeros((cout, cur_cin - cin, k, k), f32)], axis=1)
            w_mat = jnp.transpose(w_pt, (0, 2, 3, 1)).reshape(
                cout, k * k * cur_cin).astype(bf16)
            inputs += [w_mat, op["b"].astype(f32).reshape(cout, 1)]
            op_meta.append(("conv", k, wc, bool(op["act"]),
                            _mask_idx(hc, wc, h_cont, w_cont, Pp)))
            flops += 2 * cout * (k * k * cur_cin) * Pp * N_pad
            cur_cin = cout
        else:                                             # AvgPool2d(2)
            s_mat, (h_cont, w_cont, hc, wc, Pp_new) = _pool_select(hc, wc, h_cont, w_cont)
            inputs.append(s_mat)
            op_meta.append(("pool", Pp, Pp_new))
            flops += 2 * cur_cin * Pp * Pp_new * N_pad
            Pp = Pp_new

    # Expand the FC weight onto the final padded canvas (zeros on halo/padding) and
    # tile it per image so the PyTorch (C,H,W) flatten is implicit.
    latent = params["ops"][-1]["w_pt"].shape[0]
    fc_w = params["fc_w_pt"].astype(f32)                  # (2, latent * h * w)
    assert fc_w.shape == (2, latent * h_cont * w_cont), fc_w.shape
    wexp = jnp.zeros((2, latent, hc, wc), f32)
    wexp = wexp.at[:, :, 1:1 + h_cont, 1:1 + w_cont].set(
        fc_w.reshape(2, latent, h_cont, w_cont))
    wexp = wexp.reshape(2, latent, hc * wc)
    wexp_p = jnp.zeros((2, latent, Pp), f32).at[:, :, :hc * wc].set(wexp)
    wexp_t = jnp.tile(wexp_p, (1, 1, B))                  # (2, latent, B*Pp)

    out_lanes = _round_up(max(B, 128), 128)
    seg = np.zeros((B * Pp, out_lanes), np.float32)       # per-image lane segment sums
    for b in range(B):
        seg[b * Pp:(b + 1) * Pp, b] = 1.0
    segsum = jnp.asarray(seg)

    inputs += masks
    inputs += [wexp_t, segsum, params["fc_b"].astype(f32).reshape(2, 1)]

    in_specs = [pl.BlockSpec((c_pad, B * P0p), lambda g: (0, g))]
    in_specs += [pl.BlockSpec(a.shape, lambda g, nd=a.ndim: (0,) * nd)
                 for a in inputs[1:]]

    bytes_accessed = sum(int(np.prod(a.shape)) * a.dtype.itemsize for a in inputs)
    bytes_accessed += G * 2 * out_lanes * 4
    cost = pl.CostEstimate(flops=int(flops),
                           transcendentals=int(2 * G * out_lanes),
                           bytes_accessed=int(bytes_accessed))

    out = pl.pallas_call(
        _make_fused_kernel(op_meta, len(masks), B),
        out_shape=jax.ShapeDtypeStruct((G, 2, out_lanes), f32),
        grid_spec=pltpu.PrefetchScalarGridSpec(
            num_scalar_prefetch=0,
            grid=(G,),
            in_specs=in_specs,
            out_specs=pl.BlockSpec((1, 2, out_lanes), lambda g: (g, 0, 0)),
        ),
        compiler_params=pltpu.CompilerParams(
            dimension_semantics=("parallel",),
            vmem_limit_bytes=32 * 1024 * 1024),
        cost_estimate=cost,
    )(*inputs)

    # (G, 2, out_lanes) -> (N, 2)
    logp = jnp.transpose(out[:, :, :B], (0, 2, 1)).reshape(G * B, 2)[:N]
    return logp, None


# ------------------------- parameter initialization -------------------------

def spectral_normalize(w_pt, n_iter=30):
    # TODO(synk): the SpectralNorm class is not defined in the reference source; we
    # approximate it as weight / spectral_norm(weight) via a converged power iteration
    # on the (Cout, Cin*K*K) matricization.
    out_ch = w_pt.shape[0]
    m = w_pt.reshape(out_ch, -1)
    v = jnp.ones((m.shape[1],), jnp.float32) / math.sqrt(m.shape[1])
    u = jnp.ones((out_ch,), jnp.float32) / math.sqrt(out_ch)
    for _ in range(n_iter):
        u = m @ v
        u = u / (jnp.linalg.norm(u) + 1e-12)
        v = m.T @ u
        v = v / (jnp.linalg.norm(v) + 1e-12)
    sigma = u @ (m @ v)
    return w_pt / sigma


def init_params(key, scales, depth, latent, latent_width, colors):
    """Deterministic synthetic parameters matching the PyTorch Initializer."""
    slope = 0.2  # Initializer's slope argument (NOT the LeakyReLU slope)
    ops = []
    keys = iter(jax.random.split(key, 64))

    def make_conv(cin, cout, k, sn, act):
        # Conv2d weight (cout, cin, k, k): std = 1/sqrt((1+slope^2)*cout*cin*k)
        std = 1.0 / math.sqrt((1.0 + slope ** 2) * (cout * cin * k))
        w_pt = std * jax.random.normal(next(keys), (cout, cin, k, k), jnp.float32)
        if sn:
            w_pt = spectral_normalize(w_pt)
        ops.append(dict(type="conv", w_pt=w_pt, b=jnp.zeros((cout,), jnp.float32),
                        pad=1, act=act))

    make_conv(colors, depth, 1, sn=False, act=False)
    kp = depth
    for s in range(scales):
        kch = depth << s
        make_conv(kp, kch, 3, sn=True, act=True)
        make_conv(kch, kch, 3, sn=True, act=True)
        ops.append(dict(type="pool"))
        kp = kch
    kch = depth << scales
    make_conv(kp, kch, 3, sn=True, act=True)
    make_conv(kch, latent, 3, sn=True, act=False)

    fin = latent * latent_width ** 2
    std = 1.0 / math.sqrt((1.0 + slope ** 2) * 2.0)  # prod(fc.weight.shape[:-1]) = 2
    fc_w_pt = std * jax.random.normal(next(keys), (2, fin), jnp.float32)
    return dict(ops=ops, fc_w_pt=fc_w_pt, fc_b=jnp.zeros((2,), jnp.float32))


# ------------------------------ plain-JAX reference ------------------------------

def reference_forward(x_nchw, params):
    """Pure-JAX (XLA) reference used to validate the fused Pallas kernel."""
    x = x_nchw
    for op in params["ops"]:
        if op["type"] == "conv":
            p = op["pad"]
            x = lax.conv_general_dilated(
                x, op["w_pt"], window_strides=(1, 1), padding=[(p, p), (p, p)],
                dimension_numbers=("NCHW", "OIHW", "NCHW"),
                precision=lax.Precision.HIGHEST)
            x = x + op["b"].reshape(1, -1, 1, 1)
            if op["act"]:
                x = jnp.where(x >= 0, x, LEAKY_SLOPE * x)
        else:
            n, c, h, w = x.shape
            x = x[:, :, :(h // 2) * 2, :(w // 2) * 2]
            x = x.reshape(n, c, h // 2, 2, w // 2, 2).mean(axis=(3, 5))
    feats = x.reshape(x.shape[0], -1)
    logits = jnp.dot(feats, params["fc_w_pt"].T,
                     precision=lax.Precision.HIGHEST) + params["fc_b"]
    return jax.nn.log_softmax(logits, axis=1)


# ----------------------------------- main -----------------------------------

if __name__ == "__main__":
    scales, depth, latent, colors = 2, 8, 8, 3
    N, H, W = 6, 14, 14
    # conv0 (kernel 1, padding 1) grows spatial to H+2; each scale halves it.
    latent_width = (H + 2) >> scales  # = 4

    key = jax.random.PRNGKey(0)
    kx, kparams = jax.random.split(key)
    x = jax.random.normal(kx, (N, colors, H, W), jnp.float32)  # PyTorch-style NCHW input

    params = init_params(kparams, scales, depth, latent, latent_width, colors)

    # b_tile=4 -> grid=(2,): exercises both the lane-batching and the padded last tile,
    # and keeps both v7x TensorCores busy.
    logp, none_out = discriminator_softmax_forward(x, params, b_tile=4)
    logp = jax.block_until_ready(logp)

    assert logp.shape == (N, 2), logp.shape
    assert none_out is None
    # log_softmax rows must exponentiate-sum to 1.
    row_sums = jnp.sum(jnp.exp(logp), axis=1)
    assert bool(jnp.all(jnp.abs(row_sums - 1.0) < 1e-3)), row_sums

    # End-to-end numerical check against the pure-JAX (f32 HIGHEST) reference.
    # Tolerance accounts for bf16 MXU operands (f32 accumulation) in the kernel.
    ref = reference_forward(x, params)
    max_diff = float(jnp.max(jnp.abs(logp - ref)))
    assert bool(jnp.allclose(logp, ref, atol=3e-2, rtol=3e-2)), (
        "max |diff| = %r" % max_diff)
    print("KERNEL_OK")
</pallas_src>

<mosaic_0001>
module attributes {stable_mosaic.version = 11 : i64} {
  func.func @kernel(%arg0: i32, %arg1: memref<8x1536xbf16, #tpu.memory_space<vmem>>, %arg2: memref<8x8xbf16, #tpu.memory_space<vmem>>, %arg3: memref<8x1xf32, #tpu.memory_space<vmem>>, %arg4: memref<8x72xbf16, #tpu.memory_space<vmem>>, %arg5: memref<8x1xf32, #tpu.memory_space<vmem>>, %arg6: memref<8x72xbf16, #tpu.memory_space<vmem>>, %arg7: memref<8x1xf32, #tpu.memory_space<vmem>>, %arg8: memref<384x128xbf16, #tpu.memory_space<vmem>>, %arg9: memref<16x72xbf16, #tpu.memory_space<vmem>>, %arg10: memref<16x1xf32, #tpu.memory_space<vmem>>, %arg11: memref<16x144xbf16, #tpu.memory_space<vmem>>, %arg12: memref<16x1xf32, #tpu.memory_space<vmem>>, %arg13: memref<128x128xbf16, #tpu.memory_space<vmem>>, %arg14: memref<32x144xbf16, #tpu.memory_space<vmem>>, %arg15: memref<32x1xf32, #tpu.memory_space<vmem>>, %arg16: memref<8x288xbf16, #tpu.memory_space<vmem>>, %arg17: memref<8x1xf32, #tpu.memory_space<vmem>>, %arg18: memref<1x1536xf32, #tpu.memory_space<vmem>>, %arg19: memref<1x512xf32, #tpu.memory_space<vmem>>, %arg20: memref<1x512xf32, #tpu.memory_space<vmem>>, %arg21: memref<2x8x512xf32, #tpu.memory_space<vmem>>, %arg22: memref<512x128xf32, #tpu.memory_space<vmem>>, %arg23: memref<2x1xf32, #tpu.memory_space<vmem>>, %arg24: memref<1x2x128xf32, #tpu.memory_space<vmem>>) attributes {dimension_semantics = [#tpu.dimension_semantics<parallel>], iteration_bounds = array<i64: 2>, scalar_prefetch = 0 : i64, scratch_operands = 0 : i64, tpu.core_type = #tpu.core_type<tc>, window_params = [{transform_indices = @transform_0, window_bounds = array<i64: 8, 1536>}, {pipeline_mode = #tpu.pipeline_mode<synchronous>, transform_indices = @transform_1, window_bounds = array<i64: 8, 8>}, {pipeline_mode = #tpu.pipeline_mode<synchronous>, transform_indices = @transform_2, window_bounds = array<i64: 8, 1>}, {pipeline_mode = #tpu.pipeline_mode<synchronous>, transform_indices = @transform_3, window_bounds = array<i64: 8, 72>}, {pipeline_mode = #tpu.pipeline_mode<synchronous>, transform_indices = @transform_4, window_bounds = array<i64: 8, 1>}, {pipeline_mode = #tpu.pipeline_mode<synchronous>, transform_indices = @transform_5, window_bounds = array<i64: 8, 72>}, {pipeline_mode = #tpu.pipeline_mode<synchronous>, transform_indices = @transform_6, window_bounds = array<i64: 8, 1>}, {pipeline_mode = #tpu.pipeline_mode<synchronous>, transform_indices = @transform_7, window_bounds = array<i64: 384, 128>}, {pipeline_mode = #tpu.pipeline_mode<synchronous>, transform_indices = @transform_8, window_bounds = array<i64: 16, 72>}, {pipeline_mode = #tpu.pipeline_mode<synchronous>, transform_indices = @transform_9, window_bounds = array<i64: 16, 1>}, {pipeline_mode = #tpu.pipeline_mode<synchronous>, transform_indices = @transform_10, window_bounds = array<i64: 16, 144>}, {pipeline_mode = #tpu.pipeline_mode<synchronous>, transform_indices = @transform_11, window_bounds = array<i64: 16, 1>}, {pipeline_mode = #tpu.pipeline_mode<synchronous>, transform_indices = @transform_12, window_bounds = array<i64: 128, 128>}, {pipeline_mode = #tpu.pipeline_mode<synchronous>, transform_indices = @transform_13, window_bounds = array<i64: 32, 144>}, {pipeline_mode = #tpu.pipeline_mode<synchronous>, transform_indices = @transform_14, window_bounds = array<i64: 32, 1>}, {pipeline_mode = #tpu.pipeline_mode<synchronous>, transform_indices = @transform_15, window_bounds = array<i64: 8, 288>}, {pipeline_mode = #tpu.pipeline_mode<synchronous>, transform_indices = @transform_16, window_bounds = array<i64: 8, 1>}, {pipeline_mode = #tpu.pipeline_mode<synchronous>, transform_indices = @transform_17, window_bounds = array<i64: 1, 1536>}, {pipeline_mode = #tpu.pipeline_mode<synchronous>, transform_indices = @transform_18, window_bounds = array<i64: 1, 512>}, {pipeline_mode = #tpu.pipeline_mode<synchronous>, transform_indices = @transform_19, window_bounds = array<i64: 1, 512>}, {pipeline_mode = #tpu.pipeline_mode<synchronous>, transform_indices = @transform_20, window_bounds = array<i64: 2, 8, 512>}, {pipeline_mode = #tpu.pipeline_mode<synchronous>, transform_indices = @transform_21, window_bounds = array<i64: 512, 128>}, {pipeline_mode = #tpu.pipeline_mode<synchronous>, transform_indices = @transform_22, window_bounds = array<i64: 2, 1>}, {transform_indices = @transform_23, window_bounds = array<i64: 1, 2, 128>}]} {
    %c0 = arith.constant 0 : index
    %c0_0 = arith.constant 0 : index
    %0 = vector.load %arg1[%c0, %c0_0] : memref<8x1536xbf16, #tpu.memory_space<vmem>>, vector<8x1536xbf16>
    %c0_1 = arith.constant 0 : index
    %c0_2 = arith.constant 0 : index
    %1 = vector.load %arg2[%c0_1, %c0_2] : memref<8x8xbf16, #tpu.memory_space<vmem>>, vector<8x8xbf16>
    %cst = arith.constant dense<0.000000e+00> : vector<8x1536xf32>
    %2 = tpu.matmul %1, %0, %cst {dimension_numbers = #tpu.dot_dimension_numbers<[1], [0], [0], [1], [0, 0, 1, 1], [], []>} : vector<8x8xbf16>, vector<8x1536xbf16>, vector<8x1536xf32> -> vector<8x1536xf32>
    %c0_3 = arith.constant 0 : index
    %c0_4 = arith.constant 0 : index
    %3 = vector.load %arg3[%c0_3, %c0_4] : memref<8x1xf32, #tpu.memory_space<vmem>>, vector<8x1xf32>
    %4 = vector.broadcast %3 : vector<8x1xf32> to vector<8x1536xf32>
    %5 = arith.addf %2, %4 : vector<8x1536xf32>
    %c0_5 = arith.constant 0 : index
    %c0_6 = arith.constant 0 : index
    %6 = vector.load %arg18[%c0_5, %c0_6] : memref<1x1536xf32, #tpu.memory_space<vmem>>, vector<1x1536xf32>
    %7 = vector.broadcast %6 : vector<1x1536xf32> to vector<8x1536xf32>
    %8 = arith.mulf %5, %7 : vector<8x1536xf32>
    %9 = arith.truncf %8 : vector<8x1536xf32> to vector<8x1536xbf16>
    %10 = vector.extract_strided_slice %9 {offsets = [0, 1517], sizes = [8, 19], strides = [1, 1]} : vector<8x1536xbf16> to vector<8x19xbf16>
    %11 = vector.extract_strided_slice %9 {offsets = [0, 0], sizes = [8, 1517], strides = [1, 1]} : vector<8x1536xbf16> to vector<8x1517xbf16>
    %12 = tpu.concatenate %10, %11 in 1 : vector<8x19xbf16>, vector<8x1517xbf16> -> vector<8x1536xbf16>
    %13 = vector.extract_strided_slice %9 {offsets = [0, 1518], sizes = [8, 18], strides = [1, 1]} : vector<8x1536xbf16> to vector<8x18xbf16>
    %14 = vector.extract_strided_slice %9 {offsets = [0, 0], sizes = [8, 1518], strides = [1, 1]} : vector<8x1536xbf16> to vector<8x1518xbf16>
    %15 = tpu.concatenate %13, %14 in 1 : vector<8x18xbf16>, vector<8x1518xbf16> -> vector<8x1536xbf16>
    %16 = vector.extract_strided_slice %9 {offsets = [0, 1519], sizes = [8, 17], strides = [1, 1]} : vector<8x1536xbf16> to vector<8x17xbf16>
    %17 = vector.extract_strided_slice %9 {offsets = [0, 0], sizes = [8, 1519], strides = [1, 1]} : vector<8x1536xbf16> to vector<8x1519xbf16>
    %18 = tpu.concatenate %16, %17 in 1 : vector<8x17xbf16>, vector<8x1519xbf16> -> vector<8x1536xbf16>
    %19 = vector.extract_strided_slice %9 {offsets = [0, 1535], sizes = [8, 1], strides = [1, 1]} : vector<8x1536xbf16> to vector<8x1xbf16>
    %20 = vector.extract_strided_slice %9 {offsets = [0, 0], sizes = [8, 1535], strides = [1, 1]} : vector<8x1536xbf16> to vector<8x1535xbf16>
    %21 = tpu.concatenate %19, %20 in 1 : vector<8x1xbf16>, vector<8x1535xbf16> -> vector<8x1536xbf16>
    %22 = vector.extract_strided_slice %9 {offsets = [0, 1], sizes = [8, 1535], strides = [1, 1]} : vector<8x1536xbf16> to vector<8x1535xbf16>
    %23 = vector.extract_strided_slice %9 {offsets = [0, 0], sizes = [8, 1], strides = [1, 1]} : vector<8x1536xbf16> to vector<8x1xbf16>
    %24 = tpu.concatenate %22, %23 in 1 : vector<8x1535xbf16>, vector<8x1xbf16> -> vector<8x1536xbf16>
    %25 = vector.extract_strided_slice %9 {offsets = [0, 17], sizes = [8, 1519], strides = [1, 1]} : vector<8x1536xbf16> to vector<8x1519xbf16>
    %26 = vector.extract_strided_slice %9 {offsets = [0, 0], sizes = [8, 17], strides = [1, 1]} : vector<8x1536xbf16> to vector<8x17xbf16>
    %27 = tpu.concatenate %25, %26 in 1 : vector<8x1519xbf16>, vector<8x17xbf16> -> vector<8x1536xbf16>
    %28 = vector.extract_strided_slice %9 {offsets = [0, 18], sizes = [8, 1518], strides = [1, 1]} : vector<8x1536xbf16> to vector<8x1518xbf16>
    %29 = vector.extract_strided_slice %9 {offsets = [0, 0], sizes = [8, 18], strides = [1, 1]} : vector<8x1536xbf16> to vector<8x18xbf16>
    %30 = tpu.concatenate %28, %29 in 1 : vector<8x1518xbf16>, vector<8x18xbf16> -> vector<8x1536xbf16>
    %31 = vector.extract_strided_slice %9 {offsets = [0, 19], sizes = [8, 1517], strides = [1, 1]} : vector<8x1536xbf16> to vector<8x1517xbf16>
    %32 = vector.extract_strided_slice %9 {offsets = [0, 0], sizes = [8, 19], strides = [1, 1]} : vector<8x1536xbf16> to vector<8x19xbf16>
    %33 = tpu.concatenate %31, %32 in 1 : vector<8x1517xbf16>, vector<8x19xbf16> -> vector<8x1536xbf16>
    %34 = tpu.concatenate %12, %15, %18, %21, %9, %24, %27, %30, %33 in 0 : vector<8x1536xbf16>, vector<8x1536xbf16>, vector<8x1536xbf16>, vector<8x1536xbf16>, vector<8x1536xbf16>, vector<8x1536xbf16>, vector<8x1536xbf16>, vector<8x1536xbf16>, vector<8x1536xbf16> -> vector<72x1536xbf16>
    %c0_7 = arith.constant 0 : index
    %c0_8 = arith.constant 0 : index
    %35 = vector.load %arg4[%c0_7, %c0_8] : memref<8x72xbf16, #tpu.memory_space<vmem>>, vector<8x72xbf16>
    %cst_9 = arith.constant dense<0.000000e+00> : vector<8x1536xf32>
    %36 = tpu.matmul %35, %34, %cst_9 {dimension_numbers = #tpu.dot_dimension_numbers<[1], [0], [0], [1], [0, 0, 1, 1], [], []>} : vector<8x72xbf16>, vector<72x1536xbf16>, vector<8x1536xf32> -> vector<8x1536xf32>
    %c0_10 = arith.constant 0 : index
    %c0_11 = arith.constant 0 : index
    %37 = vector.load %arg5[%c0_10, %c0_11] : memref<8x1xf32, #tpu.memory_space<vmem>>, vector<8x1xf32>
    %38 = vector.broadcast %37 : vector<8x1xf32> to vector<8x1536xf32>
    %39 = arith.addf %36, %38 : vector<8x1536xf32>
    %cst_12 = arith.constant 0.000000e+00 : f32
    %40 = vector.broadcast %cst_12 : f32 to vector<8x1536xf32>
    %41 = arith.cmpf oge, %39, %40 : vector<8x1536xf32>
    %cst_13 = arith.constant 0.00999999977 : f32
    %42 = vector.broadcast %cst_13 : f32 to vector<8x1536xf32>
    %43 = arith.mulf %42, %39 : vector<8x1536xf32>
    %44 = arith.select %41, %39, %43 : vector<8x1536xi1>, vector<8x1536xf32>
    %c0_14 = arith.constant 0 : index
    %c0_15 = arith.constant 0 : index
    %45 = vector.load %arg18[%c0_14, %c0_15] : memref<1x1536xf32, #tpu.memory_space<vmem>>, vector<1x1536xf32>
    %46 = vector.broadcast %45 : vector<1x1536xf32> to vector<8x1536xf32>
    %47 = arith.mulf %44, %46 : vector<8x1536xf32>
    %48 = arith.truncf %47 : vector<8x1536xf32> to vector<8x1536xbf16>
    %49 = vector.extract_strided_slice %48 {offsets = [0, 1517], sizes = [8, 19], strides = [1, 1]} : vector<8x1536xbf16> to vector<8x19xbf16>
    %50 = vector.extract_strided_slice %48 {offsets = [0, 0], sizes = [8, 1517], strides = [1, 1]} : vector<8x1536xbf16> to vector<8x1517xbf16>
    %51 = tpu.concatenate %49, %50 in 1 : vector<8x19xbf16>, vector<8x1517xbf16> -> vector<8x1536xbf16>
    %52 = vector.extract_strided_slice %48 {offsets = [0, 1518], sizes = [8, 18], strides = [1, 1]} : vector<8x1536xbf16> to vector<8x18xbf16>
    %53 = vector.extract_strided_slice %48 {offsets = [0, 0], sizes = [8, 1518], strides = [1, 1]} : vector<8x1536xbf16> to vector<8x1518xbf16>
    %54 = tpu.concatenate %52, %53 in 1 : vector<8x18xbf16>, vector<8x1518xbf16> -> vector<8x1536xbf16>
    %55 = vector.extract_strided_slice %48 {offsets = [0, 1519], sizes = [8, 17], strides = [1, 1]} : vector<8x1536xbf16> to vector<8x17xbf16>
    %56 = vector.extract_strided_slice %48 {offsets = [0, 0], sizes = [8, 1519], strides = [1, 1]} : vector<8x1536xbf16> to vector<8x1519xbf16>
    %57 = tpu.concatenate %55, %56 in 1 : vector<8x17xbf16>, vector<8x1519xbf16> -> vector<8x1536xbf16>
    %58 = vector.extract_strided_slice %48 {offsets = [0, 1535], sizes = [8, 1], strides = [1, 1]} : vector<8x1536xbf16> to vector<8x1xbf16>
    %59 = vector.extract_strided_slice %48 {offsets = [0, 0], sizes = [8, 1535], strides = [1, 1]} : vector<8x1536xbf16> to vector<8x1535xbf16>
    %60 = tpu.concatenate %58, %59 in 1 : vector<8x1xbf16>, vector<8x1535xbf16> -> vector<8x1536xbf16>
    %61 = vector.extract_strided_slice %48 {offsets = [0, 1], sizes = [8, 1535], strides = [1, 1]} : vector<8x1536xbf16> to vector<8x1535xbf16>
    %62 = vector.extract_strided_slice %48 {offsets = [0, 0], sizes = [8, 1], strides = [1, 1]} : vector<8x1536xbf16> to vector<8x1xbf16>
    %63 = tpu.concatenate %61, %62 in 1 : vector<8x1535xbf16>, vector<8x1xbf16> -> vector<8x1536xbf16>
    %64 = vector.extract_strided_slice %48 {offsets = [0, 17], sizes = [8, 1519], strides = [1, 1]} : vector<8x1536xbf16> to vector<8x1519xbf16>
    %65 = vector.extract_strided_slice %48 {offsets = [0, 0], sizes = [8, 17], strides = [1, 1]} : vector<8x1536xbf16> to vector<8x17xbf16>
    %66 = tpu.concatenate %64, %65 in 1 : vector<8x1519xbf16>, vector<8x17xbf16> -> vector<8x1536xbf16>
    %67 = vector.extract_strided_slice %48 {offsets = [0, 18], sizes = [8, 1518], strides = [1, 1]} : vector<8x1536xbf16> to vector<8x1518xbf16>
    %68 = vector.extract_strided_slice %48 {offsets = [0, 0], sizes = [8, 18], strides = [1, 1]} : vector<8x1536xbf16> to vector<8x18xbf16>
    %69 = tpu.concatenate %67, %68 in 1 : vector<8x1518xbf16>, vector<8x18xbf16> -> vector<8x1536xbf16>
    %70 = vector.extract_strided_slice %48 {offsets = [0, 19], sizes = [8, 1517], strides = [1, 1]} : vector<8x1536xbf16> to vector<8x1517xbf16>
    %71 = vector.extract_strided_slice %48 {offsets = [0, 0], sizes = [8, 19], strides = [1, 1]} : vector<8x1536xbf16> to vector<8x19xbf16>
    %72 = tpu.concatenate %70, %71 in 1 : vector<8x1517xbf16>, vector<8x19xbf16> -> vector<8x1536xbf16>
    %73 = tpu.concatenate %51, %54, %57, %60, %48, %63, %66, %69, %72 in 0 : vector<8x1536xbf16>, vector<8x1536xbf16>, vector<8x1536xbf16>, vector<8x1536xbf16>, vector<8x1536xbf16>, vector<8x1536xbf16>, vector<8x1536xbf16>, vector<8x1536xbf16>, vector<8x1536xbf16> -> vector<72x1536xbf16>
    %c0_16 = arith.constant 0 : index
    %c0_17 = arith.constant 0 : index
    %74 = vector.load %arg6[%c0_16, %c0_17] : memref<8x72xbf16, #tpu.memory_space<vmem>>, vector<8x72xbf16>
    %cst_18 = arith.constant dense<0.000000e+00> : vector<8x1536xf32>
    %75 = tpu.matmul %74, %73, %cst_18 {dimension_numbers = #tpu.dot_dimension_numbers<[1], [0], [0], [1], [0, 0, 1, 1], [], []>} : vector<8x72xbf16>, vector<72x1536xbf16>, vector<8x1536xf32> -> vector<8x1536xf32>
    %c0_19 = arith.constant 0 : index
    %c0_20 = arith.constant 0 : index
    %76 = vector.load %arg7[%c0_19, %c0_20] : memref<8x1xf32, #tpu.memory_space<vmem>>, vector<8x1xf32>
    %77 = vector.broadcast %76 : vector<8x1xf32> to vector<8x1536xf32>
    %78 = arith.addf %75, %77 : vector<8x1536xf32>
    %cst_21 = arith.constant 0.000000e+00 : f32
    %79 = vector.broadcast %cst_21 : f32 to vector<8x1536xf32>
    %80 = arith.cmpf oge, %78, %79 : vector<8x1536xf32>
    %cst_22 = arith.constant 0.00999999977 : f32
    %81 = vector.broadcast %cst_22 : f32 to vector<8x1536xf32>
    %82 = arith.mulf %81, %78 : vector<8x1536xf32>
    %83 = arith.select %80, %78, %82 : vector<8x1536xi1>, vector<8x1536xf32>
    %c0_23 = arith.constant 0 : index
    %c0_24 = arith.constant 0 : index
    %84 = vector.load %arg18[%c0_23, %c0_24] : memref<1x1536xf32, #tpu.memory_space<vmem>>, vector<1x1536xf32>
    %85 = vector.broadcast %84 : vector<1x1536xf32> to vector<8x1536xf32>
    %86 = arith.mulf %83, %85 : vector<8x1536xf32>
    %c0_25 = arith.constant 0 : index
    %c0_26 = arith.constant 0 : index
    %87 = vector.load %arg8[%c0_25, %c0_26] : memref<384x128xbf16, #tpu.memory_space<vmem>>, vector<384x128xbf16>
    %88 = vector.extract_strided_slice %86 {offsets = [0, 0], sizes = [8, 384], strides = [1, 1]} : vector<8x1536xf32> to vector<8x384xf32>
    %89 = arith.truncf %88 : vector<8x384xf32> to vector<8x384xbf16>
    %cst_27 = arith.constant dense<0.000000e+00> : vector<8x128xf32>
    %90 = tpu.matmul %89, %87, %cst_27 {dimension_numbers = #tpu.dot_dimension_numbers<[1], [0], [0], [1], [0, 0, 1, 1], [], []>} : vector<8x384xbf16>, vector<384x128xbf16>, vector<8x128xf32> -> vector<8x128xf32>
    %91 = vector.extract_strided_slice %86 {offsets = [0, 384], sizes = [8, 384], strides = [1, 1]} : vector<8x1536xf32> to vector<8x384xf32>
    %92 = arith.truncf %91 : vector<8x384xf32> to vector<8x384xbf16>
    %cst_28 = arith.constant dense<0.000000e+00> : vector<8x128xf32>
    %93 = tpu.matmul %92, %87, %cst_28 {dimension_numbers = #tpu.dot_dimension_numbers<[1], [0], [0], [1], [0, 0, 1, 1], [], []>} : vector<8x384xbf16>, vector<384x128xbf16>, vector<8x128xf32> -> vector<8x128xf32>
    %94 = vector.extract_strided_slice %86 {offsets = [0, 768], sizes = [8, 384], strides = [1, 1]} : vector<8x1536xf32> to vector<8x384xf32>
    %95 = arith.truncf %94 : vector<8x384xf32> to vector<8x384xbf16>
    %cst_29 = arith.constant dense<0.000000e+00> : vector<8x128xf32>
    %96 = tpu.matmul %95, %87, %cst_29 {dimension_numbers = #tpu.dot_dimension_numbers<[1], [0], [0], [1], [0, 0, 1, 1], [], []>} : vector<8x384xbf16>, vector<384x128xbf16>, vector<8x128xf32> -> vector<8x128xf32>
    %97 = vector.extract_strided_slice %86 {offsets = [0, 1152], sizes = [8, 384], strides = [1, 1]} : vector<8x1536xf32> to vector<8x384xf32>
    %98 = arith.truncf %97 : vector<8x384xf32> to vector<8x384xbf16>
    %cst_30 = arith.constant dense<0.000000e+00> : vector<8x128xf32>
    %99 = tpu.matmul %98, %87, %cst_30 {dimension_numbers = #tpu.dot_dimension_numbers<[1], [0], [0], [1], [0, 0, 1, 1], [], []>} : vector<8x384xbf16>, vector<384x128xbf16>, vector<8x128xf32> -> vector<8x128xf32>
    %100 = tpu.concatenate %90, %93, %96, %99 in 1 : vector<8x128xf32>, vector<8x128xf32>, vector<8x128xf32>, vector<8x128xf32> -> vector<8x512xf32>
    %101 = arith.truncf %100 : vector<8x512xf32> to vector<8x512xbf16>
    %102 = vector.extract_strided_slice %101 {offsets = [0, 501], sizes = [8, 11], strides = [1, 1]} : vector<8x512xbf16> to vector<8x11xbf16>
    %103 = vector.extract_strided_slice %101 {offsets = [0, 0], sizes = [8, 501], strides = [1, 1]} : vector<8x512xbf16> to vector<8x501xbf16>
    %104 = tpu.concatenate %102, %103 in 1 : vector<8x11xbf16>, vector<8x501xbf16> -> vector<8x512xbf16>
    %105 = vector.extract_strided_slice %101 {offsets = [0, 502], sizes = [8, 10], strides = [1, 1]} : vector<8x512xbf16> to vector<8x10xbf16>
    %106 = vector.extract_strided_slice %101 {offsets = [0, 0], sizes = [8, 502], strides = [1, 1]} : vector<8x512xbf16> to vector<8x502xbf16>
    %107 = tpu.concatenate %105, %106 in 1 : vector<8x10xbf16>, vector<8x502xbf16> -> vector<8x512xbf16>
    %108 = vector.extract_strided_slice %101 {offsets = [0, 503], sizes = [8, 9], strides = [1, 1]} : vector<8x512xbf16> to vector<8x9xbf16>
    %109 = vector.extract_strided_slice %101 {offsets = [0, 0], sizes = [8, 503], strides = [1, 1]} : vector<8x512xbf16> to vector<8x503xbf16>
    %110 = tpu.concatenate %108, %109 in 1 : vector<8x9xbf16>, vector<8x503xbf16> -> vector<8x512xbf16>
    %111 = vector.extract_strided_slice %101 {offsets = [0, 511], sizes = [8, 1], strides = [1, 1]} : vector<8x512xbf16> to vector<8x1xbf16>
    %112 = vector.extract_strided_slice %101 {offsets = [0, 0], sizes = [8, 511], strides = [1, 1]} : vector<8x512xbf16> to vector<8x511xbf16>
    %113 = tpu.concatenate %111, %112 in 1 : vector<8x1xbf16>, vector<8x511xbf16> -> vector<8x512xbf16>
    %114 = vector.extract_strided_slice %101 {offsets = [0, 1], sizes = [8, 511], strides = [1, 1]} : vector<8x512xbf16> to vector<8x511xbf16>
    %115 = vector.extract_strided_slice %101 {offsets = [0, 0], sizes = [8, 1], strides = [1, 1]} : vector<8x512xbf16> to vector<8x1xbf16>
    %116 = tpu.concatenate %114, %115 in 1 : vector<8x511xbf16>, vector<8x1xbf16> -> vector<8x512xbf16>
    %117 = vector.extract_strided_slice %101 {offsets = [0, 9], sizes = [8, 503], strides = [1, 1]} : vector<8x512xbf16> to vector<8x503xbf16>
    %118 = vector.extract_strided_slice %101 {offsets = [0, 0], sizes = [8, 9], strides = [1, 1]} : vector<8x512xbf16> to vector<8x9xbf16>
    %119 = tpu.concatenate %117, %118 in 1 : vector<8x503xbf16>, vector<8x9xbf16> -> vector<8x512xbf16>
    %120 = vector.extract_strided_slice %101 {offsets = [0, 10], sizes = [8, 502], strides = [1, 1]} : vector<8x512xbf16> to vector<8x502xbf16>
    %121 = vector.extract_strided_slice %101 {offsets = [0, 0], sizes = [8, 10], strides = [1, 1]} : vector<8x512xbf16> to vector<8x10xbf16>
    %122 = tpu.concatenate %120, %121 in 1 : vector<8x502xbf16>, vector<8x10xbf16> -> vector<8x512xbf16>
    %123 = vector.extract_strided_slice %101 {offsets = [0, 11], sizes = [8, 501], strides = [1, 1]} : vector<8x512xbf16> to vector<8x501xbf16>
    %124 = vector.extract_strided_slice %101 {offsets = [0, 0], sizes = [8, 11], strides = [1, 1]} : vector<8x512xbf16> to vector<8x11xbf16>
    %125 = tpu.concatenate %123, %124 in 1 : vector<8x501xbf16>, vector<8x11xbf16> -> vector<8x512xbf16>
    %126 = tpu.concatenate %104, %107, %110, %113, %101, %116, %119, %122, %125 in 0 : vector<8x512xbf16>, vector<8x512xbf16>, vector<8x512xbf16>, vector<8x512xbf16>, vector<8x512xbf16>, vector<8x512xbf16>, vector<8x512xbf16>, vector<8x512xbf16>, vector<8x512xbf16> -> vector<72x512xbf16>
    %c0_31 = arith.constant 0 : index
    %c0_32 = arith.constant 0 : index
    %127 = vector.load %arg9[%c0_31, %c0_32] : memref<16x72xbf16, #tpu.memory_space<vmem>>, vector<16x72xbf16>
    %cst_33 = arith.constant dense<0.000000e+00> : vector<16x512xf32>
    %128 = tpu.matmul %127, %126, %cst_33 {dimension_numbers = #tpu.dot_dimension_numbers<[1], [0], [0], [1], [0, 0, 1, 1], [], []>} : vector<16x72xbf16>, vector<72x512xbf16>, vector<16x512xf32> -> vector<16x512xf32>
    %c0_34 = arith.constant 0 : index
    %c0_35 = arith.constant 0 : index
    %129 = vector.load %arg10[%c0_34, %c0_35] : memref<16x1xf32, #tpu.memory_space<vmem>>, vector<16x1xf32>
    %130 = vector.broadcast %129 : vector<16x1xf32> to vector<16x512xf32>
    %131 = arith.addf %128, %130 : vector<16x512xf32>
    %cst_36 = arith.constant 0.000000e+00 : f32
    %132 = vector.broadcast %cst_36 : f32 to vector<16x512xf32>
    %133 = arith.cmpf oge, %131, %132 : vector<16x512xf32>
    %cst_37 = arith.constant 0.00999999977 : f32
    %134 = vector.broadcast %cst_37 : f32 to vector<16x512xf32>
    %135 = arith.mulf %134, %131 : vector<16x512xf32>
    %136 = arith.select %133, %131, %135 : vector<16x512xi1>, vector<16x512xf32>
    %c0_38 = arith.constant 0 : index
    %c0_39 = arith.constant 0 : index
    %137 = vector.load %arg19[%c0_38, %c0_39] : memref<1x512xf32, #tpu.memory_space<vmem>>, vector<1x512xf32>
    %138 = vector.broadcast %137 : vector<1x512xf32> to vector<16x512xf32>
    %139 = arith.mulf %136, %138 : vector<16x512xf32>
    %140 = arith.truncf %139 : vector<16x512xf32> to vector<16x512xbf16>
    %141 = vector.extract_strided_slice %140 {offsets = [0, 501], sizes = [16, 11], strides = [1, 1]} : vector<16x512xbf16> to vector<16x11xbf16>
    %142 = vector.extract_strided_slice %140 {offsets = [0, 0], sizes = [16, 501], strides = [1, 1]} : vector<16x512xbf16> to vector<16x501xbf16>
    %143 = tpu.concatenate %141, %142 in 1 : vector<16x11xbf16>, vector<16x501xbf16> -> vector<16x512xbf16>
    %144 = vector.extract_strided_slice %140 {offsets = [0, 502], sizes = [16, 10], strides = [1, 1]} : vector<16x512xbf16> to vector<16x10xbf16>
    %145 = vector.extract_strided_slice %140 {offsets = [0, 0], sizes = [16, 502], strides = [1, 1]} : vector<16x512xbf16> to vector<16x502xbf16>
    %146 = tpu.concatenate %144, %145 in 1 : vector<16x10xbf16>, vector<16x502xbf16> -> vector<16x512xbf16>
    %147 = vector.extract_strided_slice %140 {offsets = [0, 503], sizes = [16, 9], strides = [1, 1]} : vector<16x512xbf16> to vector<16x9xbf16>
    %148 = vector.extract_strided_slice %140 {offsets = [0, 0], sizes = [16, 503], strides = [1, 1]} : vector<16x512xbf16> to vector<16x503xbf16>
    %149 = tpu.concatenate %147, %148 in 1 : vector<16x9xbf16>, vector<16x503xbf16> -> vector<16x512xbf16>
    %150 = vector.extract_strided_slice %140 {offsets = [0, 511], sizes = [16, 1], strides = [1, 1]} : vector<16x512xbf16> to vector<16x1xbf16>
    %151 = vector.extract_strided_slice %140 {offsets = [0, 0], sizes = [16, 511], strides = [1, 1]} : vector<16x512xbf16> to vector<16x511xbf16>
    %152 = tpu.concatenate %150, %151 in 1 : vector<16x1xbf16>, vector<16x511xbf16> -> vector<16x512xbf16>
    %153 = vector.extract_strided_slice %140 {offsets = [0, 1], sizes = [16, 511], strides = [1, 1]} : vector<16x512xbf16> to vector<16x511xbf16>
    %154 = vector.extract_strided_slice %140 {offsets = [0, 0], sizes = [16, 1], strides = [1, 1]} : vector<16x512xbf16> to vector<16x1xbf16>
    %155 = tpu.concatenate %153, %154 in 1 : vector<16x511xbf16>, vector<16x1xbf16> -> vector<16x512xbf16>
    %156 = vector.extract_strided_slice %140 {offsets = [0, 9], sizes = [16, 503], strides = [1, 1]} : vector<16x512xbf16> to vector<16x503xbf16>
    %157 = vector.extract_strided_slice %140 {offsets = [0, 0], sizes = [16, 9], strides = [1, 1]} : vector<16x512xbf16> to vector<16x9xbf16>
    %158 = tpu.concatenate %156, %157 in 1 : vector<16x503xbf16>, vector<16x9xbf16> -> vector<16x512xbf16>
    %159 = vector.extract_strided_slice %140 {offsets = [0, 10], sizes = [16, 502], strides = [1, 1]} : vector<16x512xbf16> to vector<16x502xbf16>
    %160 = vector.extract_strided_slice %140 {offsets = [0, 0], sizes = [16, 10], strides = [1, 1]} : vector<16x512xbf16> to vector<16x10xbf16>
    %161 = tpu.concatenate %159, %160 in 1 : vector<16x502xbf16>, vector<16x10xbf16> -> vector<16x512xbf16>
    %162 = vector.extract_strided_slice %140 {offsets = [0, 11], sizes = [16, 501], strides = [1, 1]} : vector<16x512xbf16> to vector<16x501xbf16>
    %163 = vector.extract_strided_slice %140 {offsets = [0, 0], sizes = [16, 11], strides = [1, 1]} : vector<16x512xbf16> to vector<16x11xbf16>
    %164 = tpu.concatenate %162, %163 in 1 : vector<16x501xbf16>, vector<16x11xbf16> -> vector<16x512xbf16>
    %165 = tpu.concatenate %143, %146, %149, %152, %140, %155, %158, %161, %164 in 0 : vector<16x512xbf16>, vector<16x512xbf16>, vector<16x512xbf16>, vector<16x512xbf16>, vector<16x512xbf16>, vector<16x512xbf16>, vector<16x512xbf16>, vector<16x512xbf16>, vector<16x512xbf16> -> vector<144x512xbf16>
    %c0_40 = arith.constant 0 : index
    %c0_41 = arith.constant 0 : index
    %166 = vector.load %arg11[%c0_40, %c0_41] : memref<16x144xbf16, #tpu.memory_space<vmem>>, vector<16x144xbf16>
    %cst_42 = arith.constant dense<0.000000e+00> : vector<16x512xf32>
    %167 = tpu.matmul %166, %165, %cst_42 {dimension_numbers = #tpu.dot_dimension_numbers<[1], [0], [0], [1], [0, 0, 1, 1], [], []>} : vector<16x144xbf16>, vector<144x512xbf16>, vector<16x512xf32> -> vector<16x512xf32>
    %c0_43 = arith.constant 0 : index
    %c0_44 = arith.constant 0 : index
    %168 = vector.load %arg12[%c0_43, %c0_44] : memref<16x1xf32, #tpu.memory_space<vmem>>, vector<16x1xf32>
    %169 = vector.broadcast %168 : vector<16x1xf32> to vector<16x512xf32>
    %170 = arith.addf %167, %169 : vector<16x512xf32>
    %cst_45 = arith.constant 0.000000e+00 : f32
    %171 = vector.broadcast %cst_45 : f32 to vector<16x512xf32>
    %172 = arith.cmpf oge, %170, %171 : vector<16x512xf32>
    %cst_46 = arith.constant 0.00999999977 : f32
    %173 = vector.broadcast %cst_46 : f32 to vector<16x512xf32>
    %174 = arith.mulf %173, %170 : vector<16x512xf32>
    %175 = arith.select %172, %170, %174 : vector<16x512xi1>, vector<16x512xf32>
    %c0_47 = arith.constant 0 : index
    %c0_48 = arith.constant 0 : index
    %176 = vector.load %arg19[%c0_47, %c0_48] : memref<1x512xf32, #tpu.memory_space<vmem>>, vector<1x512xf32>
    %177 = vector.broadcast %176 : vector<1x512xf32> to vector<16x512xf32>
    %178 = arith.mulf %175, %177 : vector<16x512xf32>
    %c0_49 = arith.constant 0 : index
    %c0_50 = arith.constant 0 : index
    %179 = vector.load %arg13[%c0_49, %c0_50] : memref<128x128xbf16, #tpu.memory_space<vmem>>, vector<128x128xbf16>
    %180 = vector.extract_strided_slice %178 {offsets = [0, 0], sizes = [16, 128], strides = [1, 1]} : vector<16x512xf32> to vector<16x128xf32>
    %181 = arith.truncf %180 : vector<16x128xf32> to vector<16x128xbf16>
    %cst_51 = arith.constant dense<0.000000e+00> : vector<16x128xf32>
    %182 = tpu.matmul %181, %179, %cst_51 {dimension_numbers = #tpu.dot_dimension_numbers<[1], [0], [0], [1], [0, 0, 1, 1], [], []>} : vector<16x128xbf16>, vector<128x128xbf16>, vector<16x128xf32> -> vector<16x128xf32>
    %183 = vector.extract_strided_slice %178 {offsets = [0, 128], sizes = [16, 128], strides = [1, 1]} : vector<16x512xf32> to vector<16x128xf32>
    %184 = arith.truncf %183 : vector<16x128xf32> to vector<16x128xbf16>
    %cst_52 = arith.constant dense<0.000000e+00> : vector<16x128xf32>
    %185 = tpu.matmul %184, %179, %cst_52 {dimension_numbers = #tpu.dot_dimension_numbers<[1], [0], [0], [1], [0, 0, 1, 1], [], []>} : vector<16x128xbf16>, vector<128x128xbf16>, vector<16x128xf32> -> vector<16x128xf32>
    %186 = vector.extract_strided_slice %178 {offsets = [0, 256], sizes = [16, 128], strides = [1, 1]} : vector<16x512xf32> to vector<16x128xf32>
    %187 = arith.truncf %186 : vector<16x128xf32> to vector<16x128xbf16>
    %cst_53 = arith.constant dense<0.000000e+00> : vector<16x128xf32>
    %188 = tpu.matmul %187, %179, %cst_53 {dimension_numbers = #tpu.dot_dimension_numbers<[1], [0], [0], [1], [0, 0, 1, 1], [], []>} : vector<16x128xbf16>, vector<128x128xbf16>, vector<16x128xf32> -> vector<16x128xf32>
    %189 = vector.extract_strided_slice %178 {offsets = [0, 384], sizes = [16, 128], strides = [1, 1]} : vector<16x512xf32> to vector<16x128xf32>
    %190 = arith.truncf %189 : vector<16x128xf32> to vector<16x128xbf16>
    %cst_54 = arith.constant dense<0.000000e+00> : vector<16x128xf32>
    %191 = tpu.matmul %190, %179, %cst_54 {dimension_numbers = #tpu.dot_dimension_numbers<[1], [0], [0], [1], [0, 0, 1, 1], [], []>} : vector<16x128xbf16>, vector<128x128xbf16>, vector<16x128xf32> -> vector<16x128xf32>
    %192 = tpu.concatenate %182, %185, %188, %191 in 1 : vector<16x128xf32>, vector<16x128xf32>, vector<16x128xf32>, vector<16x128xf32> -> vector<16x512xf32>
    %193 = arith.truncf %192 : vector<16x512xf32> to vector<16x512xbf16>
    %194 = vector.extract_strided_slice %193 {offsets = [0, 505], sizes = [16, 7], strides = [1, 1]} : vector<16x512xbf16> to vector<16x7xbf16>
    %195 = vector.extract_strided_slice %193 {offsets = [0, 0], sizes = [16, 505], strides = [1, 1]} : vector<16x512xbf16> to vector<16x505xbf16>
    %196 = tpu.concatenate %194, %195 in 1 : vector<16x7xbf16>, vector<16x505xbf16> -> vector<16x512xbf16>
    %197 = vector.extract_strided_slice %193 {offsets = [0, 506], sizes = [16, 6], strides = [1, 1]} : vector<16x512xbf16> to vector<16x6xbf16>
    %198 = vector.extract_strided_slice %193 {offsets = [0, 0], sizes = [16, 506], strides = [1, 1]} : vector<16x512xbf16> to vector<16x506xbf16>
    %199 = tpu.concatenate %197, %198 in 1 : vector<16x6xbf16>, vector<16x506xbf16> -> vector<16x512xbf16>
    %200 = vector.extract_strided_slice %193 {offsets = [0, 507], sizes = [16, 5], strides = [1, 1]} : vector<16x512xbf16> to vector<16x5xbf16>
    %201 = vector.extract_strided_slice %193 {offsets = [0, 0], sizes = [16, 507], strides = [1, 1]} : vector<16x512xbf16> to vector<16x507xbf16>
    %202 = tpu.concatenate %200, %201 in 1 : vector<16x5xbf16>, vector<16x507xbf16> -> vector<16x512xbf16>
    %203 = vector.extract_strided_slice %193 {offsets = [0, 511], sizes = [16, 1], strides = [1, 1]} : vector<16x512xbf16> to vector<16x1xbf16>
    %204 = vector.extract_strided_slice %193 {offsets = [0, 0], sizes = [16, 511], strides = [1, 1]} : vector<16x512xbf16> to vector<16x511xbf16>
    %205 = tpu.concatenate %203, %204 in 1 : vector<16x1xbf16>, vector<16x511xbf16> -> vector<16x512xbf16>
    %206 = vector.extract_strided_slice %193 {offsets = [0, 1], sizes = [16, 511], strides = [1, 1]} : vector<16x512xbf16> to vector<16x511xbf16>
    %207 = vector.extract_strided_slice %193 {offsets = [0, 0], sizes = [16, 1], strides = [1, 1]} : vector<16x512xbf16> to vector<16x1xbf16>
    %208 = tpu.concatenate %206, %207 in 1 : vector<16x511xbf16>, vector<16x1xbf16> -> vector<16x512xbf16>
    %209 = vector.extract_strided_slice %193 {offsets = [0, 5], sizes = [16, 507], strides = [1, 1]} : vector<16x512xbf16> to vector<16x507xbf16>
    %210 = vector.extract_strided_slice %193 {offsets = [0, 0], sizes = [16, 5], strides = [1, 1]} : vector<16x512xbf16> to vector<16x5xbf16>
    %211 = tpu.concatenate %209, %210 in 1 : vector<16x507xbf16>, vector<16x5xbf16> -> vector<16x512xbf16>
    %212 = vector.extract_strided_slice %193 {offsets = [0, 6], sizes = [16, 506], strides = [1, 1]} : vector<16x512xbf16> to vector<16x506xbf16>
    %213 = vector.extract_strided_slice %193 {offsets = [0, 0], sizes = [16, 6], strides = [1, 1]} : vector<16x512xbf16> to vector<16x6xbf16>
    %214 = tpu.concatenate %212, %213 in 1 : vector<16x506xbf16>, vector<16x6xbf16> -> vector<16x512xbf16>
    %215 = vector.extract_strided_slice %193 {offsets = [0, 7], sizes = [16, 505], strides = [1, 1]} : vector<16x512xbf16> to vector<16x505xbf16>
    %216 = vector.extract_strided_slice %193 {offsets = [0, 0], sizes = [16, 7], strides = [1, 1]} : vector<16x512xbf16> to vector<16x7xbf16>
    %217 = tpu.concatenate %215, %216 in 1 : vector<16x505xbf16>, vector<16x7xbf16> -> vector<16x512xbf16>
    %218 = tpu.concatenate %196, %199, %202, %205, %193, %208, %211, %214, %217 in 0 : vector<16x512xbf16>, vector<16x512xbf16>, vector<16x512xbf16>, vector<16x512xbf16>, vector<16x512xbf16>, vector<16x512xbf16>, vector<16x512xbf16>, vector<16x512xbf16>, vector<16x512xbf16> -> vector<144x512xbf16>
    %c0_55 = arith.constant 0 : index
    %c0_56 = arith.constant 0 : index
    %219 = vector.load %arg14[%c0_55, %c0_56] : memref<32x144xbf16, #tpu.memory_space<vmem>>, vector<32x144xbf16>
    %cst_57 = arith.constant dense<0.000000e+00> : vector<32x512xf32>
    %220 = tpu.matmul %219, %218, %cst_57 {dimension_numbers = #tpu.dot_dimension_numbers<[1], [0], [0], [1], [0, 0, 1, 1], [], []>} : vector<32x144xbf16>, vector<144x512xbf16>, vector<32x512xf32> -> vector<32x512xf32>
    %c0_58 = arith.constant 0 : index
    %c0_59 = arith.constant 0 : index
    %221 = vector.load %arg15[%c0_58, %c0_59] : memref<32x1xf32, #tpu.memory_space<vmem>>, vector<32x1xf32>
    %222 = vector.broadcast %221 : vector<32x1xf32> to vector<32x512xf32>
    %223 = arith.addf %220, %222 : vector<32x512xf32>
    %cst_60 = arith.constant 0.000000e+00 : f32
    %224 = vector.broadcast %cst_60 : f32 to vector<32x512xf32>
    %225 = arith.cmpf oge, %223, %224 : vector<32x512xf32>
    %cst_61 = arith.constant 0.00999999977 : f32
    %226 = vector.broadcast %cst_61 : f32 to vector<32x512xf32>
    %227 = arith.mulf %226, %223 : vector<32x512xf32>
    %228 = arith.select %225, %223, %227 : vector<32x512xi1>, vector<32x512xf32>
    %c0_62 = arith.constant 0 : index
    %c0_63 = arith.constant 0 : index
    %229 = vector.load %arg20[%c0_62, %c0_63] : memref<1x512xf32, #tpu.memory_space<vmem>>, vector<1x512xf32>
    %230 = vector.broadcast %229 : vector<1x512xf32> to vector<32x512xf32>
    %231 = arith.mulf %228, %230 : vector<32x512xf32>
    %232 = arith.truncf %231 : vector<32x512xf32> to vector<32x512xbf16>
    %233 = vector.extract_strided_slice %232 {offsets = [0, 505], sizes = [32, 7], strides = [1, 1]} : vector<32x512xbf16> to vector<32x7xbf16>
    %234 = vector.extract_strided_slice %232 {offsets = [0, 0], sizes = [32, 505], strides = [1, 1]} : vector<32x512xbf16> to vector<32x505xbf16>
    %235 = tpu.concatenate %233, %234 in 1 : vector<32x7xbf16>, vector<32x505xbf16> -> vector<32x512xbf16>
    %236 = vector.extract_strided_slice %232 {offsets = [0, 506], sizes = [32, 6], strides = [1, 1]} : vector<32x512xbf16> to vector<32x6xbf16>
    %237 = vector.extract_strided_slice %232 {offsets = [0, 0], sizes = [32, 506], strides = [1, 1]} : vector<32x512xbf16> to vector<32x506xbf16>
    %238 = tpu.concatenate %236, %237 in 1 : vector<32x6xbf16>, vector<32x506xbf16> -> vector<32x512xbf16>
    %239 = vector.extract_strided_slice %232 {offsets = [0, 507], sizes = [32, 5], strides = [1, 1]} : vector<32x512xbf16> to vector<32x5xbf16>
    %240 = vector.extract_strided_slice %232 {offsets = [0, 0], sizes = [32, 507], strides = [1, 1]} : vector<32x512xbf16> to vector<32x507xbf16>
    %241 = tpu.concatenate %239, %240 in 1 : vector<32x5xbf16>, vector<32x507xbf16> -> vector<32x512xbf16>
    %242 = vector.extract_strided_slice %232 {offsets = [0, 511], sizes = [32, 1], strides = [1, 1]} : vector<32x512xbf16> to vector<32x1xbf16>
    %243 = vector.extract_strided_slice %232 {offsets = [0, 0], sizes = [32, 511], strides = [1, 1]} : vector<32x512xbf16> to vector<32x511xbf16>
    %244 = tpu.concatenate %242, %243 in 1 : vector<32x1xbf16>, vector<32x511xbf16> -> vector<32x512xbf16>
    %245 = vector.extract_strided_slice %232 {offsets = [0, 1], sizes = [32, 511], strides = [1, 1]} : vector<32x512xbf16> to vector<32x511xbf16>
    %246 = vector.extract_strided_slice %232 {offsets = [0, 0], sizes = [32, 1], strides = [1, 1]} : vector<32x512xbf16> to vector<32x1xbf16>
    %247 = tpu.concatenate %245, %246 in 1 : vector<32x511xbf16>, vector<32x1xbf16> -> vector<32x512xbf16>
    %248 = vector.extract_strided_slice %232 {offsets = [0, 5], sizes = [32, 507], strides = [1, 1]} : vector<32x512xbf16> to vector<32x507xbf16>
    %249 = vector.extract_strided_slice %232 {offsets = [0, 0], sizes = [32, 5], strides = [1, 1]} : vector<32x512xbf16> to vector<32x5xbf16>
    %250 = tpu.concatenate %248, %249 in 1 : vector<32x507xbf16>, vector<32x5xbf16> -> vector<32x512xbf16>
    %251 = vector.extract_strided_slice %232 {offsets = [0, 6], sizes = [32, 506], strides = [1, 1]} : vector<32x512xbf16> to vector<32x506xbf16>
    %252 = vector.extract_strided_slice %232 {offsets = [0, 0], sizes = [32, 6], strides = [1, 1]} : vector<32x512xbf16> to vector<32x6xbf16>
    %253 = tpu.concatenate %251, %252 in 1 : vector<32x506xbf16>, vector<32x6xbf16> -> vector<32x512xbf16>
    %254 = vector.extract_strided_slice %232 {offsets = [0, 7], sizes = [32, 505], strides = [1, 1]} : vector<32x512xbf16> to vector<32x505xbf16>
    %255 = vector.extract_strided_slice %232 {offsets = [0, 0], sizes = [32, 7], strides = [1, 1]} : vector<32x512xbf16> to vector<32x7xbf16>
    %256 = tpu.concatenate %254, %255 in 1 : vector<32x505xbf16>, vector<32x7xbf16> -> vector<32x512xbf16>
    %257 = tpu.concatenate %235, %238, %241, %244, %232, %247, %250, %253, %256 in 0 : vector<32x512xbf16>, vector<32x512xbf16>, vector<32x512xbf16>, vector<32x512xbf16>, vector<32x512xbf16>, vector<32x512xbf16>, vector<32x512xbf16>, vector<32x512xbf16>, vector<32x512xbf16> -> vector<288x512xbf16>
    %c0_64 = arith.constant 0 : index
    %c0_65 = arith.constant 0 : index
    %258 = vector.load %arg16[%c0_64, %c0_65] : memref<8x288xbf16, #tpu.memory_space<vmem>>, vector<8x288xbf16>
    %cst_66 = arith.constant dense<0.000000e+00> : vector<8x512xf32>
    %259 = tpu.matmul %258, %257, %cst_66 {dimension_numbers = #tpu.dot_dimension_numbers<[1], [0], [0], [1], [0, 0, 1, 1], [], []>} : vector<8x288xbf16>, vector<288x512xbf16>, vector<8x512xf32> -> vector<8x512xf32>
    %c0_67 = arith.constant 0 : index
    %c0_68 = arith.constant 0 : index
    %260 = vector.load %arg17[%c0_67, %c0_68] : memref<8x1xf32, #tpu.memory_space<vmem>>, vector<8x1xf32>
    %261 = vector.broadcast %260 : vector<8x1xf32> to vector<8x512xf32>
    %262 = arith.addf %259, %261 : vector<8x512xf32>
    %c0_69 = arith.constant 0 : index
    %c0_70 = arith.constant 0 : index
    %263 = vector.load %arg20[%c0_69, %c0_70] : memref<1x512xf32, #tpu.memory_space<vmem>>, vector<1x512xf32>
    %264 = vector.broadcast %263 : vector<1x512xf32> to vector<8x512xf32>
    %265 = arith.mulf %262, %264 : vector<8x512xf32>
    %c0_71 = arith.constant 0 : index
    %c0_72 = arith.constant 0 : index
    %c0_73 = arith.constant 0 : index
    %266 = vector.load %arg21[%c0_71, %c0_72, %c0_73] : memref<2x8x512xf32, #tpu.memory_space<vmem>>, vector<1x8x512xf32>
    %267 = vector.shape_cast %266 : vector<1x8x512xf32> to vector<8x512xf32>
    %268 = arith.mulf %265, %267 : vector<8x512xf32>
    %cst_74 = arith.constant dense<0.000000e+00> : vector<512xf32>
    %269 = vector.multi_reduction <add>, %268, %cst_74 [0] : vector<8x512xf32> to vector<512xf32>
    %270 = vector.shape_cast %269 : vector<512xf32> to vector<1x512xf32>
    %c1 = arith.constant 1 : index
    %c0_75 = arith.constant 0 : index
    %c0_76 = arith.constant 0 : index
    %271 = vector.load %arg21[%c1, %c0_75, %c0_76] : memref<2x8x512xf32, #tpu.memory_space<vmem>>, vector<1x8x512xf32>
    %272 = vector.shape_cast %271 : vector<1x8x512xf32> to vector<8x512xf32>
    %273 = arith.mulf %265, %272 : vector<8x512xf32>
    %cst_77 = arith.constant dense<0.000000e+00> : vector<512xf32>
    %274 = vector.multi_reduction <add>, %273, %cst_77 [0] : vector<8x512xf32> to vector<512xf32>
    %275 = vector.shape_cast %274 : vector<512xf32> to vector<1x512xf32>
    %276 = tpu.concatenate %270, %275 in 0 : vector<1x512xf32>, vector<1x512xf32> -> vector<2x512xf32>
    %c0_78 = arith.constant 0 : index
    %c0_79 = arith.constant 0 : index
    %277 = vector.load %arg22[%c0_78, %c0_79] : memref<512x128xf32, #tpu.memory_space<vmem>>, vector<512x128xf32>
    %cst_80 = arith.constant dense<0.000000e+00> : vector<2x128xf32>
    %278 = tpu.matmul %276, %277, %cst_80 {dimension_numbers = #tpu.dot_dimension_numbers<[1], [0], [0], [1], [0, 0, 1, 1], [], []>} : vector<2x512xf32>, vector<512x128xf32>, vector<2x128xf32> -> vector<2x128xf32>
    %c0_81 = arith.constant 0 : index
    %c0_82 = arith.constant 0 : index
    %279 = vector.load %arg23[%c0_81, %c0_82] : memref<2x1xf32, #tpu.memory_space<vmem>>, vector<2x1xf32>
    %280 = vector.broadcast %279 : vector<2x1xf32> to vector<2x128xf32>
    %281 = arith.addf %278, %280 : vector<2x128xf32>
    %282 = vector.extract_strided_slice %281 {offsets = [0, 0], sizes = [1, 128], strides = [1, 1]} : vector<2x128xf32> to vector<1x128xf32>
    %283 = vector.extract_strided_slice %281 {offsets = [1, 0], sizes = [1, 128], strides = [1, 1]} : vector<2x128xf32> to vector<1x128xf32>
    %284 = arith.maximumf %282, %283 : vector<1x128xf32>
    %285 = arith.subf %282, %284 : vector<1x128xf32>
    %286 = math.exp %285 : vector<1x128xf32>
    %287 = arith.subf %283, %284 : vector<1x128xf32>
    %288 = math.exp %287 : vector<1x128xf32>
    %289 = arith.addf %286, %288 : vector<1x128xf32>
    %290 = math.log %289 : vector<1x128xf32>
    %291 = arith.addf %284, %290 : vector<1x128xf32>
    %292 = arith.subf %282, %291 : vector<1x128xf32>
    %293 = arith.subf %283, %291 : vector<1x128xf32>
    %294 = tpu.concatenate %292, %293 in 0 : vector<1x128xf32>, vector<1x128xf32> -> vector<2x128xf32>
    %c0_83 = arith.constant 0 : index
    %c0_84 = arith.constant 0 : index
    %c0_85 = arith.constant 0 : index
    %295 = vector.load %arg24[%c0_83, %c0_84, %c0_85] : memref<1x2x128xf32, #tpu.memory_space<vmem>>, vector<1x2x128xf32>
    %296 = vector.shape_cast %295 : vector<1x2x128xf32> to vector<2x128xf32>
    %297 = vector.shape_cast %294 : vector<2x128xf32> to vector<1x2x128xf32>
    tpu.vector_store %arg24[%c0_83, %c0_84, %c0_85], %297 {strides = array<i32>} : memref<1x2x128xf32, #tpu.memory_space<vmem>>, vector<1x2x128xf32>,
    return
  }
  func.func @transform_0(%arg0: i32) -> (i32, i32) {
    %c0_i32 = arith.constant 0 : i32
    %c0_i32_0 = arith.constant 0 : i32
    return %c0_i32, %arg0 : i32, i32
  }
  func.func @transform_1(%arg0: i32) -> (i32, i32) {
    %c0_i32 = arith.constant 0 : i32
    %c0_i32_0 = arith.constant 0 : i32
    %c0_i32_1 = arith.constant 0 : i32
    return %c0_i32, %c0_i32_0 : i32, i32
  }
  func.func @transform_2(%arg0: i32) -> (i32, i32) {
    %c0_i32 = arith.constant 0 : i32
    %c0_i32_0 = arith.constant 0 : i32
    %c0_i32_1 = arith.constant 0 : i32
    return %c0_i32, %c0_i32_0 : i32, i32
  }
  func.func @transform_3(%arg0: i32) -> (i32, i32) {
    %c0_i32 = arith.constant 0 : i32
    %c0_i32_0 = arith.constant 0 : i32
    %c0_i32_1 = arith.constant 0 : i32
    return %c0_i32, %c0_i32_0 : i32, i32
  }
  func.func @transform_4(%arg0: i32) -> (i32, i32) {
    %c0_i32 = arith.constant 0 : i32
    %c0_i32_0 = arith.constant 0 : i32
    %c0_i32_1 = arith.constant 0 : i32
    return %c0_i32, %c0_i32_0 : i32, i32
  }
  func.func @transform_5(%arg0: i32) -> (i32, i32) {
    %c0_i32 = arith.constant 0 : i32
    %c0_i32_0 = arith.constant 0 : i32
    %c0_i32_1 = arith.constant 0 : i32
    return %c0_i32, %c0_i32_0 : i32, i32
  }
  func.func @transform_6(%arg0: i32) -> (i32, i32) {
    %c0_i32 = arith.constant 0 : i32
    %c0_i32_0 = arith.constant 0 : i32
    %c0_i32_1 = arith.constant 0 : i32
    return %c0_i32, %c0_i32_0 : i32, i32
  }
  func.func @transform_7(%arg0: i32) -> (i32, i32) {
    %c0_i32 = arith.constant 0 : i32
    %c0_i32_0 = arith.constant 0 : i32
    %c0_i32_1 = arith.constant 0 : i32
    return %c0_i32, %c0_i32_0 : i32, i32
  }
  func.func @transform_8(%arg0: i32) -> (i32, i32) {
    %c0_i32 = arith.constant 0 : i32
    %c0_i32_0 = arith.constant 0 : i32
    %c0_i32_1 = arith.constant 0 : i32
    return %c0_i32, %c0_i32_0 : i32, i32
  }
  func.func @transform_9(%arg0: i32) -> (i32, i32) {
    %c0_i32 = arith.constant 0 : i32
    %c0_i32_0 = arith.constant 0 : i32
    %c0_i32_1 = arith.constant 0 : i32
    return %c0_i32, %c0_i32_0 : i32, i32
  }
  func.func @transform_10(%arg0: i32) -> (i32, i32) {
    %c0_i32 = arith.constant 0 : i32
    %c0_i32_0 = arith.constant 0 : i32
    %c0_i32_1 = arith.constant 0 : i32
    return %c0_i32, %c0_i32_0 : i32, i32
  }
  func.func @transform_11(%arg0: i32) -> (i32, i32) {
    %c0_i32 = arith.constant 0 : i32
    %c0_i32_0 = arith.constant 0 : i32
    %c0_i32_1 = arith.constant 0 : i32
    return %c0_i32, %c0_i32_0 : i32, i32
  }
  func.func @transform_12(%arg0: i32) -> (i32, i32) {
    %c0_i32 = arith.constant 0 : i32
    %c0_i32_0 = arith.constant 0 : i32
    %c0_i32_1 = arith.constant 0 : i32
    return %c0_i32, %c0_i32_0 : i32, i32
  }
  func.func @transform_13(%arg0: i32) -> (i32, i32) {
    %c0_i32 = arith.constant 0 : i32
    %c0_i32_0 = arith.constant 0 : i32
    %c0_i32_1 = arith.constant 0 : i32
    return %c0_i32, %c0_i32_0 : i32, i32
  }
  func.func @transform_14(%arg0: i32) -> (i32, i32) {
    %c0_i32 = arith.constant 0 : i32
    %c0_i32_0 = arith.constant 0 : i32
    %c0_i32_1 = arith.constant 0 : i32
    return %c0_i32, %c0_i32_0 : i32, i32
  }
  func.func @transform_15(%arg0: i32) -> (i32, i32) {
    %c0_i32 = arith.constant 0 : i32
    %c0_i32_0 = arith.constant 0 : i32
    %c0_i32_1 = arith.constant 0 : i32
    return %c0_i32, %c0_i32_0 : i32, i32
  }
  func.func @transform_16(%arg0: i32) -> (i32, i32) {
    %c0_i32 = arith.constant 0 : i32
    %c0_i32_0 = arith.constant 0 : i32
    %c0_i32_1 = arith.constant 0 : i32
    return %c0_i32, %c0_i32_0 : i32, i32
  }
  func.func @transform_17(%arg0: i32) -> (i32, i32) {
    %c0_i32 = arith.constant 0 : i32
    %c0_i32_0 = arith.constant 0 : i32
    %c0_i32_1 = arith.constant 0 : i32
    return %c0_i32, %c0_i32_0 : i32, i32
  }
  func.func @transform_18(%arg0: i32) -> (i32, i32) {
    %c0_i32 = arith.constant 0 : i32
    %c0_i32_0 = arith.constant 0 : i32
    %c0_i32_1 = arith.constant 0 : i32
    return %c0_i32, %c0_i32_0 : i32, i32
  }
  func.func @transform_19(%arg0: i32) -> (i32, i32) {
    %c0_i32 = arith.constant 0 : i32
    %c0_i32_0 = arith.constant 0 : i32
    %c0_i32_1 = arith.constant 0 : i32
    return %c0_i32, %c0_i32_0 : i32, i32
  }
  func.func @transform_20(%arg0: i32) -> (i32, i32, i32) {
    %c0_i32 = arith.constant 0 : i32
    %c0_i32_0 = arith.constant 0 : i32
    %c0_i32_1 = arith.constant 0 : i32
    %c0_i32_2 = arith.constant 0 : i32
    return %c0_i32, %c0_i32_0, %c0_i32_1 : i32, i32, i32
  }
  func.func @transform_21(%arg0: i32) -> (i32, i32) {
    %c0_i32 = arith.constant 0 : i32
    %c0_i32_0 = arith.constant 0 : i32
    %c0_i32_1 = arith.constant 0 : i32
    return %c0_i32, %c0_i32_0 : i32, i32
  }
  func.func @transform_22(%arg0: i32) -> (i32, i32) {
    %c0_i32 = arith.constant 0 : i32
    %c0_i32_0 = arith.constant 0 : i32
    %c0_i32_1 = arith.constant 0 : i32
    return %c0_i32, %c0_i32_0 : i32, i32
  }
  func.func @transform_23(%arg0: i32) -> (i32, i32, i32) {
    %c0_i32 = arith.constant 0 : i32
    %c0_i32_0 = arith.constant 0 : i32
    %c0_i32_1 = arith.constant 0 : i32
    return %arg0, %c0_i32, %c0_i32_0 : i32, i32, i32
  }
}

</mosaic_0001>

<llo_original>
// kernel: tpu_custom_call.1
$region0: #{tpu_custom_call.1}
  #allocation0 [shape = 'u32[]', space=smem, size = 0x4, offset = 0x4, fixed_abs, tag = 'smem constant byte address 0x4 - core index']
  #allocation1 [shape = 'u32[72,128]{1,0:T(1,128)}', space=vmem, size = 0x9000, scoped, tag = 'internal scratch']
  %s0 = inlined_call_operand.vmem [shape: bf16[8,3072], index: 0, kind: input, shape index: {}]
  %s1 = inlined_call_operand.hbm [shape: bf16[8,8], index: 1, kind: input, shape index: {}]
  %s2 = inlined_call_operand.vmem [shape: f32[8,1], index: 2, kind: input, shape index: {}]
  %s3 = inlined_call_operand.hbm [shape: bf16[8,72], index: 3, kind: input, shape index: {}]
  %s4 = inlined_call_operand.vmem [shape: f32[8,1], index: 4, kind: input, shape index: {}]
  %s5 = inlined_call_operand.hbm [shape: bf16[8,72], index: 5, kind: input, shape index: {}]
  %s6 = inlined_call_operand.vmem [shape: f32[8,1], index: 6, kind: input, shape index: {}]
  %s7 = inlined_call_operand.hbm [shape: bf16[384,128], index: 7, kind: input, shape index: {}]
  %s8 = inlined_call_operand.hbm [shape: bf16[16,72], index: 8, kind: input, shape index: {}]
  %s9 = inlined_call_operand.vmem [shape: f32[16,1], index: 9, kind: input, shape index: {}]
  %s10 = inlined_call_operand.vmem [shape: bf16[16,144], index: 10, kind: input, shape index: {}]
  %s11 = inlined_call_operand.vmem [shape: f32[16,1], index: 11, kind: input, shape index: {}]
  %s12 = inlined_call_operand.hbm [shape: bf16[128,128], index: 12, kind: input, shape index: {}]
  %s13 = inlined_call_operand.hbm [shape: bf16[32,144], index: 13, kind: input, shape index: {}]
  %s14 = inlined_call_operand.vmem [shape: f32[32,1], index: 14, kind: input, shape index: {}]
  %s15 = inlined_call_operand.hbm [shape: bf16[8,288], index: 15, kind: input, shape index: {}]
  %s16 = inlined_call_operand.vmem [shape: f32[8,1], index: 16, kind: input, shape index: {}]
  %s17 = inlined_call_operand.hbm [shape: f32[1,1536], index: 17, kind: input, shape index: {}]
  %s18 = inlined_call_operand.vmem [shape: f32[1,512], index: 18, kind: input, shape index: {}]
  %s19 = inlined_call_operand.vmem [shape: f32[1,512], index: 19, kind: input, shape index: {}]
  %s20 = inlined_call_operand.hbm [shape: f32[2,8,512], index: 20, kind: input, shape index: {}]
  %s21 = inlined_call_operand.hbm [shape: f32[512,128], index: 21, kind: input, shape index: {}]
  %s22 = inlined_call_operand.vmem [shape: f32[2,1], index: 22, kind: input, shape index: {}]
  %s23 = inlined_call_operand.hbm [shape: f32[2,2,128], index: 23, kind: output, shape index: {}]
  %s24 = sld [smem:[#allocation0]]
  $region169: #{tpu_custom_call.1} parent=0
    _
  %s26 = ssub.s32 1, %s24
  %s27 = scalar_select 0, %s26, %s24
  $region1: #{tpu_custom_call.1} parent=0
    #allocation2 [shape = 'u8[2048]{0}', space=vmem, size = 0x800, scoped, tag = 'input window, operand 1, single buffered']
    #allocation3 [shape = 's32[2]{0}', space=sflag, size = 0x8, scoped, tag = 'scoped memory for tpu_custom_call.1']
    #allocation4 [shape = 's32[2]{0}', space=sflag, size = 0x8, scoped, tag = 'scoped memory for tpu_custom_call.1']
    #allocation5 [shape = 'u8[2048]{0}', space=vmem, size = 0x800, scoped, tag = 'input window, operand 3, single buffered']
    #allocation6 [shape = 's32[1]{0}', space=sflag, size = 0x4, scoped, tag = 'scoped memory for tpu_custom_call.1']
    #allocation7 [shape = 'u8[2048]{0}', space=vmem, size = 0x800, scoped, tag = 'input window, operand 5, single buffered']
    #allocation8 [shape = 'u8[98304]{0}', space=vmem, size = 0x18000, scoped, tag = 'input window, operand 7, single buffered']
    #allocation9 [shape = 's32[1]{0}', space=sflag, size = 0x4, scoped, tag = 'scoped memory for tpu_custom_call.1']
    #allocation10 [shape = 'u8[4096]{0}', space=vmem, size = 0x1000, scoped, tag = 'input window, operand 8, single buffered']
    #allocation11 [shape = 'u8[32768]{0}', space=vmem, size = 0x8000, scoped, tag = 'input window, operand 12, single buffered']
    #allocation12 [shape = 's32[1]{0}', space=sflag, size = 0x4, scoped, tag = 'scoped memory for tpu_custom_call.1']
    #allocation13 [shape = 'u8[16384]{0}', space=vmem, size = 0x4000, scoped, tag = 'input window, operand 13, single buffered']
    #allocation14 [shape = 'u8[6144]{0}', space=vmem, size = 0x1800, scoped, tag = 'input window, operand 15, single buffered']
    #allocation15 [shape = 's32[1]{0}', space=sflag, size = 0x4, scoped, tag = 'scoped memory for tpu_custom_call.1']
    #allocation16 [shape = 'u8[6144]{0}', space=vmem, size = 0x1800, scoped, tag = 'input window, operand 17, single buffered']
    #allocation17 [shape = 'u8[32768]{0}', space=vmem, size = 0x8000, scoped, tag = 'input window, operand 20, single buffered']
    #allocation18 [shape = 's32[1]{0}', space=sflag, size = 0x4, scoped, tag = 'scoped memory for tpu_custom_call.1']
    #allocation19 [shape = 'u8[262144]{0}', space=vmem, size = 0x40000, scoped, tag = 'input window, operand 21, single buffered']
    #allocation20 [shape = 'u8[2048]{0}', space=vmem, size = 0x800, scoped, tag = 'output window, operand 0']
    %28 = vsyncpa [#allocation3], 0
    %29 = vsyncpa [#allocation6], 0
    %30 = vsyncpa [#allocation9], 0
    %31 = vsyncpa [#allocation12], 0
    %32 = vsyncpa [#allocation15], 0
    %33 = vsyncpa [#allocation18], 0
    %34 = vsyncpa [#allocation4], 0
    %s35 = scalar_lea.sflag [#allocation4], 1
    %36 = vsyncpa %s35, 0
    loop: start=0, step=1, limit=4
    $region2: #{tpu_custom_call.1} parent=1 // loop_pre_header
      _
    $region3: #{tpu_custom_call.1} parent=1 // loop_header
      %s38 = sphi 0, %s42
      %p39 = scmp.ge.s32.totalorder %s38, 4
      %s48 = sphi 0, %s50
      %s51 = sphi 0, %s48
      %s52 = sphi 0, %s51
      %s68 = sphi 0, %s52
      %s72 = sphi 0, %s72
      %s74 = sphi 0, %s72
      %s75 = sphi 0, %s74
      %s89 = sphi 0, %s75
      %s93 = sphi 0, %s93
      %s95 = sphi 0, %s93
      %s96 = sphi 0, %s95
      %s110 = sphi 0, %s96
      %s114 = sphi 0, %s114
      %s116 = sphi 0, %s114
      %s117 = sphi 0, %s116
      %s131 = sphi 0, %s117
      %s135 = sphi 0, %s135
      %s137 = sphi 0, %s135
      %s138 = sphi 0, %s137
      %s152 = sphi 0, %s138
      %s156 = sphi 0, %s156
      %s158 = sphi 0, %s156
      %s159 = sphi 0, %s158
      %s173 = sphi 0, %s159
      %s177 = sphi 0, %s177
      %s179 = sphi 0, %s177
      %s180 = sphi 0, %s179
      %s194 = sphi 0, %s180
      %s198 = sphi 0, %s198
      %s200 = sphi 0, %s198
      %s201 = sphi 0, %s200
      %s215 = sphi 0, %s201
      %s219 = sphi 0, %s219
      %s221 = sphi 0, %s219
      %s222 = sphi 0, %s221
      %s236 = sphi 0, %s222
      %s240 = sphi 0, %s240
      %s242 = sphi 0, %s240
      %s243 = sphi 0, %s242
      %s257 = sphi 0, %s243
      %s261 = sphi 0, %s261
      %s263 = sphi 0, %s261
      %s264 = sphi 0, %s263
      %s278 = sphi 0, %s264
      %s282 = sphi 0, %s282
      %s284 = sphi 0, %s282
      %s285 = sphi 0, %s284
      %s299 = sphi 0, %s285
      %s303 = sphi 0, %s303
      %s305 = sphi 0, %s303
      %s306 = sphi 0, %s305
      %s320 = sphi 0, %s306
      %s324 = sphi 0, %s324
      %s326 = sphi 0, %s324
      %s327 = sphi 0, %s326
      %s341 = sphi 0, %s327
      %s345 = sphi 0, %s345
      %s347 = sphi 0, %s345
      %s348 = sphi 0, %s347
      %s362 = sphi 0, %s348
      %s366 = sphi 0, %s366
      %s368 = sphi 0, %s366
      %s369 = sphi 0, %s368
      %s383 = sphi 0, %s369
      %s387 = sphi 0, %s387
      %s389 = sphi 0, %s387
      %s390 = sphi 0, %s389
      %s404 = sphi 0, %s390
      %s408 = sphi 0, %s408
      %s410 = sphi 0, %s408
      %s411 = sphi 0, %s410
      %s425 = sphi 0, %s411
      %s429 = sphi 0, %s429
      %s431 = sphi 0, %s429
      %s432 = sphi 0, %s431
      %s446 = sphi 0, %s432
      %s450 = sphi 0, %s450
      %s452 = sphi 0, %s450
      %s453 = sphi 0, %s452
      %s467 = sphi 0, %s453
      %s471 = sphi 0, %s471
      %s473 = sphi 0, %s471
      %s474 = sphi 0, %s473
      %s488 = sphi 0, %s474
      %s492 = sphi 0, %s492
      %s494 = sphi 0, %s492
      %s495 = sphi 0, %s494
      %s509 = sphi 0, %s495
      %s513 = sphi 0, %s513
      %s515 = sphi 0, %s513
      %s516 = sphi 0, %s515
      %s530 = sphi 0, %s516
      %s536 = sphi 0, %s538
      %s539 = sphi 0, %s536
      %s540 = sphi 0, %s539
      %s556 = sphi 0, %s540
    $region4: #{tpu_custom_call.1} parent=1 // loop_header_branch
      %41 = sbr.rel (%p39) target = $region8
    $region5: #{tpu_custom_call.1} parent=1 // loop_body
      %s43 = ssub.s32 %s38, 1
      %s44 = ssub.s32 %s38, 2
      %s45 = sadd.s32 %s38, 1
      %s46 = ssub.s32 %s38, %s45
      %p47 = scmp.eq.s32.totalorder %s46, 0
      %s49 = sadd.s32 %s48, 1
      %s50 = scalar_select %p47, %s48, %s49
      %p53 = pneg %p47
      %p54 = scmp.eq.s32.totalorder %s38, 1
      %p55 = por %p53, %p54
      %p56 = scmp.ne.s32.totalorder %s48, %s51
      %p57 = scmp.eq.s32.totalorder %s38, 0
      %p58 = por %p56, %p57
      %p59 = scmp.ne.s32.totalorder %s48, %s51
      %p60 = scmp.eq.s32.totalorder %s43, 1
      %p61 = por %p59, %p60
      %p62 = scmp.ne.s32.totalorder %s51, %s52
      %p63 = scmp.eq.s32.totalorder %s43, 0
      %p64 = por %p62, %p63
      %p65 = scmp.ne.s32.totalorder %s51, %s52
      %p66 = scmp.eq.s32.totalorder %s44, 1
      %p67 = por %p65, %p66
      %p69 = scmp.ne.s32.totalorder %s52, %s68
      %p70 = scmp.eq.s32.totalorder %s44, 0
      %p71 = por %p69, %p70
      %s73 = sadd.s32 %s72, 1
      %p76 = scmp.eq.s32.totalorder %s38, 1
      %p77 = scmp.ne.s32.totalorder %s72, %s74
      %p78 = scmp.eq.s32.totalorder %s38, 0
      %p79 = por %p77, %p78
      %p80 = scmp.ne.s32.totalorder %s72, %s74
      %p81 = scmp.eq.s32.totalorder %s43, 1
      %p82 = por %p80, %p81
      %p83 = scmp.ne.s32.totalorder %s74, %s75
      %p84 = scmp.eq.s32.totalorder %s43, 0
      %p85 = por %p83, %p84
      %p86 = scmp.ne.s32.totalorder %s74, %s75
      %p87 = scmp.eq.s32.totalorder %s44, 1
      %p88 = por %p86, %p87
      %p90 = scmp.ne.s32.totalorder %s75, %s89
      %p91 = scmp.eq.s32.totalorder %s44, 0
      %p92 = por %p90, %p91
      %s94 = sadd.s32 %s93, 1
      %p97 = scmp.eq.s32.totalorder %s38, 1
      %p98 = scmp.ne.s32.totalorder %s93, %s95
      %p99 = scmp.eq.s32.totalorder %s38, 0
      %p100 = por %p98, %p99
      %p101 = scmp.ne.s32.totalorder %s93, %s95
      %p102 = scmp.eq.s32.totalorder %s43, 1
      %p103 = por %p101, %p102
      %p104 = scmp.ne.s32.totalorder %s95, %s96
      %p105 = scmp.eq.s32.totalorder %s43, 0
      %p106 = por %p104, %p105
      %p107 = scmp.ne.s32.totalorder %s95, %s96
      %p108 = scmp.eq.s32.totalorder %s44, 1
      %p109 = por %p107, %p108
      %p111 = scmp.ne.s32.totalorder %s96, %s110
      %p112 = scmp.eq.s32.totalorder %s44, 0
      %p113 = por %p111, %p112
      %s115 = sadd.s32 %s114, 1
      %p118 = scmp.eq.s32.totalorder %s38, 1
      %p119 = scmp.ne.s32.totalorder %s114, %s116
      %p120 = scmp.eq.s32.totalorder %s38, 0
      %p121 = por %p119, %p120
      %p122 = scmp.ne.s32.totalorder %s114, %s116
      %p123 = scmp.eq.s32.totalorder %s43, 1
      %p124 = por %p122, %p123
      %p125 = scmp.ne.s32.totalorder %s116, %s117
      %p126 = scmp.eq.s32.totalorder %s43, 0
      %p127 = por %p125, %p126
      %p128 = scmp.ne.s32.totalorder %s116, %s117
      %p129 = scmp.eq.s32.totalorder %s44, 1
      %p130 = por %p128, %p129
      %p132 = scmp.ne.s32.totalorder %s117, %s131
      %p133 = scmp.eq.s32.totalorder %s44, 0
      %p134 = por %p132, %p133
      %s136 = sadd.s32 %s135, 1
      %p139 = scmp.eq.s32.totalorder %s38, 1
      %p140 = scmp.ne.s32.totalorder %s135, %s137
      %p141 = scmp.eq.s32.totalorder %s38, 0
      %p142 = por %p140, %p141
      %p143 = scmp.ne.s32.totalorder %s135, %s137
      %p144 = scmp.eq.s32.totalorder %s43, 1
      %p145 = por %p143, %p144
      %p146 = scmp.ne.s32.totalorder %s137, %s138
      %p147 = scmp.eq.s32.totalorder %s43, 0
      %p148 = por %p146, %p147
      %p149 = scmp.ne.s32.totalorder %s137, %s138
      %p150 = scmp.eq.s32.totalorder %s44, 1
      %p151 = por %p149, %p150
      %p153 = scmp.ne.s32.totalorder %s138, %s152
      %p154 = scmp.eq.s32.totalorder %s44, 0
      %p155 = por %p153, %p154
      %s157 = sadd.s32 %s156, 1
      %p160 = scmp.eq.s32.totalorder %s38, 1
      %p161 = scmp.ne.s32.totalorder %s156, %s158
      %p162 = scmp.eq.s32.totalorder %s38, 0
      %p163 = por %p161, %p162
      %p164 = scmp.ne.s32.totalorder %s156, %s158
      %p165 = scmp.eq.s32.totalorder %s43, 1
      %p166 = por %p164, %p165
      %p167 = scmp.ne.s32.totalorder %s158, %s159
      %p168 = scmp.eq.s32.totalorder %s43, 0
      %p169 = por %p167, %p168
      %p170 = scmp.ne.s32.totalorder %s158, %s159
      %p171 = scmp.eq.s32.totalorder %s44, 1
      %p172 = por %p170, %p171
      %p174 = scmp.ne.s32.totalorder %s159, %s173
      %p175 = scmp.eq.s32.totalorder %s44, 0
      %p176 = por %p174, %p175
      %s178 = sadd.s32 %s177, 1
      %p181 = scmp.eq.s32.totalorder %s38, 1
      %p182 = scmp.ne.s32.totalorder %s177, %s179
      %p183 = scmp.eq.s32.totalorder %s38, 0
      %p184 = por %p182, %p183
      %p185 = scmp.ne.s32.totalorder %s177, %s179
      %p186 = scmp.eq.s32.totalorder %s43, 1
      %p187 = por %p185, %p186
      %p188 = scmp.ne.s32.totalorder %s179, %s180
      %p189 = scmp.eq.s32.totalorder %s43, 0
      %p190 = por %p188, %p189
      %p191 = scmp.ne.s32.totalorder %s179, %s180
      %p192 = scmp.eq.s32.totalorder %s44, 1
      %p193 = por %p191, %p192
      %p195 = scmp.ne.s32.totalorder %s180, %s194
      %p196 = scmp.eq.s32.totalorder %s44, 0
      %p197 = por %p195, %p196
      %s199 = sadd.s32 %s198, 1
      %p202 = scmp.eq.s32.totalorder %s38, 1
      %p203 = scmp.ne.s32.totalorder %s198, %s200
      %p204 = scmp.eq.s32.totalorder %s38, 0
      %p205 = por %p203, %p204
      %p206 = scmp.ne.s32.totalorder %s198, %s200
      %p207 = scmp.eq.s32.totalorder %s43, 1
      %p208 = por %p206, %p207
      %p209 = scmp.ne.s32.totalorder %s200, %s201
      %p210 = scmp.eq.s32.totalorder %s43, 0
      %p211 = por %p209, %p210
      %p212 = scmp.ne.s32.totalorder %s200, %s201
      %p213 = scmp.eq.s32.totalorder %s44, 1
      %p214 = por %p212, %p213
      %p216 = scmp.ne.s32.totalorder %s201, %s215
      %p217 = scmp.eq.s32.totalorder %s44, 0
      %p218 = por %p216, %p217
      %s220 = sadd.s32 %s219, 1
      %p223 = scmp.eq.s32.totalorder %s38, 1
      %p224 = scmp.ne.s32.totalorder %s219, %s221
      %p225 = scmp.eq.s32.totalorder %s38, 0
      %p226 = por %p224, %p225
      %p227 = scmp.ne.s32.totalorder %s219, %s221
      %p228 = scmp.eq.s32.totalorder %s43, 1
      %p229 = por %p227, %p228
      %p230 = scmp.ne.s32.totalorder %s221, %s222
      %p231 = scmp.eq.s32.totalorder %s43, 0
      %p232 = por %p230, %p231
      %p233 = scmp.ne.s32.totalorder %s221, %s222
      %p234 = scmp.eq.s32.totalorder %s44, 1
      %p235 = por %p233, %p234
      %p237 = scmp.ne.s32.totalorder %s222, %s236
      %p238 = scmp.eq.s32.totalorder %s44, 0
      %p239 = por %p237, %p238
      %s241 = sadd.s32 %s240, 1
      %p244 = scmp.eq.s32.totalorder %s38, 1
      %p245 = scmp.ne.s32.totalorder %s240, %s242
      %p246 = scmp.eq.s32.totalorder %s38, 0
      %p247 = por %p245, %p246
      %p248 = scmp.ne.s32.totalorder %s240, %s242
      %p249 = scmp.eq.s32.totalorder %s43, 1
      %p250 = por %p248, %p249
      %p251 = scmp.ne.s32.totalorder %s242, %s243
      %p252 = scmp.eq.s32.totalorder %s43, 0
      %p253 = por %p251, %p252
      %p254 = scmp.ne.s32.totalorder %s242, %s243
      %p255 = scmp.eq.s32.totalorder %s44, 1
      %p256 = por %p254, %p255
      %p258 = scmp.ne.s32.totalorder %s243, %s257
      %p259 = scmp.eq.s32.totalorder %s44, 0
      %p260 = por %p258, %p259
      %s262 = sadd.s32 %s261, 1
      %p265 = scmp.eq.s32.totalorder %s38, 1
      %p266 = scmp.ne.s32.totalorder %s261, %s263
      %p267 = scmp.eq.s32.totalorder %s38, 0
      %p268 = por %p266, %p267
      %p269 = scmp.ne.s32.totalorder %s261, %s263
      %p270 = scmp.eq.s32.totalorder %s43, 1
      %p271 = por %p269, %p270
      %p272 = scmp.ne.s32.totalorder %s263, %s264
      %p273 = scmp.eq.s32.totalorder %s43, 0
      %p274 = por %p272, %p273
      %p275 = scmp.ne.s32.totalorder %s263, %s264
      %p276 = scmp.eq.s32.totalorder %s44, 1
      %p277 = por %p275, %p276
      %p279 = scmp.ne.s32.totalorder %s264, %s278
      %p280 = scmp.eq.s32.totalorder %s44, 0
      %p281 = por %p279, %p280
      %s283 = sadd.s32 %s282, 1
      %p286 = scmp.eq.s32.totalorder %s38, 1
      %p287 = scmp.ne.s32.totalorder %s282, %s284
      %p288 = scmp.eq.s32.totalorder %s38, 0
      %p289 = por %p287, %p288
      %p290 = scmp.ne.s32.totalorder %s282, %s284
      %p291 = scmp.eq.s32.totalorder %s43, 1
      %p292 = por %p290, %p291
      %p293 = scmp.ne.s32.totalorder %s284, %s285
      %p294 = scmp.eq.s32.totalorder %s43, 0
      %p295 = por %p293, %p294
      %p296 = scmp.ne.s32.totalorder %s284, %s285
      %p297 = scmp.eq.s32.totalorder %s44, 1
      %p298 = por %p296, %p297
      %p300 = scmp.ne.s32.totalorder %s285, %s299
      %p301 = scmp.eq.s32.totalorder %s44, 0
      %p302 = por %p300, %p301
      %s304 = sadd.s32 %s303, 1
      %p307 = scmp.eq.s32.totalorder %s38, 1
      %p308 = scmp.ne.s32.totalorder %s303, %s305
      %p309 = scmp.eq.s32.totalorder %s38, 0
      %p310 = por %p308, %p309
      %p311 = scmp.ne.s32.totalorder %s303, %s305
      %p312 = scmp.eq.s32.totalorder %s43, 1
      %p313 = por %p311, %p312
      %p314 = scmp.ne.s32.totalorder %s305, %s306
      %p315 = scmp.eq.s32.totalorder %s43, 0
      %p316 = por %p314, %p315
      %p317 = scmp.ne.s32.totalorder %s305, %s306
      %p318 = scmp.eq.s32.totalorder %s44, 1
      %p319 = por %p317, %p318
      %p321 = scmp.ne.s32.totalorder %s306, %s320
      %p322 = scmp.eq.s32.totalorder %s44, 0
      %p323 = por %p321, %p322
      %s325 = sadd.s32 %s324, 1
      %p328 = scmp.eq.s32.totalorder %s38, 1
      %p329 = scmp.ne.s32.totalorder %s324, %s326
      %p330 = scmp.eq.s32.totalorder %s38, 0
      %p331 = por %p329, %p330
      %p332 = scmp.ne.s32.totalorder %s324, %s326
      %p333 = scmp.eq.s32.totalorder %s43, 1
      %p334 = por %p332, %p333
      %p335 = scmp.ne.s32.totalorder %s326, %s327
      %p336 = scmp.eq.s32.totalorder %s43, 0
      %p337 = por %p335, %p336
      %p338 = scmp.ne.s32.totalorder %s326, %s327
      %p339 = scmp.eq.s32.totalorder %s44, 1
      %p340 = por %p338, %p339
      %p342 = scmp.ne.s32.totalorder %s327, %s341
      %p343 = scmp.eq.s32.totalorder %s44, 0
      %p344 = por %p342, %p343
      %s346 = sadd.s32 %s345, 1
      %p349 = scmp.eq.s32.totalorder %s38, 1
      %p350 = scmp.ne.s32.totalorder %s345, %s347
      %p351 = scmp.eq.s32.totalorder %s38, 0
      %p352 = por %p350, %p351
      %p353 = scmp.ne.s32.totalorder %s345, %s347
      %p354 = scmp.eq.s32.totalorder %s43, 1
      %p355 = por %p353, %p354
      %p356 = scmp.ne.s32.totalorder %s347, %s348
      %p357 = scmp.eq.s32.totalorder %s43, 0
      %p358 = por %p356, %p357
      %p359 = scmp.ne.s32.totalorder %s347, %s348
      %p360 = scmp.eq.s32.totalorder %s44, 1
      %p361 = por %p359, %p360
      %p363 = scmp.ne.s32.totalorder %s348, %s362
      %p364 = scmp.eq.s32.totalorder %s44, 0
      %p365 = por %p363, %p364
      %s367 = sadd.s32 %s366, 1
      %p370 = scmp.eq.s32.totalorder %s38, 1
      %p371 = scmp.ne.s32.totalorder %s366, %s368
      %p372 = scmp.eq.s32.totalorder %s38, 0
      %p373 = por %p371, %p372
      %p374 = scmp.ne.s32.totalorder %s366, %s368
      %p375 = scmp.eq.s32.totalorder %s43, 1
      %p376 = por %p374, %p375
      %p377 = scmp.ne.s32.totalorder %s368, %s369
      %p378 = scmp.eq.s32.totalorder %s43, 0
      %p379 = por %p377, %p378
      %p380 = scmp.ne.s32.totalorder %s368, %s369
      %p381 = scmp.eq.s32.totalorder %s44, 1
      %p382 = por %p380, %p381
      %p384 = scmp.ne.s32.totalorder %s369, %s383
      %p385 = scmp.eq.s32.totalorder %s44, 0
      %p386 = por %p384, %p385
      %s388 = sadd.s32 %s387, 1
      %p391 = scmp.eq.s32.totalorder %s38, 1
      %p392 = scmp.ne.s32.totalorder %s387, %s389
      %p393 = scmp.eq.s32.totalorder %s38, 0
      %p394 = por %p392, %p393
      %p395 = scmp.ne.s32.totalorder %s387, %s389
      %p396 = scmp.eq.s32.totalorder %s43, 1
      %p397 = por %p395, %p396
      %p398 = scmp.ne.s32.totalorder %s389, %s390
      %p399 = scmp.eq.s32.totalorder %s43, 0
      %p400 = por %p398, %p399
      %p401 = scmp.ne.s32.totalorder %s389, %s390
      %p402 = scmp.eq.s32.totalorder %s44, 1
      %p403 = por %p401, %p402
      %p405 = scmp.ne.s32.totalorder %s390, %s404
      %p406 = scmp.eq.s32.totalorder %s44, 0
      %p407 = por %p405, %p406
      %s409 = sadd.s32 %s408, 1
      %p412 = scmp.eq.s32.totalorder %s38, 1
      %p413 = scmp.ne.s32.totalorder %s408, %s410
      %p414 = scmp.eq.s32.totalorder %s38, 0
      %p415 = por %p413, %p414
      %p416 = scmp.ne.s32.totalorder %s408, %s410
      %p417 = scmp.eq.s32.totalorder %s43, 1
      %p418 = por %p416, %p417
      %p419 = scmp.ne.s32.totalorder %s410, %s411
      %p420 = scmp.eq.s32.totalorder %s43, 0
      %p421 = por %p419, %p420
      %p422 = scmp.ne.s32.totalorder %s410, %s411
      %p423 = scmp.eq.s32.totalorder %s44, 1
      %p424 = por %p422, %p423
      %p426 = scmp.ne.s32.totalorder %s411, %s425
      %p427 = scmp.eq.s32.totalorder %s44, 0
      %p428 = por %p426, %p427
      %s430 = sadd.s32 %s429, 1
      %p433 = scmp.eq.s32.totalorder %s38, 1
      %p434 = scmp.ne.s32.totalorder %s429, %s431
      %p435 = scmp.eq.s32.totalorder %s38, 0
      %p436 = por %p434, %p435
      %p437 = scmp.ne.s32.totalorder %s429, %s431
      %p438 = scmp.eq.s32.totalorder %s43, 1
      %p439 = por %p437, %p438
      %p440 = scmp.ne.s32.totalorder %s431, %s432
      %p441 = scmp.eq.s32.totalorder %s43, 0
      %p442 = por %p440, %p441
      %p443 = scmp.ne.s32.totalorder %s431, %s432
      %p444 = scmp.eq.s32.totalorder %s44, 1
      %p445 = por %p443, %p444
      %p447 = scmp.ne.s32.totalorder %s432, %s446
      %p448 = scmp.eq.s32.totalorder %s44, 0
      %p449 = por %p447, %p448
      %s451 = sadd.s32 %s450, 1
      %p454 = scmp.eq.s32.totalorder %s38, 1
      %p455 = scmp.ne.s32.totalorder %s450, %s452
      %p456 = scmp.eq.s32.totalorder %s38, 0
      %p457 = por %p455, %p456
      %p458 = scmp.ne.s32.totalorder %s450, %s452
      %p459 = scmp.eq.s32.totalorder %s43, 1
      %p460 = por %p458, %p459
      %p461 = scmp.ne.s32.totalorder %s452, %s453
      %p462 = scmp.eq.s32.totalorder %s43, 0
      %p463 = por %p461, %p462
      %p464 = scmp.ne.s32.totalorder %s452, %s453
      %p465 = scmp.eq.s32.totalorder %s44, 1
      %p466 = por %p464, %p465
      %p468 = scmp.ne.s32.totalorder %s453, %s467
      %p469 = scmp.eq.s32.totalorder %s44, 0
      %p470 = por %p468, %p469
      %s472 = sadd.s32 %s471, 1
      %p475 = scmp.eq.s32.totalorder %s38, 1
      %p476 = scmp.ne.s32.totalorder %s471, %s473
      %p477 = scmp.eq.s32.totalorder %s38, 0
      %p478 = por %p476, %p477
      %p479 = scmp.ne.s32.totalorder %s471, %s473
      %p480 = scmp.eq.s32.totalorder %s43, 1
      %p481 = por %p479, %p480
      %p482 = scmp.ne.s32.totalorder %s473, %s474
      %p483 = scmp.eq.s32.totalorder %s43, 0
      %p484 = por %p482, %p483
      %p485 = scmp.ne.s32.totalorder %s473, %s474
      %p486 = scmp.eq.s32.totalorder %s44, 1
      %p487 = por %p485, %p486
      %p489 = scmp.ne.s32.totalorder %s474, %s488
      %p490 = scmp.eq.s32.totalorder %s44, 0
      %p491 = por %p489, %p490
      %s493 = sadd.s32 %s492, 1
      %p496 = scmp.eq.s32.totalorder %s38, 1
      %p497 = scmp.ne.s32.totalorder %s492, %s494
      %p498 = scmp.eq.s32.totalorder %s38, 0
      %p499 = por %p497, %p498
      %p500 = scmp.ne.s32.totalorder %s492, %s494
      %p501 = scmp.eq.s32.totalorder %s43, 1
      %p502 = por %p500, %p501
      %p503 = scmp.ne.s32.totalorder %s494, %s495
      %p504 = scmp.eq.s32.totalorder %s43, 0
      %p505 = por %p503, %p504
      %p506 = scmp.ne.s32.totalorder %s494, %s495
      %p507 = scmp.eq.s32.totalorder %s44, 1
      %p508 = por %p506, %p507
      %p510 = scmp.ne.s32.totalorder %s495, %s509
      %p511 = scmp.eq.s32.totalorder %s44, 0
      %p512 = por %p510, %p511
      %s514 = sadd.s32 %s513, 1
      %p517 = scmp.eq.s32.totalorder %s38, 1
      %p518 = scmp.ne.s32.totalorder %s513, %s515
      %p519 = scmp.eq.s32.totalorder %s38, 0
      %p520 = por %p518, %p519
      %p521 = scmp.ne.s32.totalorder %s513, %s515
      %p522 = scmp.eq.s32.totalorder %s43, 1
      %p523 = por %p521, %p522
      %p524 = scmp.ne.s32.totalorder %s515, %s516
      %p525 = scmp.eq.s32.totalorder %s43, 0
      %p526 = por %p524, %p525
      %p527 = scmp.ne.s32.totalorder %s515, %s516
      %p528 = scmp.eq.s32.totalorder %s44, 1
      %p529 = por %p527, %p528
      %p531 = scmp.ne.s32.totalorder %s516, %s530
      %p532 = scmp.eq.s32.totalorder %s44, 0
      %p533 = por %p531, %p532
      %s534 = ssub.s32 %s38, %s45
      %p535 = scmp.eq.s32.totalorder %s534, 0
      %s537 = sadd.s32 %s536, 1
      %s538 = scalar_select %p535, %s536, %s537
      %p541 = pneg %p535
      %p542 = scmp.eq.s32.totalorder %s38, 1
      %p543 = por %p541, %p542
      %p544 = scmp.ne.s32.totalorder %s536, %s539
      %p545 = scmp.eq.s32.totalorder %s38, 0
      %p546 = por %p544, %p545
      %p547 = scmp.ne.s32.totalorder %s536, %s539
      %p548 = scmp.eq.s32.totalorder %s43, 1
      %p549 = por %p547, %p548
      %p550 = scmp.ne.s32.totalorder %s539, %s540
      %p551 = scmp.eq.s32.totalorder %s43, 0
      %p552 = por %p550, %p551
      %p553 = scmp.ne.s32.totalorder %s539, %s540
      %p554 = scmp.eq.s32.totalorder %s44, 1
      %p555 = por %p553, %p554
      %p557 = scmp.ne.s32.totalorder %s540, %s556
      %p558 = scmp.eq.s32.totalorder %s44, 0
      %p559 = por %p557, %p558
      %p560 = scmp.le.s32.totalorder 1, %s38
      %p561 = scmp.lt.s32.totalorder %s38, 3
      %p562 = pnand %p560, %p561
      %p563 = pneg %p562
      // Predicated region
      $region9: #{tpu_custom_call.1} parent=5 // pred_check
        _
      $region10: #{tpu_custom_call.1} parent=5 // pred_check_branch
        %565 = sbr.rel (%p562) target = $region12
      $region11: #{tpu_custom_call.1} parent=5 // pred_region
        %s566 = ssub.s32 %s38, 1
        // Predicated region
        $region13: #{tpu_custom_call.1} parent=11 // pred_check
          %p567 = pneg %p85
        $region14: #{tpu_custom_call.1} parent=11 // pred_check_branch
          %569 = sbr.rel (%p567) target = $region16
        $region15: #{tpu_custom_call.1} parent=11 // pred_region
          %571 = vsyncadd [#allocation3], 0
          %s573 = sshll.u32 %s1, 4
          %s574 = int_to_ptr.hbm [resolvable:$true] %s573
          %s575 = sshll.u32 [#allocation2], 4
          %s576 = int_to_ptr.vmem [resolvable:$true] %s575
          %578 = dma.hbm_to_vmem [thread:$0]  %s574, 64, %s576, [#allocation3]
        $region16: #{tpu_custom_call.1} parent=11 // pred_fallthru
          _
        // Predicated region
        $region17: #{tpu_custom_call.1} parent=11 // pred_check
          %p579 = pneg %p106
        $region18: #{tpu_custom_call.1} parent=11 // pred_check_branch
          %581 = sbr.rel (%p579) target = $region20
        $region19: #{tpu_custom_call.1} parent=11 // pred_region
          _
        $region20: #{tpu_custom_call.1} parent=11 // pred_fallthru
          _
        // Predicated region
        $region21: #{tpu_custom_call.1} parent=11 // pred_check
          %p582 = pneg %p127
        $region22: #{tpu_custom_call.1} parent=11 // pred_check_branch
          %584 = sbr.rel (%p582) target = $region24
        $region23: #{tpu_custom_call.1} parent=11 // pred_region
          %586 = vsyncadd [#allocation6], 0
          %s588 = sshll.u32 %s3, 4
          %s589 = int_to_ptr.hbm [resolvable:$true] %s588
          %s590 = sshll.u32 [#allocation5], 4
          %s591 = int_to_ptr.vmem [resolvable:$true] %s590
          %593 = dma.hbm_to_vmem [thread:$0]  %s589, 64, %s591, [#allocation6]
        $region24: #{tpu_custom_call.1} parent=11 // pred_fallthru
          _
        // Predicated region
        $region25: #{tpu_custom_call.1} parent=11 // pred_check
          %p594 = pneg %p148
        $region26: #{tpu_custom_call.1} parent=11 // pred_check_branch
          %596 = sbr.rel (%p594) target = $region28
        $region27: #{tpu_custom_call.1} parent=11 // pred_region
          _
        $region28: #{tpu_custom_call.1} parent=11 // pred_fallthru
          _
        // Predicated region
        $region29: #{tpu_custom_call.1} parent=11 // pred_check
          %p597 = pneg %p169
        $region30: #{tpu_custom_call.1} parent=11 // pred_check_branch
          %599 = sbr.rel (%p597) target = $region32
        $region31: #{tpu_custom_call.1} parent=11 // pred_region
          %601 = vsyncadd [#allocation6], 0
          %s603 = sshll.u32 %s5, 4
          %s604 = int_to_ptr.hbm [resolvable:$true] %s603
          %s605 = sshll.u32 [#allocation7], 4
          %s606 = int_to_ptr.vmem [resolvable:$true] %s605
          %608 = dma.hbm_to_vmem [thread:$0]  %s604, 64, %s606, [#allocation6]
        $region32: #{tpu_custom_call.1} parent=11 // pred_fallthru
          _
        // Predicated region
        $region33: #{tpu_custom_call.1} parent=11 // pred_check
          %p609 = pneg %p190
        $region34: #{tpu_custom_call.1} parent=11 // pred_check_branch
          %611 = sbr.rel (%p609) target = $region36
        $region35: #{tpu_custom_call.1} parent=11 // pred_region
          _
        $region36: #{tpu_custom_call.1} parent=11 // pred_fallthru
          _
        // Predicated region
        $region37: #{tpu_custom_call.1} parent=11 // pred_check
          %p612 = pneg %p211
        $region38: #{tpu_custom_call.1} parent=11 // pred_check_branch
          %614 = sbr.rel (%p612) target = $region40
        $region39: #{tpu_custom_call.1} parent=11 // pred_region
          %616 = vsyncadd [#allocation9], 0
          %s617 = sshll.u32 %s7, 4
          %s618 = int_to_ptr.hbm [resolvable:$true] %s617
          %s619 = sshll.u32 [#allocation8], 4
          %s620 = int_to_ptr.vmem [resolvable:$true] %s619
          %625 = dma.hbm_to_vmem [thread:$0]  %s618, 3072, %s620, [#allocation9], 64, 64, 4
        $region40: #{tpu_custom_call.1} parent=11 // pred_fallthru
          _
        // Predicated region
        $region41: #{tpu_custom_call.1} parent=11 // pred_check
          %p626 = pneg %p232
        $region42: #{tpu_custom_call.1} parent=11 // pred_check_branch
          %628 = sbr.rel (%p626) target = $region44
        $region43: #{tpu_custom_call.1} parent=11 // pred_region
          %630 = vsyncadd [#allocation9], 0
          %s631 = sshll.u32 %s8, 4
          %s632 = int_to_ptr.hbm [resolvable:$true] %s631
          %s633 = sshll.u32 [#allocation10], 4
          %s634 = int_to_ptr.vmem [resolvable:$true] %s633
          %639 = dma.hbm_to_vmem [thread:$0]  %s632, 128, %s634, [#allocation9], 64, 64, 4
        $region44: #{tpu_custom_call.1} parent=11 // pred_fallthru
          _
        // Predicated region
        $region45: #{tpu_custom_call.1} parent=11 // pred_check
          %p640 = pneg %p253
        $region46: #{tpu_custom_call.1} parent=11 // pred_check_branch
          %642 = sbr.rel (%p640) target = $region48
        $region47: #{tpu_custom_call.1} parent=11 // pred_region
          _
        $region48: #{tpu_custom_call.1} parent=11 // pred_fallthru
          _
        // Predicated region
        $region49: #{tpu_custom_call.1} parent=11 // pred_check
          %p643 = pneg %p274
        $region50: #{tpu_custom_call.1} parent=11 // pred_check_branch
          %645 = sbr.rel (%p643) target = $region52
        $region51: #{tpu_custom_call.1} parent=11 // pred_region
          _
        $region52: #{tpu_custom_call.1} parent=11 // pred_fallthru
          _
        // Predicated region
        $region53: #{tpu_custom_call.1} parent=11 // pred_check
          %p646 = pneg %p295
        $region54: #{tpu_custom_call.1} parent=11 // pred_check_branch
          %648 = sbr.rel (%p646) target = $region56
        $region55: #{tpu_custom_call.1} parent=11 // pred_region
          _
        $region56: #{tpu_custom_call.1} parent=11 // pred_fallthru
          _
        // Predicated region
        $region57: #{tpu_custom_call.1} parent=11 // pred_check
          %p649 = pneg %p316
        $region58: #{tpu_custom_call.1} parent=11 // pred_check_branch
          %651 = sbr.rel (%p649) target = $region60
        $region59: #{tpu_custom_call.1} parent=11 // pred_region
          %653 = vsyncadd [#allocation12], 0
          %s654 = sshll.u32 %s12, 4
          %s655 = int_to_ptr.hbm [resolvable:$true] %s654
          %s656 = sshll.u32 [#allocation11], 4
          %s657 = int_to_ptr.vmem [resolvable:$true] %s656
          %662 = dma.hbm_to_vmem [thread:$0]  %s655, 1024, %s657, [#allocation12], 64, 64, 4
        $region60: #{tpu_custom_call.1} parent=11 // pred_fallthru
          _
        // Predicated region
        $region61: #{tpu_custom_call.1} parent=11 // pred_check
          %p663 = pneg %p337
        $region62: #{tpu_custom_call.1} parent=11 // pred_check_branch
          %665 = sbr.rel (%p663) target = $region64
        $region63: #{tpu_custom_call.1} parent=11 // pred_region
          %667 = vsyncadd [#allocation12], 0
          %s668 = sshll.u32 %s13, 4
          %s669 = int_to_ptr.hbm [resolvable:$true] %s668
          %s670 = sshll.u32 [#allocation13], 4
          %s671 = int_to_ptr.vmem [resolvable:$true] %s670
          %676 = dma.hbm_to_vmem [thread:$0]  %s669, 512, %s671, [#allocation12], 128, 128, 8
        $region64: #{tpu_custom_call.1} parent=11 // pred_fallthru
          _
        // Predicated region
        $region65: #{tpu_custom_call.1} parent=11 // pred_check
          %p677 = pneg %p358
        $region66: #{tpu_custom_call.1} parent=11 // pred_check_branch
          %679 = sbr.rel (%p677) target = $region68
        $region67: #{tpu_custom_call.1} parent=11 // pred_region
          _
        $region68: #{tpu_custom_call.1} parent=11 // pred_fallthru
          _
        // Predicated region
        $region69: #{tpu_custom_call.1} parent=11 // pred_check
          %p680 = pneg %p379
        $region70: #{tpu_custom_call.1} parent=11 // pred_check_branch
          %682 = sbr.rel (%p680) target = $region72
        $region71: #{tpu_custom_call.1} parent=11 // pred_region
          %684 = vsyncadd [#allocation15], 0
          %s686 = sshll.u32 %s15, 4
          %s687 = int_to_ptr.hbm [resolvable:$true] %s686
          %s688 = sshll.u32 [#allocation14], 4
          %s689 = int_to_ptr.vmem [resolvable:$true] %s688
          %691 = dma.hbm_to_vmem [thread:$0]  %s687, 192, %s689, [#allocation15]
        $region72: #{tpu_custom_call.1} parent=11 // pred_fallthru
          _
        // Predicated region
        $region73: #{tpu_custom_call.1} parent=11 // pred_check
          %p692 = pneg %p400
        $region74: #{tpu_custom_call.1} parent=11 // pred_check_branch
          %694 = sbr.rel (%p692) target = $region76
        $region75: #{tpu_custom_call.1} parent=11 // pred_region
          _
        $region76: #{tpu_custom_call.1} parent=11 // pred_fallthru
          _
        // Predicated region
        $region77: #{tpu_custom_call.1} parent=11 // pred_check
          %p695 = pneg %p421
        $region78: #{tpu_custom_call.1} parent=11 // pred_check_branch
          %697 = sbr.rel (%p695) target = $region80
        $region79: #{tpu_custom_call.1} parent=11 // pred_region
          %699 = vsyncadd [#allocation15], 0
          %s701 = sshll.u32 %s17, 4
          %s702 = int_to_ptr.hbm [resolvable:$true] %s701
          %s703 = sshll.u32 [#allocation16], 4
          %s704 = int_to_ptr.vmem [resolvable:$true] %s703
          %706 = dma.hbm_to_vmem [thread:$0]  %s702, 192, %s704, [#allocation15]
        $region80: #{tpu_custom_call.1} parent=11 // pred_fallthru
          _
        // Predicated region
        $region81: #{tpu_custom_call.1} parent=11 // pred_check
          %p707 = pneg %p442
        $region82: #{tpu_custom_call.1} parent=11 // pred_check_branch
          %709 = sbr.rel (%p707) target = $region84
        $region83: #{tpu_custom_call.1} parent=11 // pred_region
          _
        $region84: #{tpu_custom_call.1} parent=11 // pred_fallthru
          _
        // Predicated region
        $region85: #{tpu_custom_call.1} parent=11 // pred_check
          %p710 = pneg %p463
        $region86: #{tpu_custom_call.1} parent=11 // pred_check_branch
          %712 = sbr.rel (%p710) target = $region88
        $region87: #{tpu_custom_call.1} parent=11 // pred_region
          _
        $region88: #{tpu_custom_call.1} parent=11 // pred_fallthru
          _
        // Predicated region
        $region89: #{tpu_custom_call.1} parent=11 // pred_check
          %p713 = pneg %p484
        $region90: #{tpu_custom_call.1} parent=11 // pred_check_branch
          %715 = sbr.rel (%p713) target = $region92
        $region91: #{tpu_custom_call.1} parent=11 // pred_region
          %717 = vsyncadd [#allocation18], 0
          %s718 = sshll.u32 %s20, 4
          %s719 = int_to_ptr.hbm [resolvable:$true] %s718
          %s720 = sshll.u32 [#allocation17], 4
          %s721 = int_to_ptr.vmem [resolvable:$true] %s720
          %726 = dma.hbm_to_vmem [thread:$0]  %s719, 1024, %s721, [#allocation18], 512, 512, 32
        $region92: #{tpu_custom_call.1} parent=11 // pred_fallthru
          _
        // Predicated region
        $region93: #{tpu_custom_call.1} parent=11 // pred_check
          %p727 = pneg %p505
        $region94: #{tpu_custom_call.1} parent=11 // pred_check_branch
          %729 = sbr.rel (%p727) target = $region96
        $region95: #{tpu_custom_call.1} parent=11 // pred_region
          %731 = vsyncadd [#allocation18], 0
          %s732 = sshll.u32 %s21, 4
          %s733 = int_to_ptr.hbm [resolvable:$true] %s732
          %s734 = sshll.u32 [#allocation19], 4
          %s735 = int_to_ptr.vmem [resolvable:$true] %s734
          %740 = dma.hbm_to_vmem [thread:$0]  %s733, 8192, %s735, [#allocation18], 128, 128, 8
        $region96: #{tpu_custom_call.1} parent=11 // pred_fallthru
          _
        // Predicated region
        $region97: #{tpu_custom_call.1} parent=11 // pred_check
          %p741 = pneg %p526
        $region98: #{tpu_custom_call.1} parent=11 // pred_check_branch
          %743 = sbr.rel (%p741) target = $region100
        $region99: #{tpu_custom_call.1} parent=11 // pred_region
          _
        $region100: #{tpu_custom_call.1} parent=11 // pred_fallthru
          _
      $region12: #{tpu_custom_call.1} parent=5 // pred_fallthru
        _
      %p744 = scmp.lt.s32.totalorder %s38, 2
      // Predicated region
      $region101: #{tpu_custom_call.1} parent=5 // pred_check
        %p745 = pneg %p744
      $region102: #{tpu_custom_call.1} parent=5 // pred_check_branch
        %747 = sbr.rel (%p745) target = $region104
      $region103: #{tpu_custom_call.1} parent=5 // pred_region
        // Predicated region
        $region105: #{tpu_custom_call.1} parent=103 // pred_check
          %p748 = pneg %p58
        $region106: #{tpu_custom_call.1} parent=103 // pred_check_branch
          %750 = sbr.rel (%p748) target = $region108
        $region107: #{tpu_custom_call.1} parent=103 // pred_region
          %s751 = smul.u32 12, %s38
          %p752 = scmp.lt.s32.totalorder %s751, 23
          %s753 = scalar_select %p752, %s751, 23
          %s754 = smul.addr %s753, 4
          %s755 = scalar_lea.vmem %s0, %s754
          %s756 = smul.u32 12, %s38
        $region108: #{tpu_custom_call.1} parent=103 // pred_fallthru
          _
      $region104: #{tpu_custom_call.1} parent=5 // pred_fallthru
        _
      %p757 = scmp.le.s32.totalorder 1, %s38
      %p758 = scmp.lt.s32.totalorder %s38, 3
      %p759 = pnand %p757, %p758
      %p760 = pneg %p759
      // Predicated region
      $region109: #{tpu_custom_call.1} parent=5 // pred_check
        _
      $region110: #{tpu_custom_call.1} parent=5 // pred_check_branch
        %762 = sbr.rel (%p759) target = $region112
      $region111: #{tpu_custom_call.1} parent=5 // pred_region
        %s763 = ssub.s32 %s38, 1
        // Predicated region
        $region113: #{tpu_custom_call.1} parent=111 // pred_check
          %p764 = pneg %p85
        $region114: #{tpu_custom_call.1} parent=111 // pred_check_branch
          %766 = sbr.rel (%p764) target = $region116
        $region115: #{tpu_custom_call.1} parent=111 // pred_region
          %768 = dma.done [#allocation3], 64
        $region116: #{tpu_custom_call.1} parent=111 // pred_fallthru
          _
        // Predicated region
        $region117: #{tpu_custom_call.1} parent=111 // pred_check
          %p769 = pneg %p127
        $region118: #{tpu_custom_call.1} parent=111 // pred_check_branch
          %771 = sbr.rel (%p769) target = $region120
        $region119: #{tpu_custom_call.1} parent=111 // pred_region
          %773 = dma.done [#allocation6], 64
        $region120: #{tpu_custom_call.1} parent=111 // pred_fallthru
          _
        // Predicated region
        $region121: #{tpu_custom_call.1} parent=111 // pred_check
          %p774 = pneg %p169
        $region122: #{tpu_custom_call.1} parent=111 // pred_check_branch
          %776 = sbr.rel (%p774) target = $region124
        $region123: #{tpu_custom_call.1} parent=111 // pred_region
          %778 = dma.done [#allocation6], 64
        $region124: #{tpu_custom_call.1} parent=111 // pred_fallthru
          _
        // Predicated region
        $region125: #{tpu_custom_call.1} parent=111 // pred_check
          %p779 = pneg %p211
        $region126: #{tpu_custom_call.1} parent=111 // pred_check_branch
          %781 = sbr.rel (%p779) target = $region128
        $region127: #{tpu_custom_call.1} parent=111 // pred_region
          %783 = dma.done [#allocation9], 3072
        $region128: #{tpu_custom_call.1} parent=111 // pred_fallthru
          _
        // Predicated region
        $region129: #{tpu_custom_call.1} parent=111 // pred_check
          %p784 = pneg %p232
        $region130: #{tpu_custom_call.1} parent=111 // pred_check_branch
          %786 = sbr.rel (%p784) target = $region132
        $region131: #{tpu_custom_call.1} parent=111 // pred_region
          %788 = dma.done [#allocation9], 128
        $region132: #{tpu_custom_call.1} parent=111 // pred_fallthru
          _
        // Predicated region
        $region133: #{tpu_custom_call.1} parent=111 // pred_check
          %p789 = pneg %p316
        $region134: #{tpu_custom_call.1} parent=111 // pred_check_branch
          %791 = sbr.rel (%p789) target = $region136
        $region135: #{tpu_custom_call.1} parent=111 // pred_region
          %793 = dma.done [#allocation12], 1024
        $region136: #{tpu_custom_call.1} parent=111 // pred_fallthru
          _
        // Predicated region
        $region137: #{tpu_custom_call.1} parent=111 // pred_check
          %p794 = pneg %p337
        $region138: #{tpu_custom_call.1} parent=111 // pred_check_branch
          %796 = sbr.rel (%p794) target = $region140
        $region139: #{tpu_custom_call.1} parent=111 // pred_region
          %798 = dma.done [#allocation12], 512
        $region140: #{tpu_custom_call.1} parent=111 // pred_fallthru
          _
        // Predicated region
        $region141: #{tpu_custom_call.1} parent=111 // pred_check
          %p799 = pneg %p379
        $region142: #{tpu_custom_call.1} parent=111 // pred_check_branch
          %801 = sbr.rel (%p799) target = $region144
        $region143: #{tpu_custom_call.1} parent=111 // pred_region
          %803 = dma.done [#allocation15], 192
        $region144: #{tpu_custom_call.1} parent=111 // pred_fallthru
          _
        // Predicated region
        $region145: #{tpu_custom_call.1} parent=111 // pred_check
          %p804 = pneg %p421
        $region146: #{tpu_custom_call.1} parent=111 // pred_check_branch
          %806 = sbr.rel (%p804) target = $region148
        $region147: #{tpu_custom_call.1} parent=111 // pred_region
          %808 = dma.done [#allocation15], 192
        $region148: #{tpu_custom_call.1} parent=111 // pred_fallthru
          _
        // Predicated region
        $region149: #{tpu_custom_call.1} parent=111 // pred_check
          %p809 = pneg %p484
        $region150: #{tpu_custom_call.1} parent=111 // pred_check_branch
          %811 = sbr.rel (%p809) target = $region152
        $region151: #{tpu_custom_call.1} parent=111 // pred_region
          %813 = dma.done [#allocation18], 1024
        $region152: #{tpu_custom_call.1} parent=111 // pred_fallthru
          _
        // Predicated region
        $region153: #{tpu_custom_call.1} parent=111 // pred_check
          %p814 = pneg %p505
        $region154: #{tpu_custom_call.1} parent=111 // pred_check_branch
          %816 = sbr.rel (%p814) target = $region156
        $region155: #{tpu_custom_call.1} parent=111 // pred_region
          %818 = dma.done [#allocation18], 8192
        $region156: #{tpu_custom_call.1} parent=111 // pred_fallthru
          _
        %s819 = smul.u32 12, %s43
        %p820 = scmp.lt.s32.totalorder %s819, 23
        %s821 = scalar_select %p820, %s819, 23
        %s822 = smul.addr %s821, 4
        %s823 = scalar_lea.vmem %s0, %s822
        %p824 = pneg %p64
        %p825 = pneg %p61
        %p826 = pneg %p85
        %p827 = pneg %p82
        %p828 = pneg %p106
        %p829 = pneg %p103
        %p830 = pneg %p127
        %p831 = pneg %p124
        %p832 = pneg %p148
        %p833 = pneg %p145
        %p834 = pneg %p169
        %p835 = pneg %p166
        %p836 = pneg %p190
        %p837 = pneg %p187
        %p838 = pneg %p211
        %p839 = pneg %p208
        %p840 = pneg %p232
        %p841 = pneg %p229
        %p842 = pneg %p253
        %p843 = pneg %p250
        %p844 = pneg %p274
        %p845 = pneg %p271
        %p846 = pneg %p295
        %p847 = pneg %p292
        %p848 = pneg %p316
        %p849 = pneg %p313
        %p850 = pneg %p337
        %p851 = pneg %p334
        %p852 = pneg %p358
        %p853 = pneg %p355
        %p854 = pneg %p379
        %p855 = pneg %p376
        %p856 = pneg %p400
        %p857 = pneg %p397
        %p858 = pneg %p421
        %p859 = pneg %p418
        %p860 = pneg %p442
        %p861 = pneg %p439
        %p862 = pneg %p463
        %p863 = pneg %p460
        %p864 = pneg %p484
        %p865 = pneg %p481
        %p866 = pneg %p505
        %p867 = pneg %p502
        %p868 = pneg %p526
        %p869 = pneg %p523
        %p870 = pneg %p552
        %p871 = pneg %p549
        %s872 = sand.u32 %s539, 1
        %s873 = scalar_lea.sflag [#allocation4], %s872
        %s874 = sand.u32 %s539, 1
        %s875 = smul.addr %s874, 2
        %s876 = scalar_lea.vmem [#allocation20], %s875
        %s877 = smul.u32 12, %s43
        %p878 = scmp.lt.s32.totalorder %s877, 23
        %s879 = scalar_select %p878, %s877, 23
        %s880 = smul.addr %s879, 4
        %s881 = scalar_lea.vmem %s0, %s880
        %s882 = smul.u32 12, %s43
        %v884 = vld [vmem:[%s881] sm:$0xff]
        %v885 = vld [vmem:[%s881 + $0x8] sm:$0xff]
        %v886 = vld [vmem:[%s881 + $0x10] sm:$0xff]
        %v887 = vld [vmem:[%s881 + $0x18] sm:$0xff]
        %v888 = vld [vmem:[%s881 + $0x20] sm:$0xff]
        %v889 = vld [vmem:[%s881 + $0x28] sm:$0xff]
        %v890 = vld [vmem:[#allocation2] sm:$0xf]
        %v891 = vld [vmem:[%s2] sm:$0xff]
        %893 = vset.pattern.permute.xlu0 0
        %894 = vperm.xlu0 %893, %v891
        %v895 = vpop.permute.xlu0 %894
        %v903 = vunpack.c.l.b16 %v884
        %v904 = vunpack.c.h.b16 %v884
        %v905 = vunpack.c.l.b16 %v885
        %v906 = vunpack.c.h.b16 %v885
        %v907 = vunpack.c.l.b16 %v886
        %v908 = vunpack.c.h.b16 %v886
        %v909 = vunpack.c.l.b16 %v887
        %v910 = vunpack.c.h.b16 %v887
        %v911 = vunpack.c.l.b16 %v888
        %v912 = vunpack.c.h.b16 %v888
        %v913 = vunpack.c.l.b16 %v889
        %v914 = vunpack.c.h.b16 %v889
        %v915 = vpack.c.b16 %v903, %v903
        %v916 = vpack.c.b16 %v904, %v904
        %v917 = vpack.c.b16 %v905, %v905
        %v918 = vpack.c.b16 %v906, %v906
        %v919 = vpack.c.b16 %v907, %v907
        %v920 = vpack.c.b16 %v908, %v908
        %v921 = vpack.c.b16 %v909, %v909
        %v922 = vpack.c.b16 %v910, %v910
        %v923 = vpack.c.b16 %v911, %v911
        %v924 = vpack.c.b16 %v912, %v912
        %v925 = vpack.c.b16 %v913, %v913
        %v926 = vpack.c.b16 %v914, %v914
        %vm927 = vcmask 64512
        %v929 = vsel %vm927, %v890, 0
        %vm931 = vcmask 1043456
        %v933 = vsel %vm931, %v915, 0
        %v936 = vsel %vm931, %v916, 0
        %v939 = vsel %vm931, %v917, 0
        %v942 = vsel %vm931, %v918, 0
        %v945 = vsel %vm931, %v919, 0
        %v948 = vsel %vm931, %v920, 0
        %v951 = vsel %vm931, %v921, 0
        %v954 = vsel %vm931, %v922, 0
        %v957 = vsel %vm931, %v923, 0
        %v960 = vsel %vm931, %v924, 0
        %v963 = vsel %vm931, %v925, 0
        %v966 = vsel %vm931, %v926, 0
        %968 = vmatpush.bf16.msra.mxu0 0
        %969 = vmatpush.bf16.msra.mxu0 0
        %970 = vmatpush.bf16.msra.mxu0 0
        %971 = vmatpush.bf16.msra.mxu0 0
        %972 = vmatpush.bf16.msra.mxu0 0
        %973 = vmatpush.bf16.msra.mxu0 0
        %974 = vmatpush.bf16.msra.mxu0 0
        %975 = vmatpush.bf16.msra.mxu0 %v933
        %976 = vmatmul.bf16.gmra.mxu0 %v929
        %v977 = vpop.f32.mrf.mxu0
        %v978 = vadd.f32 %v895, %v977
        %v979 = vpop.f32.mrf.mxu0
        %980 = vdwg.mxu0
        %981 = vmatpush.bf16.msra.mxu0 0
        %982 = vmatpush.bf16.msra.mxu0 0
        %983 = vmatpush.bf16.msra.mxu0 0
        %984 = vmatpush.bf16.msra.mxu0 0
        %985 = vmatpush.bf16.msra.mxu0 0
        %986 = vmatpush.bf16.msra.mxu0 0
        %987 = vmatpush.bf16.msra.mxu0 0
        %988 = vmatpush.bf16.msra.mxu0 %v936
        %989 = vmatmul.bf16.gmra.mxu0 %v929
        %v990 = vpop.f32.mrf.mxu0
        %v991 = vadd.f32 %v895, %v990
        %v992 = vpop.f32.mrf.mxu0
        %993 = vdwg.mxu0
        %994 = vmatpush.bf16.msra.mxu0 0
        %995 = vmatpush.bf16.msra.mxu0 0
        %996 = vmatpush.bf16.msra.mxu0 0
        %997 = vmatpush.bf16.msra.mxu0 0
        %998 = vmatpush.bf16.msra.mxu0 0
        %999 = vmatpush.bf16.msra.mxu0 0
        %1000 = vmatpush.bf16.msra.mxu0 0
        %1001 = vmatpush.bf16.msra.mxu0 %v939
        %1002 = vmatmul.bf16.gmra.mxu0 %v929
        %v1003 = vpop.f32.mrf.mxu0
        %v1004 = vadd.f32 %v895, %v1003
        %v1005 = vpop.f32.mrf.mxu0
        %1006 = vdwg.mxu0
        %1007 = vmatpush.bf16.msra.mxu0 0
        %1008 = vmatpush.bf16.msra.mxu0 0
        %1009 = vmatpush.bf16.msra.mxu0 0
        %1010 = vmatpush.bf16.msra.mxu0 0
        %1011 = vmatpush.bf16.msra.mxu0 0
        %1012 = vmatpush.bf16.msra.mxu0 0
        %1013 = vmatpush.bf16.msra.mxu0 0
        %1014 = vmatpush.bf16.msra.mxu0 %v942
        %1015 = vmatmul.bf16.gmra.mxu0 %v929
        %v1016 = vpop.f32.mrf.mxu0
        %v1017 = vadd.f32 %v895, %v1016
        %v1018 = vpop.f32.mrf.mxu0
        %1019 = vdwg.mxu0
        %1020 = vmatpush.bf16.msra.mxu0 0
        %1021 = vmatpush.bf16.msra.mxu0 0
        %1022 = vmatpush.bf16.msra.mxu0 0
        %1023 = vmatpush.bf16.msra.mxu0 0
        %1024 = vmatpush.bf16.msra.mxu0 0
        %1025 = vmatpush.bf16.msra.mxu0 0
        %1026 = vmatpush.bf16.msra.mxu0 0
        %1027 = vmatpush.bf16.msra.mxu0 %v945
        %1028 = vmatmul.bf16.gmra.mxu0 %v929
        %v1029 = vpop.f32.mrf.mxu0
        %v1030 = vadd.f32 %v895, %v1029
        %v1031 = vpop.f32.mrf.mxu0
        %1032 = vdwg.mxu0
        %1033 = vmatpush.bf16.msra.mxu0 0
        %1034 = vmatpush.bf16.msra.mxu0 0
        %1035 = vmatpush.bf16.msra.mxu0 0
        %1036 = vmatpush.bf16.msra.mxu0 0
        %1037 = vmatpush.bf16.msra.mxu0 0
        %1038 = vmatpush.bf16.msra.mxu0 0
        %1039 = vmatpush.bf16.msra.mxu0 0
        %1040 = vmatpush.bf16.msra.mxu0 %v948
        %1041 = vmatmul.bf16.gmra.mxu0 %v929
        %v1042 = vpop.f32.mrf.mxu0
        %v1043 = vadd.f32 %v895, %v1042
        %v1044 = vpop.f32.mrf.mxu0
        %1045 = vdwg.mxu0
        %1046 = vmatpush.bf16.msra.mxu0 0
        %1047 = vmatpush.bf16.msra.mxu0 0
        %1048 = vmatpush.bf16.msra.mxu0 0
        %1049 = vmatpush.bf16.msra.mxu0 0
        %1050 = vmatpush.bf16.msra.mxu0 0
        %1051 = vmatpush.bf16.msra.mxu0 0
        %1052 = vmatpush.bf16.msra.mxu0 0
        %1053 = vmatpush.bf16.msra.mxu0 %v951
        %1054 = vmatmul.bf16.gmra.mxu0 %v929
        %v1055 = vpop.f32.mrf.mxu0
        %v1056 = vadd.f32 %v895, %v1055
        %v1057 = vpop.f32.mrf.mxu0
        %1058 = vdwg.mxu0
        %1059 = vmatpush.bf16.msra.mxu0 0
        %1060 = vmatpush.bf16.msra.mxu0 0
        %1061 = vmatpush.bf16.msra.mxu0 0
        %1062 = vmatpush.bf16.msra.mxu0 0
        %1063 = vmatpush.bf16.msra.mxu0 0
        %1064 = vmatpush.bf16.msra.mxu0 0
        %1065 = vmatpush.bf16.msra.mxu0 0
        %1066 = vmatpush.bf16.msra.mxu0 %v954
        %1067 = vmatmul.bf16.gmra.mxu0 %v929
        %v1068 = vpop.f32.mrf.mxu0
        %v1069 = vadd.f32 %v895, %v1068
        %v1070 = vpop.f32.mrf.mxu0
        %1071 = vdwg.mxu0
        %1072 = vmatpush.bf16.msra.mxu0 0
        %1073 = vmatpush.bf16.msra.mxu0 0
        %1074 = vmatpush.bf16.msra.mxu0 0
        %1075 = vmatpush.bf16.msra.mxu0 0
        %1076 = vmatpush.bf16.msra.mxu0 0
        %1077 = vmatpush.bf16.msra.mxu0 0
        %1078 = vmatpush.bf16.msra.mxu0 0
        %1079 = vmatpush.bf16.msra.mxu0 %v957
        %1080 = vmatmul.bf16.gmra.mxu0 %v929
        %v1081 = vpop.f32.mrf.mxu0
        %v1082 = vadd.f32 %v895, %v1081
        %v1083 = vpop.f32.mrf.mxu0
        %1084 = vdwg.mxu0
        %1085 = vmatpush.bf16.msra.mxu0 0
        %1086 = vmatpush.bf16.msra.mxu0 0
        %1087 = vmatpush.bf16.msra.mxu0 0
        %1088 = vmatpush.bf16.msra.mxu0 0
        %1089 = vmatpush.bf16.msra.mxu0 0
        %1090 = vmatpush.bf16.msra.mxu0 0
        %1091 = vmatpush.bf16.msra.mxu0 0
        %1092 = vmatpush.bf16.msra.mxu0 %v960
        %1093 = vmatmul.bf16.gmra.mxu0 %v929
        %v1094 = vpop.f32.mrf.mxu0
        %v1095 = vadd.f32 %v895, %v1094
        %v1096 = vpop.f32.mrf.mxu0
        %1097 = vdwg.mxu0
        %1098 = vmatpush.bf16.msra.mxu0 0
        %1099 = vmatpush.bf16.msra.mxu0 0
        %1100 = vmatpush.bf16.msra.mxu0 0
        %1101 = vmatpush.bf16.msra.mxu0 0
        %1102 = vmatpush.bf16.msra.mxu0 0
        %1103 = vmatpush.bf16.msra.mxu0 0
        %1104 = vmatpush.bf16.msra.mxu0 0
        %1105 = vmatpush.bf16.msra.mxu0 %v963
        %1106 = vmatmul.bf16.gmra.mxu0 %v929
        %v1107 = vpop.f32.mrf.mxu0
        %v1108 = vadd.f32 %v895, %v1107
        %v1109 = vpop.f32.mrf.mxu0
        %1110 = vdwg.mxu0
        %1111 = vmatpush.bf16.msra.mxu0 0
        %1112 = vmatpush.bf16.msra.mxu0 0
        %1113 = vmatpush.bf16.msra.mxu0 0
        %1114 = vmatpush.bf16.msra.mxu0 0
        %1115 = vmatpush.bf16.msra.mxu0 0
        %1116 = vmatpush.bf16.msra.mxu0 0
        %1117 = vmatpush.bf16.msra.mxu0 0
        %1118 = vmatpush.bf16.msra.mxu0 %v966
        %1119 = vmatmul.bf16.gmra.mxu0 %v929
        %v1120 = vpop.f32.mrf.mxu0
        %v1121 = vadd.f32 %v895, %v1120
        %v1122 = vpop.f32.mrf.mxu0
        %1123 = vdwg.mxu0
        %v1124 = vld [vmem:[#allocation16] sm:$0xff]
        %v1125 = vld [vmem:[#allocation16 + $0x8] sm:$0xf]
        %v1128 = vperm.slane %v1124, 0
        %v1129 = vperm.slane %v1124, 1
        %v1130 = vperm.slane %v1124, 2
        %v1131 = vperm.slane %v1124, 3
        %v1132 = vperm.slane %v1124, 4
        %v1133 = vperm.slane %v1124, 5
        %v1134 = vperm.slane %v1124, 6
        %v1135 = vperm.slane %v1124, 7
        %v1136 = vperm.slane %v1125, 0
        %v1137 = vperm.slane %v1125, 1
        %v1138 = vperm.slane %v1125, 2
        %v1139 = vperm.slane %v1125, 3
        %v1152 = vmul.f32 %v978, %v1128
        %v1153 = vmul.f32 %v991, %v1129
        %v1154 = vmul.f32 %v1004, %v1130
        %v1155 = vmul.f32 %v1017, %v1131
        %v1156 = vmul.f32 %v1030, %v1132
        %v1157 = vmul.f32 %v1043, %v1133
        %v1158 = vmul.f32 %v1056, %v1134
        %v1159 = vmul.f32 %v1069, %v1135
        %v1160 = vmul.f32 %v1082, %v1136
        %v1161 = vmul.f32 %v1095, %v1137
        %v1162 = vmul.f32 %v1108, %v1138
        %v1163 = vmul.f32 %v1121, %v1139
        %v1164 = vpack.c.bf16 %v1153, %v1152
        %v1165 = vpack.c.bf16 %v1155, %v1154
        %v1166 = vpack.c.bf16 %v1157, %v1156
        %v1167 = vpack.c.bf16 %v1159, %v1158
        %v1168 = vpack.c.bf16 %v1161, %v1160
        %v1169 = vpack.c.bf16 %v1163, %v1162
        %v1171 = vunpack.c.h.b16 %v1169
        %v1172 = vpack.c.b16 %v1171, %v1171
        %1173 = vrot.lane.b32.xlu0 %v1172, 19
        %v1174 = vpop.permute.xlu0 %1173
        %v1180 = vunpack.c.l.b16 %v1164
        %v1181 = vunpack.c.h.b16 %v1164
        %v1182 = vunpack.c.l.b16 %v1165
        %v1183 = vunpack.c.h.b16 %v1165
        %v1184 = vunpack.c.l.b16 %v1166
        %v1185 = vunpack.c.h.b16 %v1166
        %v1186 = vunpack.c.l.b16 %v1167
        %v1187 = vunpack.c.h.b16 %v1167
        %v1188 = vunpack.c.l.b16 %v1168
        %v1189 = vunpack.c.h.b16 %v1168
        %v1190 = vunpack.c.l.b16 %v1169
        %v1191 = vpack.c.b16 %v1180, %v1180
        %v1192 = vpack.c.b16 %v1181, %v1181
        %v1193 = vpack.c.b16 %v1182, %v1182
        %v1194 = vpack.c.b16 %v1183, %v1183
        %v1195 = vpack.c.b16 %v1184, %v1184
        %v1196 = vpack.c.b16 %v1185, %v1185
        %v1197 = vpack.c.b16 %v1186, %v1186
        %v1198 = vpack.c.b16 %v1187, %v1187
        %v1199 = vpack.c.b16 %v1188, %v1188
        %v1200 = vpack.c.b16 %v1189, %v1189
        %v1201 = vpack.c.b16 %v1190, %v1190
        %1202 = vrot.lane.b32.xlu0 %v1191, 19
        %v1203 = vpop.permute.xlu0 %1202
        %1204 = vrot.lane.b32.xlu0 %v1192, 19
        %v1205 = vpop.permute.xlu0 %1204
        %1206 = vrot.lane.b32.xlu0 %v1193, 19
        %v1207 = vpop.permute.xlu0 %1206
        %1208 = vrot.lane.b32.xlu0 %v1194, 19
        %v1209 = vpop.permute.xlu0 %1208
        %1210 = vrot.lane.b32.xlu0 %v1195, 19
        %v1211 = vpop.permute.xlu0 %1210
        %1212 = vrot.lane.b32.xlu0 %v1196, 19
        %v1213 = vpop.permute.xlu0 %1212
        %1214 = vrot.lane.b32.xlu0 %v1197, 19
        %v1215 = vpop.permute.xlu0 %1214
        %1216 = vrot.lane.b32.xlu0 %v1198, 19
        %v1217 = vpop.permute.xlu0 %1216
        %1218 = vrot.lane.b32.xlu0 %v1199, 19
        %v1219 = vpop.permute.xlu0 %1218
        %1220 = vrot.lane.b32.xlu0 %v1200, 19
        %v1221 = vpop.permute.xlu0 %1220
        %1222 = vrot.lane.b32.xlu0 %v1201, 19
        %v1223 = vpop.permute.xlu0 %1222
        %vm1224 = vcmask 154624
        %v1225 = vsel %vm1224, %v1203, %v1205
        %v1226 = vsel %vm1224, %v1205, %v1207
        %v1227 = vsel %vm1224, %v1207, %v1209
        %v1228 = vsel %vm1224, %v1209, %v1211
        %v1229 = vsel %vm1224, %v1211, %v1213
        %v1230 = vsel %vm1224, %v1213, %v1215
        %v1231 = vsel %vm1224, %v1215, %v1217
        %v1232 = vsel %vm1224, %v1217, %v1219
        %v1233 = vsel %vm1224, %v1219, %v1221
        %v1234 = vsel %vm1224, %v1221, %v1223
        %v1235 = vsel %vm1224, %v1223, %v1174
        %vm1236 = vcmask 154624
        %v1239 = vsel %vm1236, %v1174, %v1203
        %1240 = vrot.lane.b32.xlu0 %v1172, 18
        %v1241 = vpop.permute.xlu0 %1240
        %1242 = vrot.lane.b32.xlu0 %v1191, 18
        %v1243 = vpop.permute.xlu0 %1242
        %1244 = vrot.lane.b32.xlu0 %v1192, 18
        %v1245 = vpop.permute.xlu0 %1244
        %1246 = vrot.lane.b32.xlu0 %v1193, 18
        %v1247 = vpop.permute.xlu0 %1246
        %1248 = vrot.lane.b32.xlu0 %v1194, 18
        %v1249 = vpop.permute.xlu0 %1248
        %1250 = vrot.lane.b32.xlu0 %v1195, 18
        %v1251 = vpop.permute.xlu0 %1250
        %1252 = vrot.lane.b32.xlu0 %v1196, 18
        %v1253 = vpop.permute.xlu0 %1252
        %1254 = vrot.lane.b32.xlu0 %v1197, 18
        %v1255 = vpop.permute.xlu0 %1254
        %1256 = vrot.lane.b32.xlu0 %v1198, 18
        %v1257 = vpop.permute.xlu0 %1256
        %1258 = vrot.lane.b32.xlu0 %v1199, 18
        %v1259 = vpop.permute.xlu0 %1258
        %1260 = vrot.lane.b32.xlu0 %v1200, 18
        %v1261 = vpop.permute.xlu0 %1260
        %1262 = vrot.lane.b32.xlu0 %v1201, 18
        %v1263 = vpop.permute.xlu0 %1262
        %vm1264 = vcmask 146432
        %v1265 = vsel %vm1264, %v1243, %v1245
        %v1266 = vsel %vm1264, %v1245, %v1247
        %v1267 = vsel %vm1264, %v1247, %v1249
        %v1268 = vsel %vm1264, %v1249, %v1251
        %v1269 = vsel %vm1264, %v1251, %v1253
        %v1270 = vsel %vm1264, %v1253, %v1255
        %v1271 = vsel %vm1264, %v1255, %v1257
        %v1272 = vsel %vm1264, %v1257, %v1259
        %v1273 = vsel %vm1264, %v1259, %v1261
        %v1274 = vsel %vm1264, %v1261, %v1263
        %v1275 = vsel %vm1264, %v1263, %v1241
        %vm1276 = vcmask 146432
        %v1279 = vsel %vm1276, %v1241, %v1243
        %1280 = vrot.lane.b32.xlu0 %v1172, 17
        %v1281 = vpop.permute.xlu0 %1280
        %1282 = vrot.lane.b32.xlu0 %v1191, 17
        %v1283 = vpop.permute.xlu0 %1282
        %1284 = vrot.lane.b32.xlu0 %v1192, 17
        %v1285 = vpop.permute.xlu0 %1284
        %1286 = vrot.lane.b32.xlu0 %v1193, 17
        %v1287 = vpop.permute.xlu0 %1286
        %1288 = vrot.lane.b32.xlu0 %v1194, 17
        %v1289 = vpop.permute.xlu0 %1288
        %1290 = vrot.lane.b32.xlu0 %v1195, 17
        %v1291 = vpop.permute.xlu0 %1290
        %1292 = vrot.lane.b32.xlu0 %v1196, 17
        %v1293 = vpop.permute.xlu0 %1292
        %1294 = vrot.lane.b32.xlu0 %v1197, 17
        %v1295 = vpop.permute.xlu0 %1294
        %1296 = vrot.lane.b32.xlu0 %v1198, 17
        %v1297 = vpop.permute.xlu0 %1296
        %1298 = vrot.lane.b32.xlu0 %v1199, 17
        %v1299 = vpop.permute.xlu0 %1298
        %1300 = vrot.lane.b32.xlu0 %v1200, 17
        %v1301 = vpop.permute.xlu0 %1300
        %1302 = vrot.lane.b32.xlu0 %v1201, 17
        %v1303 = vpop.permute.xlu0 %1302
        %vm1304 = vcmask 138240
        %v1305 = vsel %vm1304, %v1283, %v1285
        %v1306 = vsel %vm1304, %v1285, %v1287
        %v1307 = vsel %vm1304, %v1287, %v1289
        %v1308 = vsel %vm1304, %v1289, %v1291
        %v1309 = vsel %vm1304, %v1291, %v1293
        %v1310 = vsel %vm1304, %v1293, %v1295
        %v1311 = vsel %vm1304, %v1295, %v1297
        %v1312 = vsel %vm1304, %v1297, %v1299
        %v1313 = vsel %vm1304, %v1299, %v1301
        %v1314 = vsel %vm1304, %v1301, %v1303
        %v1315 = vsel %vm1304, %v1303, %v1281
        %vm1316 = vcmask 138240
        %v1319 = vsel %vm1316, %v1281, %v1283
        %1320 = vrot.lane.b32.xlu0 %v1172, 1
        %v1321 = vpop.permute.xlu0 %1320
        %1322 = vrot.lane.b32.xlu0 %v1191, 1
        %v1323 = vpop.permute.xlu0 %1322
        %1324 = vrot.lane.b32.xlu0 %v1192, 1
        %v1325 = vpop.permute.xlu0 %1324
        %1326 = vrot.lane.b32.xlu0 %v1193, 1
        %v1327 = vpop.permute.xlu0 %1326
        %1328 = vrot.lane.b32.xlu0 %v1194, 1
        %v1329 = vpop.permute.xlu0 %1328
        %1330 = vrot.lane.b32.xlu0 %v1195, 1
        %v1331 = vpop.permute.xlu0 %1330
        %1332 = vrot.lane.b32.xlu0 %v1196, 1
        %v1333 = vpop.permute.xlu0 %1332
        %1334 = vrot.lane.b32.xlu0 %v1197, 1
        %v1335 = vpop.permute.xlu0 %1334
        %1336 = vrot.lane.b32.xlu0 %v1198, 1
        %v1337 = vpop.permute.xlu0 %1336
        %1338 = vrot.lane.b32.xlu0 %v1199, 1
        %v1339 = vpop.permute.xlu0 %1338
        %1340 = vrot.lane.b32.xlu0 %v1200, 1
        %v1341 = vpop.permute.xlu0 %1340
        %1342 = vrot.lane.b32.xlu0 %v1201, 1
        %v1343 = vpop.permute.xlu0 %1342
        %vm1344 = vcmask 7168
        %v1345 = vsel %vm1344, %v1323, %v1325
        %v1346 = vsel %vm1344, %v1325, %v1327
        %v1347 = vsel %vm1344, %v1327, %v1329
        %v1348 = vsel %vm1344, %v1329, %v1331
        %v1349 = vsel %vm1344, %v1331, %v1333
        %v1350 = vsel %vm1344, %v1333, %v1335
        %v1351 = vsel %vm1344, %v1335, %v1337
        %v1352 = vsel %vm1344, %v1337, %v1339
        %v1353 = vsel %vm1344, %v1339, %v1341
        %v1354 = vsel %vm1344, %v1341, %v1343
        %v1355 = vsel %vm1344, %v1343, %v1321
        %vm1356 = vcmask 7168
        %v1359 = vsel %vm1356, %v1321, %v1323
        %1360 = vrot.lane.b32.xlu0 %v1191, 127
        %v1361 = vpop.permute.xlu0 %1360
        %1362 = vrot.lane.b32.xlu0 %v1192, 127
        %v1363 = vpop.permute.xlu0 %1362
        %1364 = vrot.lane.b32.xlu0 %v1193, 127
        %v1365 = vpop.permute.xlu0 %1364
        %1366 = vrot.lane.b32.xlu0 %v1194, 127
        %v1367 = vpop.permute.xlu0 %1366
        %1368 = vrot.lane.b32.xlu0 %v1195, 127
        %v1369 = vpop.permute.xlu0 %1368
        %1370 = vrot.lane.b32.xlu0 %v1196, 127
        %v1371 = vpop.permute.xlu0 %1370
        %1372 = vrot.lane.b32.xlu0 %v1197, 127
        %v1373 = vpop.permute.xlu0 %1372
        %1374 = vrot.lane.b32.xlu0 %v1198, 127
        %v1375 = vpop.permute.xlu0 %1374
        %1376 = vrot.lane.b32.xlu0 %v1199, 127
        %v1377 = vpop.permute.xlu0 %1376
        %1378 = vrot.lane.b32.xlu0 %v1200, 127
        %v1379 = vpop.permute.xlu0 %1378
        %1380 = vrot.lane.b32.xlu0 %v1201, 127
        %v1381 = vpop.permute.xlu0 %1380
        %1382 = vrot.lane.b32.xlu0 %v1172, 127
        %v1383 = vpop.permute.xlu0 %1382
        %vm1384 = vcmask 1039360
        %v1385 = vsel %vm1384, %v1361, %v1363
        %v1386 = vsel %vm1384, %v1363, %v1365
        %v1387 = vsel %vm1384, %v1365, %v1367
        %v1388 = vsel %vm1384, %v1367, %v1369
        %v1389 = vsel %vm1384, %v1369, %v1371
        %v1390 = vsel %vm1384, %v1371, %v1373
        %v1391 = vsel %vm1384, %v1373, %v1375
        %v1392 = vsel %vm1384, %v1375, %v1377
        %v1393 = vsel %vm1384, %v1377, %v1379
        %v1394 = vsel %vm1384, %v1379, %v1381
        %v1395 = vsel %vm1384, %v1381, %v1383
        %vm1396 = vcmask 1039360
        %v1399 = vsel %vm1396, %v1383, %v1361
        %1400 = vrot.lane.b32.xlu0 %v1191, 111
        %v1401 = vpop.permute.xlu0 %1400
        %1402 = vrot.lane.b32.xlu0 %v1192, 111
        %v1403 = vpop.permute.xlu0 %1402
        %1404 = vrot.lane.b32.xlu0 %v1193, 111
        %v1405 = vpop.permute.xlu0 %1404
        %1406 = vrot.lane.b32.xlu0 %v1194, 111
        %v1407 = vpop.permute.xlu0 %1406
        %1408 = vrot.lane.b32.xlu0 %v1195, 111
        %v1409 = vpop.permute.xlu0 %1408
        %1410 = vrot.lane.b32.xlu0 %v1196, 111
        %v1411 = vpop.permute.xlu0 %1410
        %1412 = vrot.lane.b32.xlu0 %v1197, 111
        %v1413 = vpop.permute.xlu0 %1412
        %1414 = vrot.lane.b32.xlu0 %v1198, 111
        %v1415 = vpop.permute.xlu0 %1414
        %1416 = vrot.lane.b32.xlu0 %v1199, 111
        %v1417 = vpop.permute.xlu0 %1416
        %1418 = vrot.lane.b32.xlu0 %v1200, 111
        %v1419 = vpop.permute.xlu0 %1418
        %1420 = vrot.lane.b32.xlu0 %v1201, 111
        %v1421 = vpop.permute.xlu0 %1420
        %1422 = vrot.lane.b32.xlu0 %v1172, 111
        %v1423 = vpop.permute.xlu0 %1422
        %vm1424 = vcmask 908288
        %v1425 = vsel %vm1424, %v1401, %v1403
        %v1426 = vsel %vm1424, %v1403, %v1405
        %v1427 = vsel %vm1424, %v1405, %v1407
        %v1428 = vsel %vm1424, %v1407, %v1409
        %v1429 = vsel %vm1424, %v1409, %v1411
        %v1430 = vsel %vm1424, %v1411, %v1413
        %v1431 = vsel %vm1424, %v1413, %v1415
        %v1432 = vsel %vm1424, %v1415, %v1417
        %v1433 = vsel %vm1424, %v1417, %v1419
        %v1434 = vsel %vm1424, %v1419, %v1421
        %v1435 = vsel %vm1424, %v1421, %v1423
        %vm1436 = vcmask 908288
        %v1439 = vsel %vm1436, %v1423, %v1401
        %1440 = vrot.lane.b32.xlu0 %v1191, 110
        %v1441 = vpop.permute.xlu0 %1440
        %1442 = vrot.lane.b32.xlu0 %v1192, 110
        %v1443 = vpop.permute.xlu0 %1442
        %1444 = vrot.lane.b32.xlu0 %v1193, 110
        %v1445 = vpop.permute.xlu0 %1444
        %1446 = vrot.lane.b32.xlu0 %v1194, 110
        %v1447 = vpop.permute.xlu0 %1446
        %1448 = vrot.lane.b32.xlu0 %v1195, 110
        %v1449 = vpop.permute.xlu0 %1448
        %1450 = vrot.lane.b32.xlu0 %v1196, 110
        %v1451 = vpop.permute.xlu0 %1450
        %1452 = vrot.lane.b32.xlu0 %v1197, 110
        %v1453 = vpop.permute.xlu0 %1452
        %1454 = vrot.lane.b32.xlu0 %v1198, 110
        %v1455 = vpop.permute.xlu0 %1454
        %1456 = vrot.lane.b32.xlu0 %v1199, 110
        %v1457 = vpop.permute.xlu0 %1456
        %1458 = vrot.lane.b32.xlu0 %v1200, 110
        %v1459 = vpop.permute.xlu0 %1458
        %1460 = vrot.lane.b32.xlu0 %v1201, 110
        %v1461 = vpop.permute.xlu0 %1460
        %1462 = vrot.lane.b32.xlu0 %v1172, 110
        %v1463 = vpop.permute.xlu0 %1462
        %vm1464 = vcmask 900096
        %v1465 = vsel %vm1464, %v1441, %v1443
        %v1466 = vsel %vm1464, %v1443, %v1445
        %v1467 = vsel %vm1464, %v1445, %v1447
        %v1468 = vsel %vm1464, %v1447, %v1449
        %v1469 = vsel %vm1464, %v1449, %v1451
        %v1470 = vsel %vm1464, %v1451, %v1453
        %v1471 = vsel %vm1464, %v1453, %v1455
        %v1472 = vsel %vm1464, %v1455, %v1457
        %v1473 = vsel %vm1464, %v1457, %v1459
        %v1474 = vsel %vm1464, %v1459, %v1461
        %v1475 = vsel %vm1464, %v1461, %v1463
        %vm1476 = vcmask 900096
        %v1479 = vsel %vm1476, %v1463, %v1441
        %1480 = vrot.lane.b32.xlu0 %v1191, 109
        %v1481 = vpop.permute.xlu0 %1480
        %1482 = vrot.lane.b32.xlu0 %v1192, 109
        %v1483 = vpop.permute.xlu0 %1482
        %1484 = vrot.lane.b32.xlu0 %v1193, 109
        %v1485 = vpop.permute.xlu0 %1484
        %1486 = vrot.lane.b32.xlu0 %v1194, 109
        %v1487 = vpop.permute.xlu0 %1486
        %1488 = vrot.lane.b32.xlu0 %v1195, 109
        %v1489 = vpop.permute.xlu0 %1488
        %1490 = vrot.lane.b32.xlu0 %v1196, 109
        %v1491 = vpop.permute.xlu0 %1490
        %1492 = vrot.lane.b32.xlu0 %v1197, 109
        %v1493 = vpop.permute.xlu0 %1492
        %1494 = vrot.lane.b32.xlu0 %v1198, 109
        %v1495 = vpop.permute.xlu0 %1494
        %1496 = vrot.lane.b32.xlu0 %v1199, 109
        %v1497 = vpop.permute.xlu0 %1496
        %1498 = vrot.lane.b32.xlu0 %v1200, 109
        %v1499 = vpop.permute.xlu0 %1498
        %1500 = vrot.lane.b32.xlu0 %v1201, 109
        %v1501 = vpop.permute.xlu0 %1500
        %1502 = vrot.lane.b32.xlu0 %v1172, 109
        %v1503 = vpop.permute.xlu0 %1502
        %vm1504 = vcmask 891904
        %v1505 = vsel %vm1504, %v1481, %v1483
        %v1506 = vsel %vm1504, %v1483, %v1485
        %v1507 = vsel %vm1504, %v1485, %v1487
        %v1508 = vsel %vm1504, %v1487, %v1489
        %v1509 = vsel %vm1504, %v1489, %v1491
        %v1510 = vsel %vm1504, %v1491, %v1493
        %v1511 = vsel %vm1504, %v1493, %v1495
        %v1512 = vsel %vm1504, %v1495, %v1497
        %v1513 = vsel %vm1504, %v1497, %v1499
        %v1514 = vsel %vm1504, %v1499, %v1501
        %v1515 = vsel %vm1504, %v1501, %v1503
        %vm1516 = vcmask 891904
        %v1519 = vsel %vm1516, %v1503, %v1481
        %v1521 = vrot.slane %v1279, 4
        %v1522 = vrot.slane %v1265, 4
        %v1523 = vrot.slane %v1266, 4
        %v1524 = vrot.slane %v1267, 4
        %v1525 = vrot.slane %v1268, 4
        %v1526 = vrot.slane %v1269, 4
        %v1527 = vrot.slane %v1270, 4
        %v1528 = vrot.slane %v1271, 4
        %v1529 = vrot.slane %v1272, 4
        %v1530 = vrot.slane %v1273, 4
        %v1531 = vrot.slane %v1274, 4
        %v1532 = vrot.slane %v1275, 4
        %v1534 = vrot.slane %v1359, 4
        %v1535 = vrot.slane %v1345, 4
        %v1536 = vrot.slane %v1346, 4
        %v1537 = vrot.slane %v1347, 4
        %v1538 = vrot.slane %v1348, 4
        %v1539 = vrot.slane %v1349, 4
        %v1540 = vrot.slane %v1350, 4
        %v1541 = vrot.slane %v1351, 4
        %v1542 = vrot.slane %v1352, 4
        %v1543 = vrot.slane %v1353, 4
        %v1544 = vrot.slane %v1354, 4
        %v1545 = vrot.slane %v1355, 4
        %v1547 = vrot.slane %v1385, 4
        %v1548 = vrot.slane %v1386, 4
        %v1549 = vrot.slane %v1387, 4
        %v1550 = vrot.slane %v1388, 4
        %v1551 = vrot.slane %v1389, 4
        %v1552 = vrot.slane %v1390, 4
        %v1553 = vrot.slane %v1391, 4
        %v1554 = vrot.slane %v1392, 4
        %v1555 = vrot.slane %v1393, 4
        %v1556 = vrot.slane %v1394, 4
        %v1557 = vrot.slane %v1395, 4
        %v1558 = vrot.slane %v1399, 4
        %v1560 = vrot.slane %v1465, 4
        %v1561 = vrot.slane %v1466, 4
        %v1562 = vrot.slane %v1467, 4
        %v1563 = vrot.slane %v1468, 4
        %v1564 = vrot.slane %v1469, 4
        %v1565 = vrot.slane %v1470, 4
        %v1566 = vrot.slane %v1471, 4
        %v1567 = vrot.slane %v1472, 4
        %v1568 = vrot.slane %v1473, 4
        %v1569 = vrot.slane %v1474, 4
        %v1570 = vrot.slane %v1475, 4
        %v1571 = vrot.slane %v1479, 4
        %v1573 = vsel %vm931, %v1239, %v1521
        %v1577 = vsel %vm931, %v1225, %v1522
        %v1581 = vsel %vm931, %v1226, %v1523
        %v1585 = vsel %vm931, %v1227, %v1524
        %v1589 = vsel %vm931, %v1228, %v1525
        %v1593 = vsel %vm931, %v1229, %v1526
        %v1597 = vsel %vm931, %v1230, %v1527
        %v1601 = vsel %vm931, %v1231, %v1528
        %v1605 = vsel %vm931, %v1232, %v1529
        %v1609 = vsel %vm931, %v1233, %v1530
        %v1613 = vsel %vm931, %v1234, %v1531
        %v1617 = vsel %vm931, %v1235, %v1532
        %v1620 = vsel %vm931, %v1319, %v1534
        %v1624 = vsel %vm931, %v1305, %v1535
        %v1628 = vsel %vm931, %v1306, %v1536
        %v1632 = vsel %vm931, %v1307, %v1537
        %v1636 = vsel %vm931, %v1308, %v1538
        %v1640 = vsel %vm931, %v1309, %v1539
        %v1644 = vsel %vm931, %v1310, %v1540
        %v1648 = vsel %vm931, %v1311, %v1541
        %v1652 = vsel %vm931, %v1312, %v1542
        %v1656 = vsel %vm931, %v1313, %v1543
        %v1660 = vsel %vm931, %v1314, %v1544
        %v1664 = vsel %vm931, %v1315, %v1545
        %v1668 = vsel %vm931, %v1191, %v1547
        %v1672 = vsel %vm931, %v1192, %v1548
        %v1676 = vsel %vm931, %v1193, %v1549
        %v1680 = vsel %vm931, %v1194, %v1550
        %v1684 = vsel %vm931, %v1195, %v1551
        %v1688 = vsel %vm931, %v1196, %v1552
        %v1692 = vsel %vm931, %v1197, %v1553
        %v1696 = vsel %vm931, %v1198, %v1554
        %v1700 = vsel %vm931, %v1199, %v1555
        %v1704 = vsel %vm931, %v1200, %v1556
        %v1708 = vsel %vm931, %v1201, %v1557
        %v1712 = vsel %vm931, %v1172, %v1558
        %v1716 = vsel %vm931, %v1425, %v1560
        %v1720 = vsel %vm931, %v1426, %v1561
        %v1724 = vsel %vm931, %v1427, %v1562
        %v1728 = vsel %vm931, %v1428, %v1563
        %v1732 = vsel %vm931, %v1429, %v1564
        %v1736 = vsel %vm931, %v1430, %v1565
        %v1740 = vsel %vm931, %v1431, %v1566
        %v1744 = vsel %vm931, %v1432, %v1567
        %v1748 = vsel %vm931, %v1433, %v1568
        %v1752 = vsel %vm931, %v1434, %v1569
        %v1756 = vsel %vm931, %v1435, %v1570
        %v1759 = vsel %vm931, %v1439, %v1571
        %v1761 = vld [vmem:[#allocation5] sm:$0xf]
        %v1762 = vld [vmem:[%s4] sm:$0xff]
        %1764 = vset.pattern.permute.xlu0 0
        %1765 = vperm.xlu0 %1764, %v1762
        %v1766 = vpop.permute.xlu0 %1765
        %vm1768 = vcmask 588800
        %v1770 = vsel %vm1768, %v1761, 0
        %v1773 = vsel %vm931, %v1505, 0
        %v1776 = vsel %vm931, %v1506, 0
        %v1779 = vsel %vm931, %v1507, 0
        %v1782 = vsel %vm931, %v1508, 0
        %v1785 = vsel %vm931, %v1509, 0
        %v1788 = vsel %vm931, %v1510, 0
        %v1791 = vsel %vm931, %v1511, 0
        %v1794 = vsel %vm931, %v1512, 0
        %v1797 = vsel %vm931, %v1513, 0
        %v1800 = vsel %vm931, %v1514, 0
        %v1803 = vsel %vm931, %v1515, 0
        %v1805 = vsel %vm931, %v1519, 0
        %1807 = vmatpush.bf16.msra.mxu0 0
        %1808 = vmatpush.bf16.msra.mxu0 0
        %1809 = vmatpush.bf16.msra.mxu0 0
        %1810 = vmatpush.bf16.msra.mxu0 %v1773
        %1811 = vmatpush.bf16.msra.mxu0 %v1716
        %1812 = vmatpush.bf16.msra.mxu0 %v1668
        %1813 = vmatpush.bf16.msra.mxu0 %v1620
        %1814 = vmatpush.bf16.msra.mxu0 %v1573
        %1815 = vmatmul.bf16.gmra.mxu0 %v1770
        %v1816 = vpop.f32.mrf.mxu0
        %v1817 = vadd.f32 %v1766, %v1816
        %v1818 = vpop.f32.mrf.mxu0
        %1819 = vdwg.mxu0
        %1820 = vmatpush.bf16.msra.mxu0 0
        %1821 = vmatpush.bf16.msra.mxu0 0
        %1822 = vmatpush.bf16.msra.mxu0 0
        %1823 = vmatpush.bf16.msra.mxu0 %v1776
        %1824 = vmatpush.bf16.msra.mxu0 %v1720
        %1825 = vmatpush.bf16.msra.mxu0 %v1672
        %1826 = vmatpush.bf16.msra.mxu0 %v1624
        %1827 = vmatpush.bf16.msra.mxu0 %v1577
        %1828 = vmatmul.bf16.gmra.mxu0 %v1770
        %v1829 = vpop.f32.mrf.mxu0
        %v1830 = vadd.f32 %v1766, %v1829
        %v1831 = vpop.f32.mrf.mxu0
        %1832 = vdwg.mxu0
        %1833 = vmatpush.bf16.msra.mxu0 0
        %1834 = vmatpush.bf16.msra.mxu0 0
        %1835 = vmatpush.bf16.msra.mxu0 0
        %1836 = vmatpush.bf16.msra.mxu0 %v1779
        %1837 = vmatpush.bf16.msra.mxu0 %v1724
        %1838 = vmatpush.bf16.msra.mxu0 %v1676
        %1839 = vmatpush.bf16.msra.mxu0 %v1628
        %1840 = vmatpush.bf16.msra.mxu0 %v1581
        %1841 = vmatmul.bf16.gmra.mxu0 %v1770
        %v1842 = vpop.f32.mrf.mxu0
        %v1843 = vadd.f32 %v1766, %v1842
        %v1844 = vpop.f32.mrf.mxu0
        %1845 = vdwg.mxu0
        %1846 = vmatpush.bf16.msra.mxu0 0
        %1847 = vmatpush.bf16.msra.mxu0 0
        %1848 = vmatpush.bf16.msra.mxu0 0
        %1849 = vmatpush.bf16.msra.mxu0 %v1782
        %1850 = vmatpush.bf16.msra.mxu0 %v1728
        %1851 = vmatpush.bf16.msra.mxu0 %v1680
        %1852 = vmatpush.bf16.msra.mxu0 %v1632
        %1853 = vmatpush.bf16.msra.mxu0 %v1585
        %1854 = vmatmul.bf16.gmra.mxu0 %v1770
        %v1855 = vpop.f32.mrf.mxu0
        %v1856 = vadd.f32 %v1766, %v1855
        %v1857 = vpop.f32.mrf.mxu0
        %1858 = vdwg.mxu0
        %1859 = vmatpush.bf16.msra.mxu0 0
        %1860 = vmatpush.bf16.msra.mxu0 0
        %1861 = vmatpush.bf16.msra.mxu0 0
        %1862 = vmatpush.bf16.msra.mxu0 %v1785
        %1863 = vmatpush.bf16.msra.mxu0 %v1732
        %1864 = vmatpush.bf16.msra.mxu0 %v1684
        %1865 = vmatpush.bf16.msra.mxu0 %v1636
        %1866 = vmatpush.bf16.msra.mxu0 %v1589
        %1867 = vmatmul.bf16.gmra.mxu0 %v1770
        %v1868 = vpop.f32.mrf.mxu0
        %v1869 = vadd.f32 %v1766, %v1868
        %v1870 = vpop.f32.mrf.mxu0
        %1871 = vdwg.mxu0
        %1872 = vmatpush.bf16.msra.mxu0 0
        %1873 = vmatpush.bf16.msra.mxu0 0
        %1874 = vmatpush.bf16.msra.mxu0 0
        %1875 = vmatpush.bf16.msra.mxu0 %v1788
        %1876 = vmatpush.bf16.msra.mxu0 %v1736
        %1877 = vmatpush.bf16.msra.mxu0 %v1688
        %1878 = vmatpush.bf16.msra.mxu0 %v1640
        %1879 = vmatpush.bf16.msra.mxu0 %v1593
        %1880 = vmatmul.bf16.gmra.mxu0 %v1770
        %v1881 = vpop.f32.mrf.mxu0
        %v1882 = vadd.f32 %v1766, %v1881
        %v1883 = vpop.f32.mrf.mxu0
        %1884 = vdwg.mxu0
        %1885 = vmatpush.bf16.msra.mxu0 0
        %1886 = vmatpush.bf16.msra.mxu0 0
        %1887 = vmatpush.bf16.msra.mxu0 0
        %1888 = vmatpush.bf16.msra.mxu0 %v1791
        %1889 = vmatpush.bf16.msra.mxu0 %v1740
        %1890 = vmatpush.bf16.msra.mxu0 %v1692
        %1891 = vmatpush.bf16.msra.mxu0 %v1644
        %1892 = vmatpush.bf16.msra.mxu0 %v1597
        %1893 = vmatmul.bf16.gmra.mxu0 %v1770
        %v1894 = vpop.f32.mrf.mxu0
        %v1895 = vadd.f32 %v1766, %v1894
        %v1896 = vpop.f32.mrf.mxu0
        %1897 = vdwg.mxu0
        %1898 = vmatpush.bf16.msra.mxu0 0
        %1899 = vmatpush.bf16.msra.mxu0 0
        %1900 = vmatpush.bf16.msra.mxu0 0
        %1901 = vmatpush.bf16.msra.mxu0 %v1794
        %1902 = vmatpush.bf16.msra.mxu0 %v1744
        %1903 = vmatpush.bf16.msra.mxu0 %v1696
        %1904 = vmatpush.bf16.msra.mxu0 %v1648
        %1905 = vmatpush.bf16.msra.mxu0 %v1601
        %1906 = vmatmul.bf16.gmra.mxu0 %v1770
        %v1907 = vpop.f32.mrf.mxu0
        %v1908 = vadd.f32 %v1766, %v1907
        %v1909 = vpop.f32.mrf.mxu0
        %1910 = vdwg.mxu0
        %1911 = vmatpush.bf16.msra.mxu0 0
        %1912 = vmatpush.bf16.msra.mxu0 0
        %1913 = vmatpush.bf16.msra.mxu0 0
        %1914 = vmatpush.bf16.msra.mxu0 %v1797
        %1915 = vmatpush.bf16.msra.mxu0 %v1748
        %1916 = vmatpush.bf16.msra.mxu0 %v1700
        %1917 = vmatpush.bf16.msra.mxu0 %v1652
        %1918 = vmatpush.bf16.msra.mxu0 %v1605
        %1919 = vmatmul.bf16.gmra.mxu0 %v1770
        %v1920 = vpop.f32.mrf.mxu0
        %v1921 = vadd.f32 %v1766, %v1920
        %v1922 = vpop.f32.mrf.mxu0
        %1923 = vdwg.mxu0
        %1924 = vmatpush.bf16.msra.mxu0 0
        %1925 = vmatpush.bf16.msra.mxu0 0
        %1926 = vmatpush.bf16.msra.mxu0 0
        %1927 = vmatpush.bf16.msra.mxu0 %v1800
        %1928 = vmatpush.bf16.msra.mxu0 %v1752
        %1929 = vmatpush.bf16.msra.mxu0 %v1704
        %1930 = vmatpush.bf16.msra.mxu0 %v1656
        %1931 = vmatpush.bf16.msra.mxu0 %v1609
        %1932 = vmatmul.bf16.gmra.mxu0 %v1770
        %v1933 = vpop.f32.mrf.mxu0
        %v1934 = vadd.f32 %v1766, %v1933
        %v1935 = vpop.f32.mrf.mxu0
        %1936 = vdwg.mxu0
        %1937 = vmatpush.bf16.msra.mxu0 0
        %1938 = vmatpush.bf16.msra.mxu0 0
        %1939 = vmatpush.bf16.msra.mxu0 0
        %1940 = vmatpush.bf16.msra.mxu0 %v1803
        %1941 = vmatpush.bf16.msra.mxu0 %v1756
        %1942 = vmatpush.bf16.msra.mxu0 %v1708
        %1943 = vmatpush.bf16.msra.mxu0 %v1660
        %1944 = vmatpush.bf16.msra.mxu0 %v1613
        %1945 = vmatmul.bf16.gmra.mxu0 %v1770
        %v1946 = vpop.f32.mrf.mxu0
        %v1947 = vadd.f32 %v1766, %v1946
        %v1948 = vpop.f32.mrf.mxu0
        %1949 = vdwg.mxu0
        %1950 = vmatpush.bf16.msra.mxu0 0
        %1951 = vmatpush.bf16.msra.mxu0 0
        %1952 = vmatpush.bf16.msra.mxu0 0
        %1953 = vmatpush.bf16.msra.mxu0 %v1805
        %1954 = vmatpush.bf16.msra.mxu0 %v1759
        %1955 = vmatpush.bf16.msra.mxu0 %v1712
        %1956 = vmatpush.bf16.msra.mxu0 %v1664
        %1957 = vmatpush.bf16.msra.mxu0 %v1617
        %1958 = vmatmul.bf16.gmra.mxu0 %v1770
        %v1959 = vpop.f32.mrf.mxu0
        %v1960 = vadd.f32 %v1766, %v1959
        %v1961 = vpop.f32.mrf.mxu0
        %1962 = vdwg.mxu0
        %vm1963 = vcmp.ge.f32.partialorder %v1817, 0.0
        %vm1964 = vcmp.ge.f32.partialorder %v1830, 0.0
        %vm1965 = vcmp.ge.f32.partialorder %v1843, 0.0
        %vm1966 = vcmp.ge.f32.partialorder %v1856, 0.0
        %vm1967 = vcmp.ge.f32.partialorder %v1869, 0.0
        %vm1968 = vcmp.ge.f32.partialorder %v1882, 0.0
        %vm1969 = vcmp.ge.f32.partialorder %v1895, 0.0
        %vm1970 = vcmp.ge.f32.partialorder %v1908, 0.0
        %vm1971 = vcmp.ge.f32.partialorder %v1921, 0.0
        %vm1972 = vcmp.ge.f32.partialorder %v1934, 0.0
        %vm1973 = vcmp.ge.f32.partialorder %v1947, 0.0
        %vm1974 = vcmp.ge.f32.partialorder %v1960, 0.0
        %v1975 = vmul.f32 %v1817, 0.01
        %v1976 = vmul.f32 %v1830, 0.01
        %v1977 = vmul.f32 %v1843, 0.01
        %v1978 = vmul.f32 %v1856, 0.01
        %v1979 = vmul.f32 %v1869, 0.01
        %v1980 = vmul.f32 %v1882, 0.01
        %v1981 = vmul.f32 %v1895, 0.01
        %v1982 = vmul.f32 %v1908, 0.01
        %v1983 = vmul.f32 %v1921, 0.01
        %v1984 = vmul.f32 %v1934, 0.01
        %v1985 = vmul.f32 %v1947, 0.01
        %v1986 = vmul.f32 %v1960, 0.01
        %v1987 = vsel %vm1963, %v1817, %v1975
        %v1988 = vsel %vm1964, %v1830, %v1976
        %v1989 = vsel %vm1965, %v1843, %v1977
        %v1990 = vsel %vm1966, %v1856, %v1978
        %v1991 = vsel %vm1967, %v1869, %v1979
        %v1992 = vsel %vm1968, %v1882, %v1980
        %v1993 = vsel %vm1969, %v1895, %v1981
        %v1994 = vsel %vm1970, %v1908, %v1982
        %v1995 = vsel %vm1971, %v1921, %v1983
        %v1996 = vsel %vm1972, %v1934, %v1984
        %v1997 = vsel %vm1973, %v1947, %v1985
        %v1998 = vsel %vm1974, %v1960, %v1986
        %v1999 = vmul.f32 %v1987, %v1128
        %v2000 = vmul.f32 %v1988, %v1129
        %v2001 = vmul.f32 %v1989, %v1130
        %v2002 = vmul.f32 %v1990, %v1131
        %v2003 = vmul.f32 %v1991, %v1132
        %v2004 = vmul.f32 %v1992, %v1133
        %v2005 = vmul.f32 %v1993, %v1134
        %v2006 = vmul.f32 %v1994, %v1135
        %v2007 = vmul.f32 %v1995, %v1136
        %v2008 = vmul.f32 %v1996, %v1137
        %v2009 = vmul.f32 %v1997, %v1138
        %v2010 = vmul.f32 %v1998, %v1139
        %v2011 = vpack.c.bf16 %v2000, %v1999
        %v2012 = vpack.c.bf16 %v2002, %v2001
        %v2013 = vpack.c.bf16 %v2004, %v2003
        %v2014 = vpack.c.bf16 %v2006, %v2005
        %v2015 = vpack.c.bf16 %v2008, %v2007
        %v2016 = vpack.c.bf16 %v2010, %v2009
        %v2018 = vunpack.c.h.b16 %v2016
        %v2019 = vpack.c.b16 %v2018, %v2018
        %2020 = vrot.lane.b32.xlu0 %v2019, 19
        %v2021 = vpop.permute.xlu0 %2020
        %v2027 = vunpack.c.l.b16 %v2011
        %v2028 = vunpack.c.h.b16 %v2011
        %v2029 = vunpack.c.l.b16 %v2012
        %v2030 = vunpack.c.h.b16 %v2012
        %v2031 = vunpack.c.l.b16 %v2013
        %v2032 = vunpack.c.h.b16 %v2013
        %v2033 = vunpack.c.l.b16 %v2014
        %v2034 = vunpack.c.h.b16 %v2014
        %v2035 = vunpack.c.l.b16 %v2015
        %v2036 = vunpack.c.h.b16 %v2015
        %v2037 = vunpack.c.l.b16 %v2016
        %v2038 = vpack.c.b16 %v2027, %v2027
        %v2039 = vpack.c.b16 %v2028, %v2028
        %v2040 = vpack.c.b16 %v2029, %v2029
        %v2041 = vpack.c.b16 %v2030, %v2030
        %v2042 = vpack.c.b16 %v2031, %v2031
        %v2043 = vpack.c.b16 %v2032, %v2032
        %v2044 = vpack.c.b16 %v2033, %v2033
        %v2045 = vpack.c.b16 %v2034, %v2034
        %v2046 = vpack.c.b16 %v2035, %v2035
        %v2047 = vpack.c.b16 %v2036, %v2036
        %v2048 = vpack.c.b16 %v2037, %v2037
        %2049 = vrot.lane.b32.xlu0 %v2038, 19
        %v2050 = vpop.permute.xlu0 %2049
        %2051 = vrot.lane.b32.xlu0 %v2039, 19
        %v2052 = vpop.permute.xlu0 %2051
        %2053 = vrot.lane.b32.xlu0 %v2040, 19
        %v2054 = vpop.permute.xlu0 %2053
        %2055 = vrot.lane.b32.xlu0 %v2041, 19
        %v2056 = vpop.permute.xlu0 %2055
        %2057 = vrot.lane.b32.xlu0 %v2042, 19
        %v2058 = vpop.permute.xlu0 %2057
        %2059 = vrot.lane.b32.xlu0 %v2043, 19
        %v2060 = vpop.permute.xlu0 %2059
        %2061 = vrot.lane.b32.xlu0 %v2044, 19
        %v2062 = vpop.permute.xlu0 %2061
        %2063 = vrot.lane.b32.xlu0 %v2045, 19
        %v2064 = vpop.permute.xlu0 %2063
        %2065 = vrot.lane.b32.xlu0 %v2046, 19
        %v2066 = vpop.permute.xlu0 %2065
        %2067 = vrot.lane.b32.xlu0 %v2047, 19
        %v2068 = vpop.permute.xlu0 %2067
        %2069 = vrot.lane.b32.xlu0 %v2048, 19
        %v2070 = vpop.permute.xlu0 %2069
        %v2071 = vsel %vm1224, %v2050, %v2052
        %v2072 = vsel %vm1224, %v2052, %v2054
        %v2073 = vsel %vm1224, %v2054, %v2056
        %v2074 = vsel %vm1224, %v2056, %v2058
        %v2075 = vsel %vm1224, %v2058, %v2060
        %v2076 = vsel %vm1224, %v2060, %v2062
        %v2077 = vsel %vm1224, %v2062, %v2064
        %v2078 = vsel %vm1224, %v2064, %v2066
        %v2079 = vsel %vm1224, %v2066, %v2068
        %v2080 = vsel %vm1224, %v2068, %v2070
        %v2081 = vsel %vm1224, %v2070, %v2021
        %v2084 = vsel %vm1236, %v2021, %v2050
        %2085 = vrot.lane.b32.xlu0 %v2019, 18
        %v2086 = vpop.permute.xlu0 %2085
        %2087 = vrot.lane.b32.xlu0 %v2038, 18
        %v2088 = vpop.permute.xlu0 %2087
        %2089 = vrot.lane.b32.xlu0 %v2039, 18
        %v2090 = vpop.permute.xlu0 %2089
        %2091 = vrot.lane.b32.xlu0 %v2040, 18
        %v2092 = vpop.permute.xlu0 %2091
        %2093 = vrot.lane.b32.xlu0 %v2041, 18
        %v2094 = vpop.permute.xlu0 %2093
        %2095 = vrot.lane.b32.xlu0 %v2042, 18
        %v2096 = vpop.permute.xlu0 %2095
        %2097 = vrot.lane.b32.xlu0 %v2043, 18
        %v2098 = vpop.permute.xlu0 %2097
        %2099 = vrot.lane.b32.xlu0 %v2044, 18
        %v2100 = vpop.permute.xlu0 %2099
        %2101 = vrot.lane.b32.xlu0 %v2045, 18
        %v2102 = vpop.permute.xlu0 %2101
        %2103 = vrot.lane.b32.xlu0 %v2046, 18
        %v2104 = vpop.permute.xlu0 %2103
        %2105 = vrot.lane.b32.xlu0 %v2047, 18
        %v2106 = vpop.permute.xlu0 %2105
        %2107 = vrot.lane.b32.xlu0 %v2048, 18
        %v2108 = vpop.permute.xlu0 %2107
        %v2109 = vsel %vm1264, %v2088, %v2090
        %v2110 = vsel %vm1264, %v2090, %v2092
        %v2111 = vsel %vm1264, %v2092, %v2094
        %v2112 = vsel %vm1264, %v2094, %v2096
        %v2113 = vsel %vm1264, %v2096, %v2098
        %v2114 = vsel %vm1264, %v2098, %v2100
        %v2115 = vsel %vm1264, %v2100, %v2102
        %v2116 = vsel %vm1264, %v2102, %v2104
        %v2117 = vsel %vm1264, %v2104, %v2106
        %v2118 = vsel %vm1264, %v2106, %v2108
        %v2119 = vsel %vm1264, %v2108, %v2086
        %v2122 = vsel %vm1276, %v2086, %v2088
        %2123 = vrot.lane.b32.xlu0 %v2019, 17
        %v2124 = vpop.permute.xlu0 %2123
        %2125 = vrot.lane.b32.xlu0 %v2038, 17
        %v2126 = vpop.permute.xlu0 %2125
        %2127 = vrot.lane.b32.xlu0 %v2039, 17
        %v2128 = vpop.permute.xlu0 %2127
        %2129 = vrot.lane.b32.xlu0 %v2040, 17
        %v2130 = vpop.permute.xlu0 %2129
        %2131 = vrot.lane.b32.xlu0 %v2041, 17
        %v2132 = vpop.permute.xlu0 %2131
        %2133 = vrot.lane.b32.xlu0 %v2042, 17
        %v2134 = vpop.permute.xlu0 %2133
        %2135 = vrot.lane.b32.xlu0 %v2043, 17
        %v2136 = vpop.permute.xlu0 %2135
        %2137 = vrot.lane.b32.xlu0 %v2044, 17
        %v2138 = vpop.permute.xlu0 %2137
        %2139 = vrot.lane.b32.xlu0 %v2045, 17
        %v2140 = vpop.permute.xlu0 %2139
        %2141 = vrot.lane.b32.xlu0 %v2046, 17
        %v2142 = vpop.permute.xlu0 %2141
        %2143 = vrot.lane.b32.xlu0 %v2047, 17
        %v2144 = vpop.permute.xlu0 %2143
        %2145 = vrot.lane.b32.xlu0 %v2048, 17
        %v2146 = vpop.permute.xlu0 %2145
        %v2147 = vsel %vm1304, %v2126, %v2128
        %v2148 = vsel %vm1304, %v2128, %v2130
        %v2149 = vsel %vm1304, %v2130, %v2132
        %v2150 = vsel %vm1304, %v2132, %v2134
        %v2151 = vsel %vm1304, %v2134, %v2136
        %v2152 = vsel %vm1304, %v2136, %v2138
        %v2153 = vsel %vm1304, %v2138, %v2140
        %v2154 = vsel %vm1304, %v2140, %v2142
        %v2155 = vsel %vm1304, %v2142, %v2144
        %v2156 = vsel %vm1304, %v2144, %v2146
        %v2157 = vsel %vm1304, %v2146, %v2124
        %v2160 = vsel %vm1316, %v2124, %v2126
        %2161 = vrot.lane.b32.xlu0 %v2019, 1
        %v2162 = vpop.permute.xlu0 %2161
        %2163 = vrot.lane.b32.xlu0 %v2038, 1
        %v2164 = vpop.permute.xlu0 %2163
        %2165 = vrot.lane.b32.xlu0 %v2039, 1
        %v2166 = vpop.permute.xlu0 %2165
        %2167 = vrot.lane.b32.xlu0 %v2040, 1
        %v2168 = vpop.permute.xlu0 %2167
        %2169 = vrot.lane.b32.xlu0 %v2041, 1
        %v2170 = vpop.permute.xlu0 %2169
        %2171 = vrot.lane.b32.xlu0 %v2042, 1
        %v2172 = vpop.permute.xlu0 %2171
        %2173 = vrot.lane.b32.xlu0 %v2043, 1
        %v2174 = vpop.permute.xlu0 %2173
        %2175 = vrot.lane.b32.xlu0 %v2044, 1
        %v2176 = vpop.permute.xlu0 %2175
        %2177 = vrot.lane.b32.xlu0 %v2045, 1
        %v2178 = vpop.permute.xlu0 %2177
        %2179 = vrot.lane.b32.xlu0 %v2046, 1
        %v2180 = vpop.permute.xlu0 %2179
        %2181 = vrot.lane.b32.xlu0 %v2047, 1
        %v2182 = vpop.permute.xlu0 %2181
        %2183 = vrot.lane.b32.xlu0 %v2048, 1
        %v2184 = vpop.permute.xlu0 %2183
        %v2185 = vsel %vm1344, %v2164, %v2166
        %v2186 = vsel %vm1344, %v2166, %v2168
        %v2187 = vsel %vm1344, %v2168, %v2170
        %v2188 = vsel %vm1344, %v2170, %v2172
        %v2189 = vsel %vm1344, %v2172, %v2174
        %v2190 = vsel %vm1344, %v2174, %v2176
        %v2191 = vsel %vm1344, %v2176, %v2178
        %v2192 = vsel %vm1344, %v2178, %v2180
        %v2193 = vsel %vm1344, %v2180, %v2182
        %v2194 = vsel %vm1344, %v2182, %v2184
        %v2195 = vsel %vm1344, %v2184, %v2162
        %v2198 = vsel %vm1356, %v2162, %v2164
        %2199 = vrot.lane.b32.xlu0 %v2038, 127
        %v2200 = vpop.permute.xlu0 %2199
        %2201 = vrot.lane.b32.xlu0 %v2039, 127
        %v2202 = vpop.permute.xlu0 %2201
        %2203 = vrot.lane.b32.xlu0 %v2040, 127
        %v2204 = vpop.permute.xlu0 %2203
        %2205 = vrot.lane.b32.xlu0 %v2041, 127
        %v2206 = vpop.permute.xlu0 %2205
        %2207 = vrot.lane.b32.xlu0 %v2042, 127
        %v2208 = vpop.permute.xlu0 %2207
        %2209 = vrot.lane.b32.xlu0 %v2043, 127
        %v2210 = vpop.permute.xlu0 %2209
        %2211 = vrot.lane.b32.xlu0 %v2044, 127
        %v2212 = vpop.permute.xlu0 %2211
        %2213 = vrot.lane.b32.xlu0 %v2045, 127
        %v2214 = vpop.permute.xlu0 %2213
        %2215 = vrot.lane.b32.xlu0 %v2046, 127
        %v2216 = vpop.permute.xlu0 %2215
        %2217 = vrot.lane.b32.xlu0 %v2047, 127
        %v2218 = vpop.permute.xlu0 %2217
        %2219 = vrot.lane.b32.xlu0 %v2048, 127
        %v2220 = vpop.permute.xlu0 %2219
        %2221 = vrot.lane.b32.xlu0 %v2019, 127
        %v2222 = vpop.permute.xlu0 %2221
        %v2223 = vsel %vm1384, %v2200, %v2202
        %v2224 = vsel %vm1384, %v2202, %v2204
        %v2225 = vsel %vm1384, %v2204, %v2206
        %v2226 = vsel %vm1384, %v2206, %v2208
        %v2227 = vsel %vm1384, %v2208, %v2210
        %v2228 = vsel %vm1384, %v2210, %v2212
        %v2229 = vsel %vm1384, %v2212, %v2214
        %v2230 = vsel %vm1384, %v2214, %v2216
        %v2231 = vsel %vm1384, %v2216, %v2218
        %v2232 = vsel %vm1384, %v2218, %v2220
        %v2233 = vsel %vm1384, %v2220, %v2222
        %v2236 = vsel %vm1396, %v2222, %v2200
        %2237 = vrot.lane.b32.xlu0 %v2038, 111
        %v2238 = vpop.permute.xlu0 %2237
        %2239 = vrot.lane.b32.xlu0 %v2039, 111
        %v2240 = vpop.permute.xlu0 %2239
        %2241 = vrot.lane.b32.xlu0 %v2040, 111
        %v2242 = vpop.permute.xlu0 %2241
        %2243 = vrot.lane.b32.xlu0 %v2041, 111
        %v2244 = vpop.permute.xlu0 %2243
        %2245 = vrot.lane.b32.xlu0 %v2042, 111
        %v2246 = vpop.permute.xlu0 %2245
        %2247 = vrot.lane.b32.xlu0 %v2043, 111
        %v2248 = vpop.permute.xlu0 %2247
        %2249 = vrot.lane.b32.xlu0 %v2044, 111
        %v2250 = vpop.permute.xlu0 %2249
        %2251 = vrot.lane.b32.xlu0 %v2045, 111
        %v2252 = vpop.permute.xlu0 %2251
        %2253 = vrot.lane.b32.xlu0 %v2046, 111
        %v2254 = vpop.permute.xlu0 %2253
        %2255 = vrot.lane.b32.xlu0 %v2047, 111
        %v2256 = vpop.permute.xlu0 %2255
        %2257 = vrot.lane.b32.xlu0 %v2048, 111
        %v2258 = vpop.permute.xlu0 %2257
        %2259 = vrot.lane.b32.xlu0 %v2019, 111
        %v2260 = vpop.permute.xlu0 %2259
        %v2261 = vsel %vm1424, %v2238, %v2240
        %v2262 = vsel %vm1424, %v2240, %v2242
        %v2263 = vsel %vm1424, %v2242, %v2244
        %v2264 = vsel %vm1424, %v2244, %v2246
        %v2265 = vsel %vm1424, %v2246, %v2248
        %v2266 = vsel %vm1424, %v2248, %v2250
        %v2267 = vsel %vm1424, %v2250, %v2252
        %v2268 = vsel %vm1424, %v2252, %v2254
        %v2269 = vsel %vm1424, %v2254, %v2256
        %v2270 = vsel %vm1424, %v2256, %v2258
        %v2271 = vsel %vm1424, %v2258, %v2260
        %v2274 = vsel %vm1436, %v2260, %v2238
        %2275 = vrot.lane.b32.xlu0 %v2038, 110
        %v2276 = vpop.permute.xlu0 %2275
        %2277 = vrot.lane.b32.xlu0 %v2039, 110
        %v2278 = vpop.permute.xlu0 %2277
        %2279 = vrot.lane.b32.xlu0 %v2040, 110
        %v2280 = vpop.permute.xlu0 %2279
        %2281 = vrot.lane.b32.xlu0 %v2041, 110
        %v2282 = vpop.permute.xlu0 %2281
        %2283 = vrot.lane.b32.xlu0 %v2042, 110
        %v2284 = vpop.permute.xlu0 %2283
        %2285 = vrot.lane.b32.xlu0 %v2043, 110
        %v2286 = vpop.permute.xlu0 %2285
        %2287 = vrot.lane.b32.xlu0 %v2044, 110
        %v2288 = vpop.permute.xlu0 %2287
        %2289 = vrot.lane.b32.xlu0 %v2045, 110
        %v2290 = vpop.permute.xlu0 %2289
        %2291 = vrot.lane.b32.xlu0 %v2046, 110
        %v2292 = vpop.permute.xlu0 %2291
        %2293 = vrot.lane.b32.xlu0 %v2047, 110
        %v2294 = vpop.permute.xlu0 %2293
        %2295 = vrot.lane.b32.xlu0 %v2048, 110
        %v2296 = vpop.permute.xlu0 %2295
        %2297 = vrot.lane.b32.xlu0 %v2019, 110
        %v2298 = vpop.permute.xlu0 %2297
        %v2299 = vsel %vm1464, %v2276, %v2278
        %v2300 = vsel %vm1464, %v2278, %v2280
        %v2301 = vsel %vm1464, %v2280, %v2282
        %v2302 = vsel %vm1464, %v2282, %v2284
        %v2303 = vsel %vm1464, %v2284, %v2286
        %v2304 = vsel %vm1464, %v2286, %v2288
        %v2305 = vsel %vm1464, %v2288, %v2290
        %v2306 = vsel %vm1464, %v2290, %v2292
        %v2307 = vsel %vm1464, %v2292, %v2294
        %v2308 = vsel %vm1464, %v2294, %v2296
        %v2309 = vsel %vm1464, %v2296, %v2298
        %v2312 = vsel %vm1476, %v2298, %v2276
        %2313 = vrot.lane.b32.xlu0 %v2038, 109
        %v2314 = vpop.permute.xlu0 %2313
        %2315 = vrot.lane.b32.xlu0 %v2039, 109
        %v2316 = vpop.permute.xlu0 %2315
        %2317 = vrot.lane.b32.xlu0 %v2040, 109
        %v2318 = vpop.permute.xlu0 %2317
        %2319 = vrot.lane.b32.xlu0 %v2041, 109
        %v2320 = vpop.permute.xlu0 %2319
        %2321 = vrot.lane.b32.xlu0 %v2042, 109
        %v2322 = vpop.permute.xlu0 %2321
        %2323 = vrot.lane.b32.xlu0 %v2043, 109
        %v2324 = vpop.permute.xlu0 %2323
        %2325 = vrot.lane.b32.xlu0 %v2044, 109
        %v2326 = vpop.permute.xlu0 %2325
        %2327 = vrot.lane.b32.xlu0 %v2045, 109
        %v2328 = vpop.permute.xlu0 %2327
        %2329 = vrot.lane.b32.xlu0 %v2046, 109
        %v2330 = vpop.permute.xlu0 %2329
        %2331 = vrot.lane.b32.xlu0 %v2047, 109
        %v2332 = vpop.permute.xlu0 %2331
        %2333 = vrot.lane.b32.xlu0 %v2048, 109
        %v2334 = vpop.permute.xlu0 %2333
        %2335 = vrot.lane.b32.xlu0 %v2019, 109
        %v2336 = vpop.permute.xlu0 %2335
        %v2337 = vsel %vm1504, %v2314, %v2316
        %v2338 = vsel %vm1504, %v2316, %v2318
        %v2339 = vsel %vm1504, %v2318, %v2320
        %v2340 = vsel %vm1504, %v2320, %v2322
        %v2341 = vsel %vm1504, %v2322, %v2324
        %v2342 = vsel %vm1504, %v2324, %v2326
        %v2343 = vsel %vm1504, %v2326, %v2328
        %v2344 = vsel %vm1504, %v2328, %v2330
        %v2345 = vsel %vm1504, %v2330, %v2332
        %v2346 = vsel %vm1504, %v2332, %v2334
        %v2347 = vsel %vm1504, %v2334, %v2336
        %v2350 = vsel %vm1516, %v2336, %v2314
        %v2352 = vrot.slane %v2122, 4
        %v2353 = vrot.slane %v2109, 4
        %v2354 = vrot.slane %v2110, 4
        %v2355 = vrot.slane %v2111, 4
        %v2356 = vrot.slane %v2112, 4
        %v2357 = vrot.slane %v2113, 4
        %v2358 = vrot.slane %v2114, 4
        %v2359 = vrot.slane %v2115, 4
        %v2360 = vrot.slane %v2116, 4
        %v2361 = vrot.slane %v2117, 4
        %v2362 = vrot.slane %v2118, 4
        %v2363 = vrot.slane %v2119, 4
        %v2365 = vrot.slane %v2198, 4
        %v2366 = vrot.slane %v2185, 4
        %v2367 = vrot.slane %v2186, 4
        %v2368 = vrot.slane %v2187, 4
        %v2369 = vrot.slane %v2188, 4
        %v2370 = vrot.slane %v2189, 4
        %v2371 = vrot.slane %v2190, 4
        %v2372 = vrot.slane %v2191, 4
        %v2373 = vrot.slane %v2192, 4
        %v2374 = vrot.slane %v2193, 4
        %v2375 = vrot.slane %v2194, 4
        %v2376 = vrot.slane %v2195, 4
        %v2378 = vrot.slane %v2223, 4
        %v2379 = vrot.slane %v2224, 4
        %v2380 = vrot.slane %v2225, 4
        %v2381 = vrot.slane %v2226, 4
        %v2382 = vrot.slane %v2227, 4
        %v2383 = vrot.slane %v2228, 4
        %v2384 = vrot.slane %v2229, 4
        %v2385 = vrot.slane %v2230, 4
        %v2386 = vrot.slane %v2231, 4
        %v2387 = vrot.slane %v2232, 4
        %v2388 = vrot.slane %v2233, 4
        %v2389 = vrot.slane %v2236, 4
        %v2391 = vrot.slane %v2299, 4
        %v2392 = vrot.slane %v2300, 4
        %v2393 = vrot.slane %v2301, 4
        %v2394 = vrot.slane %v2302, 4
        %v2395 = vrot.slane %v2303, 4
        %v2396 = vrot.slane %v2304, 4
        %v2397 = vrot.slane %v2305, 4
        %v2398 = vrot.slane %v2306, 4
        %v2399 = vrot.slane %v2307, 4
        %v2400 = vrot.slane %v2308, 4
        %v2401 = vrot.slane %v2309, 4
        %v2402 = vrot.slane %v2312, 4
        %v2404 = vsel %vm931, %v2084, %v2352
        %v2408 = vsel %vm931, %v2071, %v2353
        %v2412 = vsel %vm931, %v2072, %v2354
        %v2416 = vsel %vm931, %v2073, %v2355
        %v2420 = vsel %vm931, %v2074, %v2356
        %v2424 = vsel %vm931, %v2075, %v2357
        %v2428 = vsel %vm931, %v2076, %v2358
        %v2432 = vsel %vm931, %v2077, %v2359
        %v2436 = vsel %vm931, %v2078, %v2360
        %v2440 = vsel %vm931, %v2079, %v2361
        %v2444 = vsel %vm931, %v2080, %v2362
        %v2448 = vsel %vm931, %v2081, %v2363
        %v2451 = vsel %vm931, %v2160, %v2365
        %v2455 = vsel %vm931, %v2147, %v2366
        %v2459 = vsel %vm931, %v2148, %v2367
        %v2463 = vsel %vm931, %v2149, %v2368
        %v2467 = vsel %vm931, %v2150, %v2369
        %v2471 = vsel %vm931, %v2151, %v2370
        %v2475 = vsel %vm931, %v2152, %v2371
        %v2479 = vsel %vm931, %v2153, %v2372
        %v2483 = vsel %vm931, %v2154, %v2373
        %v2487 = vsel %vm931, %v2155, %v2374
        %v2491 = vsel %vm931, %v2156, %v2375
        %v2495 = vsel %vm931, %v2157, %v2376
        %v2499 = vsel %vm931, %v2038, %v2378
        %v2503 = vsel %vm931, %v2039, %v2379
        %v2507 = vsel %vm931, %v2040, %v2380
        %v2511 = vsel %vm931, %v2041, %v2381
        %v2515 = vsel %vm931, %v2042, %v2382
        %v2519 = vsel %vm931, %v2043, %v2383
        %v2523 = vsel %vm931, %v2044, %v2384
        %v2527 = vsel %vm931, %v2045, %v2385
        %v2531 = vsel %vm931, %v2046, %v2386
        %v2535 = vsel %vm931, %v2047, %v2387
        %v2539 = vsel %vm931, %v2048, %v2388
        %v2543 = vsel %vm931, %v2019, %v2389
        %v2547 = vsel %vm931, %v2261, %v2391
        %v2551 = vsel %vm931, %v2262, %v2392
        %v2555 = vsel %vm931, %v2263, %v2393
        %v2559 = vsel %vm931, %v2264, %v2394
        %v2563 = vsel %vm931, %v2265, %v2395
        %v2567 = vsel %vm931, %v2266, %v2396
        %v2571 = vsel %vm931, %v2267, %v2397
        %v2575 = vsel %vm931, %v2268, %v2398
        %v2579 = vsel %vm931, %v2269, %v2399
        %v2583 = vsel %vm931, %v2270, %v2400
        %v2587 = vsel %vm931, %v2271, %v2401
        %v2590 = vsel %vm931, %v2274, %v2402
        %v2592 = vld [vmem:[#allocation7] sm:$0xf]
        %v2593 = vld [vmem:[%s6] sm:$0xff]
        %2595 = vset.pattern.permute.xlu0 0
        %2596 = vperm.xlu0 %2595, %v2593
        %v2597 = vpop.permute.xlu0 %2596
        %v2600 = vsel %vm1768, %v2592, 0
        %v2603 = vsel %vm931, %v2337, 0
        %v2606 = vsel %vm931, %v2338, 0
        %v2609 = vsel %vm931, %v2339, 0
        %v2612 = vsel %vm931, %v2340, 0
        %v2615 = vsel %vm931, %v2341, 0
        %v2618 = vsel %vm931, %v2342, 0
        %v2621 = vsel %vm931, %v2343, 0
        %v2624 = vsel %vm931, %v2344, 0
        %v2627 = vsel %vm931, %v2345, 0
        %v2630 = vsel %vm931, %v2346, 0
        %v2633 = vsel %vm931, %v2347, 0
        %v2635 = vsel %vm931, %v2350, 0
        %2637 = vmatpush.bf16.msra.mxu0 0
        %2638 = vmatpush.bf16.msra.mxu0 0
        %2639 = vmatpush.bf16.msra.mxu0 0
        %2640 = vmatpush.bf16.msra.mxu0 %v2603
        %2641 = vmatpush.bf16.msra.mxu0 %v2547
        %2642 = vmatpush.bf16.msra.mxu0 %v2499
        %2643 = vmatpush.bf16.msra.mxu0 %v2451
        %2644 = vmatpush.bf16.msra.mxu0 %v2404
        %2645 = vmatmul.bf16.gmra.mxu0 %v2600
        %v2646 = vpop.f32.mrf.mxu0
        %v2647 = vadd.f32 %v2597, %v2646
        %v2648 = vpop.f32.mrf.mxu0
        %2649 = vdwg.mxu0
        %2650 = vmatpush.bf16.msra.mxu0 0
        %2651 = vmatpush.bf16.msra.mxu0 0
        %2652 = vmatpush.bf16.msra.mxu0 0
        %2653 = vmatpush.bf16.msra.mxu0 %v2606
        %2654 = vmatpush.bf16.msra.mxu0 %v2551
        %2655 = vmatpush.bf16.msra.mxu0 %v2503
        %2656 = vmatpush.bf16.msra.mxu0 %v2455
        %2657 = vmatpush.bf16.msra.mxu0 %v2408
        %2658 = vmatmul.bf16.gmra.mxu0 %v2600
        %v2659 = vpop.f32.mrf.mxu0
        %v2660 = vadd.f32 %v2597, %v2659
        %v2661 = vpop.f32.mrf.mxu0
        %2662 = vdwg.mxu0
        %2663 = vmatpush.bf16.msra.mxu0 0
        %2664 = vmatpush.bf16.msra.mxu0 0
        %2665 = vmatpush.bf16.msra.mxu0 0
        %2666 = vmatpush.bf16.msra.mxu0 %v2609
        %2667 = vmatpush.bf16.msra.mxu0 %v2555
        %2668 = vmatpush.bf16.msra.mxu0 %v2507
        %2669 = vmatpush.bf16.msra.mxu0 %v2459
        %2670 = vmatpush.bf16.msra.mxu0 %v2412
        %2671 = vmatmul.bf16.gmra.mxu0 %v2600
        %v2672 = vpop.f32.mrf.mxu0
        %v2673 = vadd.f32 %v2597, %v2672
        %v2674 = vpop.f32.mrf.mxu0
        %2675 = vdwg.mxu0
        %2676 = vmatpush.bf16.msra.mxu0 0
        %2677 = vmatpush.bf16.msra.mxu0 0
        %2678 = vmatpush.bf16.msra.mxu0 0
        %2679 = vmatpush.bf16.msra.mxu0 %v2612
        %2680 = vmatpush.bf16.msra.mxu0 %v2559
        %2681 = vmatpush.bf16.msra.mxu0 %v2511
        %2682 = vmatpush.bf16.msra.mxu0 %v2463
        %2683 = vmatpush.bf16.msra.mxu0 %v2416
        %2684 = vmatmul.bf16.gmra.mxu0 %v2600
        %v2685 = vpop.f32.mrf.mxu0
        %v2686 = vadd.f32 %v2597, %v2685
        %v2687 = vpop.f32.mrf.mxu0
        %2688 = vdwg.mxu0
        %2689 = vmatpush.bf16.msra.mxu0 0
        %2690 = vmatpush.bf16.msra.mxu0 0
        %2691 = vmatpush.bf16.msra.mxu0 0
        %2692 = vmatpush.bf16.msra.mxu0 %v2615
        %2693 = vmatpush.bf16.msra.mxu0 %v2563
        %2694 = vmatpush.bf16.msra.mxu0 %v2515
        %2695 = vmatpush.bf16.msra.mxu0 %v2467
        %2696 = vmatpush.bf16.msra.mxu0 %v2420
        %2697 = vmatmul.bf16.gmra.mxu0 %v2600
        %v2698 = vpop.f32.mrf.mxu0
        %v2699 = vadd.f32 %v2597, %v2698
        %v2700 = vpop.f32.mrf.mxu0
        %2701 = vdwg.mxu0
        %2702 = vmatpush.bf16.msra.mxu0 0
        %2703 = vmatpush.bf16.msra.mxu0 0
        %2704 = vmatpush.bf16.msra.mxu0 0
        %2705 = vmatpush.bf16.msra.mxu0 %v2618
        %2706 = vmatpush.bf16.msra.mxu0 %v2567
        %2707 = vmatpush.bf16.msra.mxu0 %v2519
        %2708 = vmatpush.bf16.msra.mxu0 %v2471
        %2709 = vmatpush.bf16.msra.mxu0 %v2424
        %2710 = vmatmul.bf16.gmra.mxu0 %v2600
        %v2711 = vpop.f32.mrf.mxu0
        %v2712 = vadd.f32 %v2597, %v2711
        %v2713 = vpop.f32.mrf.mxu0
        %2714 = vdwg.mxu0
        %2715 = vmatpush.bf16.msra.mxu0 0
        %2716 = vmatpush.bf16.msra.mxu0 0
        %2717 = vmatpush.bf16.msra.mxu0 0
        %2718 = vmatpush.bf16.msra.mxu0 %v2621
        %2719 = vmatpush.bf16.msra.mxu0 %v2571
        %2720 = vmatpush.bf16.msra.mxu0 %v2523
        %2721 = vmatpush.bf16.msra.mxu0 %v2475
        %2722 = vmatpush.bf16.msra.mxu0 %v2428
        %2723 = vmatmul.bf16.gmra.mxu0 %v2600
        %v2724 = vpop.f32.mrf.mxu0
        %v2725 = vadd.f32 %v2597, %v2724
        %v2726 = vpop.f32.mrf.mxu0
        %2727 = vdwg.mxu0
        %2728 = vmatpush.bf16.msra.mxu0 0
        %2729 = vmatpush.bf16.msra.mxu0 0
        %2730 = vmatpush.bf16.msra.mxu0 0
        %2731 = vmatpush.bf16.msra.mxu0 %v2624
        %2732 = vmatpush.bf16.msra.mxu0 %v2575
        %2733 = vmatpush.bf16.msra.mxu0 %v2527
        %2734 = vmatpush.bf16.msra.mxu0 %v2479
        %2735 = vmatpush.bf16.msra.mxu0 %v2432
        %2736 = vmatmul.bf16.gmra.mxu0 %v2600
        %v2737 = vpop.f32.mrf.mxu0
        %v2738 = vadd.f32 %v2597, %v2737
        %v2739 = vpop.f32.mrf.mxu0
        %2740 = vdwg.mxu0
        %2741 = vmatpush.bf16.msra.mxu0 0
        %2742 = vmatpush.bf16.msra.mxu0 0
        %2743 = vmatpush.bf16.msra.mxu0 0
        %2744 = vmatpush.bf16.msra.mxu0 %v2627
        %2745 = vmatpush.bf16.msra.mxu0 %v2579
        %2746 = vmatpush.bf16.msra.mxu0 %v2531
        %2747 = vmatpush.bf16.msra.mxu0 %v2483
        %2748 = vmatpush.bf16.msra.mxu0 %v2436
        %2749 = vmatmul.bf16.gmra.mxu0 %v2600
        %v2750 = vpop.f32.mrf.mxu0
        %v2751 = vadd.f32 %v2597, %v2750
        %v2752 = vpop.f32.mrf.mxu0
        %2753 = vdwg.mxu0
        %2754 = vmatpush.bf16.msra.mxu0 0
        %2755 = vmatpush.bf16.msra.mxu0 0
        %2756 = vmatpush.bf16.msra.mxu0 0
        %2757 = vmatpush.bf16.msra.mxu0 %v2630
        %2758 = vmatpush.bf16.msra.mxu0 %v2583
        %2759 = vmatpush.bf16.msra.mxu0 %v2535
        %2760 = vmatpush.bf16.msra.mxu0 %v2487
        %2761 = vmatpush.bf16.msra.mxu0 %v2440
        %2762 = vmatmul.bf16.gmra.mxu0 %v2600
        %v2763 = vpop.f32.mrf.mxu0
        %v2764 = vadd.f32 %v2597, %v2763
        %v2765 = vpop.f32.mrf.mxu0
        %2766 = vdwg.mxu0
        %2767 = vmatpush.bf16.msra.mxu0 0
        %2768 = vmatpush.bf16.msra.mxu0 0
        %2769 = vmatpush.bf16.msra.mxu0 0
        %2770 = vmatpush.bf16.msra.mxu0 %v2633
        %2771 = vmatpush.bf16.msra.mxu0 %v2587
        %2772 = vmatpush.bf16.msra.mxu0 %v2539
        %2773 = vmatpush.bf16.msra.mxu0 %v2491
        %2774 = vmatpush.bf16.msra.mxu0 %v2444
        %2775 = vmatmul.bf16.gmra.mxu0 %v2600
        %v2776 = vpop.f32.mrf.mxu0
        %v2777 = vadd.f32 %v2597, %v2776
        %v2778 = vpop.f32.mrf.mxu0
        %2779 = vdwg.mxu0
        %2780 = vmatpush.bf16.msra.mxu0 0
        %2781 = vmatpush.bf16.msra.mxu0 0
        %2782 = vmatpush.bf16.msra.mxu0 0
        %2783 = vmatpush.bf16.msra.mxu0 %v2635
        %2784 = vmatpush.bf16.msra.mxu0 %v2590
        %2785 = vmatpush.bf16.msra.mxu0 %v2543
        %2786 = vmatpush.bf16.msra.mxu0 %v2495
        %2787 = vmatpush.bf16.msra.mxu0 %v2448
        %2788 = vmatmul.bf16.gmra.mxu0 %v2600
        %v2789 = vpop.f32.mrf.mxu0
        %v2790 = vadd.f32 %v2597, %v2789
        %v2791 = vpop.f32.mrf.mxu0
        %2792 = vdwg.mxu0
        %vm2793 = vcmp.ge.f32.partialorder %v2647, 0.0
        %vm2794 = vcmp.ge.f32.partialorder %v2660, 0.0
        %vm2795 = vcmp.ge.f32.partialorder %v2673, 0.0
        %vm2796 = vcmp.ge.f32.partialorder %v2686, 0.0
        %vm2797 = vcmp.ge.f32.partialorder %v2699, 0.0
        %vm2798 = vcmp.ge.f32.partialorder %v2712, 0.0
        %vm2799 = vcmp.ge.f32.partialorder %v2725, 0.0
        %vm2800 = vcmp.ge.f32.partialorder %v2738, 0.0
        %vm2801 = vcmp.ge.f32.partialorder %v2751, 0.0
        %vm2802 = vcmp.ge.f32.partialorder %v2764, 0.0
        %vm2803 = vcmp.ge.f32.partialorder %v2777, 0.0
        %vm2804 = vcmp.ge.f32.partialorder %v2790, 0.0
        %v2805 = vmul.f32 %v2647, 0.01
        %v2806 = vmul.f32 %v2660, 0.01
        %v2807 = vmul.f32 %v2673, 0.01
        %v2808 = vmul.f32 %v2686, 0.01
        %v2809 = vmul.f32 %v2699, 0.01
        %v2810 = vmul.f32 %v2712, 0.01
        %v2811 = vmul.f32 %v2725, 0.01
        %v2812 = vmul.f32 %v2738, 0.01
        %v2813 = vmul.f32 %v2751, 0.01
        %v2814 = vmul.f32 %v2764, 0.01
        %v2815 = vmul.f32 %v2777, 0.01
        %v2816 = vmul.f32 %v2790, 0.01
        %v2817 = vsel %vm2793, %v2647, %v2805
        %v2818 = vsel %vm2794, %v2660, %v2806
        %v2819 = vsel %vm2795, %v2673, %v2807
        %v2820 = vsel %vm2796, %v2686, %v2808
        %v2821 = vsel %vm2797, %v2699, %v2809
        %v2822 = vsel %vm2798, %v2712, %v2810
        %v2823 = vsel %vm2799, %v2725, %v2811
        %v2824 = vsel %vm2800, %v2738, %v2812
        %v2825 = vsel %vm2801, %v2751, %v2813
        %v2826 = vsel %vm2802, %v2764, %v2814
        %v2827 = vsel %vm2803, %v2777, %v2815
        %v2828 = vsel %vm2804, %v2790, %v2816
        %v2829 = vmul.f32 %v2817, %v1128
        %v2830 = vmul.f32 %v2818, %v1129
        %v2831 = vmul.f32 %v2819, %v1130
        %v2832 = vmul.f32 %v2820, %v1131
        %v2833 = vmul.f32 %v2821, %v1132
        %v2834 = vmul.f32 %v2822, %v1133
        %v2835 = vmul.f32 %v2823, %v1134
        %v2836 = vmul.f32 %v2824, %v1135
        %v2837 = vmul.f32 %v2825, %v1136
        %v2838 = vmul.f32 %v2826, %v1137
        %v2839 = vmul.f32 %v2827, %v1138
        %v2840 = vmul.f32 %v2828, %v1139
        %v2841 = vld [vmem:[#allocation8] sm:$0xf]
        %v2842 = vld [vmem:[#allocation8 + $0x4] sm:$0xf]
        %v2843 = vld [vmem:[#allocation8 + $0x8] sm:$0xf]
        %v2844 = vld [vmem:[#allocation8 + $0xc] sm:$0xf]
        %v2845 = vld [vmem:[#allocation8 + $0x10] sm:$0xf]
        %v2846 = vld [vmem:[#allocation8 + $0x14] sm:$0xf]
        %v2847 = vld [vmem:[#allocation8 + $0x18] sm:$0xf]
        %v2848 = vld [vmem:[#allocation8 + $0x1c] sm:$0xf]
        %v2849 = vld [vmem:[#allocation8 + $0x20] sm:$0xf]
        %v2850 = vld [vmem:[#allocation8 + $0x24] sm:$0xf]
        %v2851 = vld [vmem:[#allocation8 + $0x28] sm:$0xf]
        %v2852 = vld [vmem:[#allocation8 + $0x2c] sm:$0xf]
        %v2853 = vld [vmem:[#allocation8 + $0x30] sm:$0xf]
        %v2854 = vld [vmem:[#allocation8 + $0x34] sm:$0xf]
        %v2855 = vld [vmem:[#allocation8 + $0x38] sm:$0xf]
        %v2856 = vld [vmem:[#allocation8 + $0x3c] sm:$0xf]
        %v2857 = vld [vmem:[#allocation8 + $0x40] sm:$0xf]
        %v2858 = vld [vmem:[#allocation8 + $0x44] sm:$0xf]
        %v2859 = vld [vmem:[#allocation8 + $0x48] sm:$0xf]
        %v2860 = vld [vmem:[#allocation8 + $0x4c] sm:$0xf]
        %v2861 = vld [vmem:[#allocation8 + $0x50] sm:$0xf]
        %v2862 = vld [vmem:[#allocation8 + $0x54] sm:$0xf]
        %v2863 = vld [vmem:[#allocation8 + $0x58] sm:$0xf]
        %v2864 = vld [vmem:[#allocation8 + $0x5c] sm:$0xf]
        %v2865 = vld [vmem:[#allocation8 + $0x60] sm:$0xf]
        %v2866 = vld [vmem:[#allocation8 + $0x64] sm:$0xf]
        %v2867 = vld [vmem:[#allocation8 + $0x68] sm:$0xf]
        %v2868 = vld [vmem:[#allocation8 + $0x6c] sm:$0xf]
        %v2869 = vld [vmem:[#allocation8 + $0x70] sm:$0xf]
        %v2870 = vld [vmem:[#allocation8 + $0x74] sm:$0xf]
        %v2871 = vld [vmem:[#allocation8 + $0x78] sm:$0xf]
        %v2872 = vld [vmem:[#allocation8 + $0x7c] sm:$0xf]
        %v2873 = vld [vmem:[#allocation8 + $0x80] sm:$0xf]
        %v2874 = vld [vmem:[#allocation8 + $0x84] sm:$0xf]
        %v2875 = vld [vmem:[#allocation8 + $0x88] sm:$0xf]
        %v2876 = vld [vmem:[#allocation8 + $0x8c] sm:$0xf]
        %v2877 = vld [vmem:[#allocation8 + $0x90] sm:$0xf]
        %v2878 = vld [vmem:[#allocation8 + $0x94] sm:$0xf]
        %v2879 = vld [vmem:[#allocation8 + $0x98] sm:$0xf]
        %v2880 = vld [vmem:[#allocation8 + $0x9c] sm:$0xf]
        %v2881 = vld [vmem:[#allocation8 + $0xa0] sm:$0xf]
        %v2882 = vld [vmem:[#allocation8 + $0xa4] sm:$0xf]
        %v2883 = vld [vmem:[#allocation8 + $0xa8] sm:$0xf]
        %v2884 = vld [vmem:[#allocation8 + $0xac] sm:$0xf]
        %v2885 = vld [vmem:[#allocation8 + $0xb0] sm:$0xf]
        %v2886 = vld [vmem:[#allocation8 + $0xb4] sm:$0xf]
        %v2887 = vld [vmem:[#allocation8 + $0xb8] sm:$0xf]
        %v2888 = vld [vmem:[#allocation8 + $0xbc] sm:$0xf]
        %v2889 = vpack.c.bf16 %v2829, %v2829
        %v2890 = vpack.c.bf16 %v2830, %v2830
        %v2891 = vpack.c.bf16 %v2831, %v2831
        %v2940 = vunpack.c.l.b16 %v2841
        %v2941 = vunpack.c.l.b16 %v2842
        %v2942 = vunpack.c.l.b16 %v2843
        %v2943 = vunpack.c.l.b16 %v2844
        %v2944 = vunpack.c.l.b16 %v2845
        %v2945 = vunpack.c.l.b16 %v2846
        %v2946 = vunpack.c.l.b16 %v2847
        %v2947 = vunpack.c.l.b16 %v2848
        %v2948 = vunpack.c.l.b16 %v2849
        %v2949 = vunpack.c.l.b16 %v2850
        %v2950 = vunpack.c.l.b16 %v2851
        %v2951 = vunpack.c.l.b16 %v2852
        %v2952 = vunpack.c.l.b16 %v2853
        %v2953 = vunpack.c.l.b16 %v2854
        %v2954 = vunpack.c.l.b16 %v2855
        %v2955 = vunpack.c.l.b16 %v2856
        %v2956 = vunpack.c.l.b16 %v2857
        %v2957 = vunpack.c.l.b16 %v2858
        %v2958 = vunpack.c.l.b16 %v2859
        %v2959 = vunpack.c.l.b16 %v2860
        %v2960 = vunpack.c.l.b16 %v2861
        %v2961 = vunpack.c.l.b16 %v2862
        %v2962 = vunpack.c.l.b16 %v2863
        %v2963 = vunpack.c.l.b16 %v2864
        %v2964 = vunpack.c.l.b16 %v2865
        %v2965 = vunpack.c.l.b16 %v2866
        %v2966 = vunpack.c.l.b16 %v2867
        %v2967 = vunpack.c.l.b16 %v2868
        %v2968 = vunpack.c.l.b16 %v2869
        %v2969 = vunpack.c.l.b16 %v2870
        %v2970 = vunpack.c.l.b16 %v2871
        %v2971 = vunpack.c.l.b16 %v2872
        %v2972 = vunpack.c.l.b16 %v2873
        %v2973 = vunpack.c.l.b16 %v2874
        %v2974 = vunpack.c.l.b16 %v2875
        %v2975 = vunpack.c.l.b16 %v2876
        %v2976 = vunpack.c.l.b16 %v2877
        %v2977 = vunpack.c.l.b16 %v2878
        %v2978 = vunpack.c.l.b16 %v2879
        %v2979 = vunpack.c.l.b16 %v2880
        %v2980 = vunpack.c.l.b16 %v2881
        %v2981 = vunpack.c.l.b16 %v2882
        %v2982 = vunpack.c.l.b16 %v2883
        %v2983 = vunpack.c.l.b16 %v2884
        %v2984 = vunpack.c.l.b16 %v2885
        %v2985 = vunpack.c.l.b16 %v2886
        %v2986 = vunpack.c.l.b16 %v2887
        %v2987 = vunpack.c.l.b16 %v2888
        %v2988 = vpack.c.b16 %v2941, %v2940
        %v2989 = vpack.c.b16 %v2943, %v2942
        %v2990 = vpack.c.b16 %v2945, %v2944
        %v2991 = vpack.c.b16 %v2947, %v2946
        %v2992 = vpack.c.b16 %v2949, %v2948
        %v2993 = vpack.c.b16 %v2951, %v2950
        %v2994 = vpack.c.b16 %v2953, %v2952
        %v2995 = vpack.c.b16 %v2955, %v2954
        %v2996 = vpack.c.b16 %v2957, %v2956
        %v2997 = vpack.c.b16 %v2959, %v2958
        %v2998 = vpack.c.b16 %v2961, %v2960
        %v2999 = vpack.c.b16 %v2963, %v2962
        %v3000 = vpack.c.b16 %v2965, %v2964
        %v3001 = vpack.c.b16 %v2967, %v2966
        %v3002 = vpack.c.b16 %v2969, %v2968
        %v3003 = vpack.c.b16 %v2971, %v2970
        %v3004 = vpack.c.b16 %v2973, %v2972
        %v3005 = vpack.c.b16 %v2975, %v2974
        %v3006 = vpack.c.b16 %v2977, %v2976
        %v3007 = vpack.c.b16 %v2979, %v2978
        %v3008 = vpack.c.b16 %v2981, %v2980
        %v3009 = vpack.c.b16 %v2983, %v2982
        %v3010 = vpack.c.b16 %v2985, %v2984
        %v3011 = vpack.c.b16 %v2987, %v2986
        %3036 = vmatpush.bf16.msra.mxu0 %v2995
        %3037 = vmatpush.bf16.msra.mxu0 %v2994
        %3038 = vmatpush.bf16.msra.mxu0 %v2993
        %3039 = vmatpush.bf16.msra.mxu0 %v2992
        %3040 = vmatpush.bf16.msra.mxu0 %v2991
        %3041 = vmatpush.bf16.msra.mxu0 %v2990
        %3042 = vmatpush.bf16.msra.mxu0 %v2989
        %3043 = vmatpush.bf16.msra.mxu0 %v2988
        %3044 = vmatmul.bf16.gmra.mxu0 %v2889
        %v3045 = vpop.f32.mrf.mxu0
        %v3046 = vadd.f32 0.0, %v3045
        %v3047 = vpop.f32.mrf.mxu0
        %3048 = vdwg.mxu0
        %3049 = vmatpush.bf16.msra.mxu0 %v3003
        %3050 = vmatpush.bf16.msra.mxu0 %v3002
        %3051 = vmatpush.bf16.msra.mxu0 %v3001
        %3052 = vmatpush.bf16.msra.mxu0 %v3000
        %3053 = vmatpush.bf16.msra.mxu0 %v2999
        %3054 = vmatpush.bf16.msra.mxu0 %v2998
        %3055 = vmatpush.bf16.msra.mxu0 %v2997
        %3056 = vmatpush.bf16.msra.mxu0 %v2996
        %3057 = vmatmul.bf16.gmra.mxu0 %v2890
        %v3058 = vpop.f32.mrf.mxu0
        %v3059 = vadd.f32 %v3046, %v3058
        %v3060 = vpop.f32.mrf.mxu0
        %3061 = vdwg.mxu0
        %3062 = vmatpush.bf16.msra.mxu0 %v3011
        %3063 = vmatpush.bf16.msra.mxu0 %v3010
        %3064 = vmatpush.bf16.msra.mxu0 %v3009
        %3065 = vmatpush.bf16.msra.mxu0 %v3008
        %3066 = vmatpush.bf16.msra.mxu0 %v3007
        %3067 = vmatpush.bf16.msra.mxu0 %v3006
        %3068 = vmatpush.bf16.msra.mxu0 %v3005
        %3069 = vmatpush.bf16.msra.mxu0 %v3004
        %3070 = vmatmul.bf16.gmra.mxu0 %v2891
        %v3071 = vpop.f32.mrf.mxu0
        %v3072 = vadd.f32 %v3059, %v3071
        %v3073 = vpop.f32.mrf.mxu0
        %3074 = vdwg.mxu0
        %v3075 = vpack.c.bf16 %v2832, %v2832
        %v3076 = vpack.c.bf16 %v2833, %v2833
        %v3077 = vpack.c.bf16 %v2834, %v2834
        %3078 = vmatpush.bf16.msra.mxu0 %v2995
        %3079 = vmatpush.bf16.msra.mxu0 %v2994
        %3080 = vmatpush.bf16.msra.mxu0 %v2993
        %3081 = vmatpush.bf16.msra.mxu0 %v2992
        %3082 = vmatpush.bf16.msra.mxu0 %v2991
        %3083 = vmatpush.bf16.msra.mxu0 %v2990
        %3084 = vmatpush.bf16.msra.mxu0 %v2989
        %3085 = vmatpush.bf16.msra.mxu0 %v2988
        %3086 = vmatmul.bf16.gmra.mxu0 %v3075
        %v3087 = vpop.f32.mrf.mxu0
        %v3088 = vadd.f32 0.0, %v3087
        %v3089 = vpop.f32.mrf.mxu0
        %3090 = vdwg.mxu0
        %3091 = vmatpush.bf16.msra.mxu0 %v3003
        %3092 = vmatpush.bf16.msra.mxu0 %v3002
        %3093 = vmatpush.bf16.msra.mxu0 %v3001
        %3094 = vmatpush.bf16.msra.mxu0 %v3000
        %3095 = vmatpush.bf16.msra.mxu0 %v2999
        %3096 = vmatpush.bf16.msra.mxu0 %v2998
        %3097 = vmatpush.bf16.msra.mxu0 %v2997
        %3098 = vmatpush.bf16.msra.mxu0 %v2996
        %3099 = vmatmul.bf16.gmra.mxu0 %v3076
        %v3100 = vpop.f32.mrf.mxu0
        %v3101 = vadd.f32 %v3088, %v3100
        %v3102 = vpop.f32.mrf.mxu0
        %3103 = vdwg.mxu0
        %3104 = vmatpush.bf16.msra.mxu0 %v3011
        %3105 = vmatpush.bf16.msra.mxu0 %v3010
        %3106 = vmatpush.bf16.msra.mxu0 %v3009
        %3107 = vmatpush.bf16.msra.mxu0 %v3008
        %3108 = vmatpush.bf16.msra.mxu0 %v3007
        %3109 = vmatpush.bf16.msra.mxu0 %v3006
        %3110 = vmatpush.bf16.msra.mxu0 %v3005
        %3111 = vmatpush.bf16.msra.mxu0 %v3004
        %3112 = vmatmul.bf16.gmra.mxu0 %v3077
        %v3113 = vpop.f32.mrf.mxu0
        %v3114 = vadd.f32 %v3101, %v3113
        %v3115 = vpop.f32.mrf.mxu0
        %3116 = vdwg.mxu0
        %v3117 = vpack.c.bf16 %v2835, %v2835
        %v3118 = vpack.c.bf16 %v2836, %v2836
        %v3119 = vpack.c.bf16 %v2837, %v2837
        %3120 = vmatpush.bf16.msra.mxu0 %v2995
        %3121 = vmatpush.bf16.msra.mxu0 %v2994
        %3122 = vmatpush.bf16.msra.mxu0 %v2993
        %3123 = vmatpush.bf16.msra.mxu0 %v2992
        %3124 = vmatpush.bf16.msra.mxu0 %v2991
        %3125 = vmatpush.bf16.msra.mxu0 %v2990
        %3126 = vmatpush.bf16.msra.mxu0 %v2989
        %3127 = vmatpush.bf16.msra.mxu0 %v2988
        %3128 = vmatmul.bf16.gmra.mxu0 %v3117
        %v3129 = vpop.f32.mrf.mxu0
        %v3130 = vadd.f32 0.0, %v3129
        %v3131 = vpop.f32.mrf.mxu0
        %3132 = vdwg.mxu0
        %3133 = vmatpush.bf16.msra.mxu0 %v3003
        %3134 = vmatpush.bf16.msra.mxu0 %v3002
        %3135 = vmatpush.bf16.msra.mxu0 %v3001
        %3136 = vmatpush.bf16.msra.mxu0 %v3000
        %3137 = vmatpush.bf16.msra.mxu0 %v2999
        %3138 = vmatpush.bf16.msra.mxu0 %v2998
        %3139 = vmatpush.bf16.msra.mxu0 %v2997
        %3140 = vmatpush.bf16.msra.mxu0 %v2996
        %3141 = vmatmul.bf16.gmra.mxu0 %v3118
        %v3142 = vpop.f32.mrf.mxu0
        %v3143 = vadd.f32 %v3130, %v3142
        %v3144 = vpop.f32.mrf.mxu0
        %3145 = vdwg.mxu0
        %3146 = vmatpush.bf16.msra.mxu0 %v3011
        %3147 = vmatpush.bf16.msra.mxu0 %v3010
        %3148 = vmatpush.bf16.msra.mxu0 %v3009
        %3149 = vmatpush.bf16.msra.mxu0 %v3008
        %3150 = vmatpush.bf16.msra.mxu0 %v3007
        %3151 = vmatpush.bf16.msra.mxu0 %v3006
        %3152 = vmatpush.bf16.msra.mxu0 %v3005
        %3153 = vmatpush.bf16.msra.mxu0 %v3004
        %3154 = vmatmul.bf16.gmra.mxu0 %v3119
        %v3155 = vpop.f32.mrf.mxu0
        %v3156 = vadd.f32 %v3143, %v3155
        %v3157 = vpop.f32.mrf.mxu0
        %3158 = vdwg.mxu0
        %v3159 = vpack.c.bf16 %v2838, %v2838
        %v3160 = vpack.c.bf16 %v2839, %v2839
        %v3161 = vpack.c.bf16 %v2840, %v2840
        %3162 = vmatpush.bf16.msra.mxu0 %v2995
        %3163 = vmatpush.bf16.msra.mxu0 %v2994
        %3164 = vmatpush.bf16.msra.mxu0 %v2993
        %3165 = vmatpush.bf16.msra.mxu0 %v2992
        %3166 = vmatpush.bf16.msra.mxu0 %v2991
        %3167 = vmatpush.bf16.msra.mxu0 %v2990
        %3168 = vmatpush.bf16.msra.mxu0 %v2989
        %3169 = vmatpush.bf16.msra.mxu0 %v2988
        %3170 = vmatmul.bf16.gmra.mxu0 %v3159
        %v3171 = vpop.f32.mrf.mxu0
        %v3172 = vadd.f32 0.0, %v3171
        %v3173 = vpop.f32.mrf.mxu0
        %3174 = vdwg.mxu0
        %3175 = vmatpush.bf16.msra.mxu0 %v3003
        %3176 = vmatpush.bf16.msra.mxu0 %v3002
        %3177 = vmatpush.bf16.msra.mxu0 %v3001
        %3178 = vmatpush.bf16.msra.mxu0 %v3000
        %3179 = vmatpush.bf16.msra.mxu0 %v2999
        %3180 = vmatpush.bf16.msra.mxu0 %v2998
        %3181 = vmatpush.bf16.msra.mxu0 %v2997
        %3182 = vmatpush.bf16.msra.mxu0 %v2996
        %3183 = vmatmul.bf16.gmra.mxu0 %v3160
        %v3184 = vpop.f32.mrf.mxu0
        %v3185 = vadd.f32 %v3172, %v3184
        %v3186 = vpop.f32.mrf.mxu0
        %3187 = vdwg.mxu0
        %3188 = vmatpush.bf16.msra.mxu0 %v3011
        %3189 = vmatpush.bf16.msra.mxu0 %v3010
        %3190 = vmatpush.bf16.msra.mxu0 %v3009
        %3191 = vmatpush.bf16.msra.mxu0 %v3008
        %3192 = vmatpush.bf16.msra.mxu0 %v3007
        %3193 = vmatpush.bf16.msra.mxu0 %v3006
        %3194 = vmatpush.bf16.msra.mxu0 %v3005
        %3195 = vmatpush.bf16.msra.mxu0 %v3004
        %3196 = vmatmul.bf16.gmra.mxu0 %v3161
        %v3197 = vpop.f32.mrf.mxu0
        %v3198 = vadd.f32 %v3185, %v3197
        %v3199 = vpop.f32.mrf.mxu0
        %3200 = vdwg.mxu0
        %v3201 = vpack.c.bf16 %v3114, %v3072
        %v3202 = vpack.c.bf16 %v3198, %v3156
        %v3204 = vunpack.c.h.b16 %v3202
        %v3205 = vpack.c.b16 %v3204, %v3204
        %3206 = vrot.lane.b32.xlu0 %v3205, 11
        %v3207 = vpop.permute.xlu0 %3206
        %v3209 = vunpack.c.l.b16 %v3201
        %v3210 = vunpack.c.h.b16 %v3201
        %v3211 = vunpack.c.l.b16 %v3202
        %v3212 = vpack.c.b16 %v3209, %v3209
        %v3213 = vpack.c.b16 %v3210, %v3210
        %v3214 = vpack.c.b16 %v3211, %v3211
        %3215 = vrot.lane.b32.xlu0 %v3212, 11
        %v3216 = vpop.permute.xlu0 %3215
        %3217 = vrot.lane.b32.xlu0 %v3213, 11
        %v3218 = vpop.permute.xlu0 %3217
        %3219 = vrot.lane.b32.xlu0 %v3214, 11
        %v3220 = vpop.permute.xlu0 %3219
        %vm3221 = vcmask 89088
        %v3222 = vsel %vm3221, %v3216, %v3218
        %v3223 = vsel %vm3221, %v3218, %v3220
        %v3224 = vsel %vm3221, %v3220, %v3207
        %vm3225 = vcmask 89088
        %v3228 = vsel %vm3225, %v3207, %v3216
        %3229 = vrot.lane.b32.xlu0 %v3205, 10
        %v3230 = vpop.permute.xlu0 %3229
        %3231 = vrot.lane.b32.xlu0 %v3212, 10
        %v3232 = vpop.permute.xlu0 %3231
        %3233 = vrot.lane.b32.xlu0 %v3213, 10
        %v3234 = vpop.permute.xlu0 %3233
        %3235 = vrot.lane.b32.xlu0 %v3214, 10
        %v3236 = vpop.permute.xlu0 %3235
        %vm3237 = vcmask 80896
        %v3238 = vsel %vm3237, %v3232, %v3234
        %v3239 = vsel %vm3237, %v3234, %v3236
        %v3240 = vsel %vm3237, %v3236, %v3230
        %vm3241 = vcmask 80896
        %v3244 = vsel %vm3241, %v3230, %v3232
        %3245 = vrot.lane.b32.xlu0 %v3205, 9
        %v3246 = vpop.permute.xlu0 %3245
        %3247 = vrot.lane.b32.xlu0 %v3212, 9
        %v3248 = vpop.permute.xlu0 %3247
        %3249 = vrot.lane.b32.xlu0 %v3213, 9
        %v3250 = vpop.permute.xlu0 %3249
        %3251 = vrot.lane.b32.xlu0 %v3214, 9
        %v3252 = vpop.permute.xlu0 %3251
        %vm3253 = vcmask 72704
        %v3254 = vsel %vm3253, %v3248, %v3250
        %v3255 = vsel %vm3253, %v3250, %v3252
        %v3256 = vsel %vm3253, %v3252, %v3246
        %vm3257 = vcmask 72704
        %v3260 = vsel %vm3257, %v3246, %v3248
        %3261 = vrot.lane.b32.xlu0 %v3205, 1
        %v3262 = vpop.permute.xlu0 %3261
        %3263 = vrot.lane.b32.xlu0 %v3212, 1
        %v3264 = vpop.permute.xlu0 %3263
        %3265 = vrot.lane.b32.xlu0 %v3213, 1
        %v3266 = vpop.permute.xlu0 %3265
        %3267 = vrot.lane.b32.xlu0 %v3214, 1
        %v3268 = vpop.permute.xlu0 %3267
        %v3269 = vsel %vm1344, %v3264, %v3266
        %v3270 = vsel %vm1344, %v3266, %v3268
        %v3271 = vsel %vm1344, %v3268, %v3262
        %v3274 = vsel %vm1356, %v3262, %v3264
        %3275 = vrot.lane.b32.xlu0 %v3212, 127
        %v3276 = vpop.permute.xlu0 %3275
        %3277 = vrot.lane.b32.xlu0 %v3213, 127
        %v3278 = vpop.permute.xlu0 %3277
        %3279 = vrot.lane.b32.xlu0 %v3214, 127
        %v3280 = vpop.permute.xlu0 %3279
        %3281 = vrot.lane.b32.xlu0 %v3205, 127
        %v3282 = vpop.permute.xlu0 %3281
        %v3283 = vsel %vm1384, %v3276, %v3278
        %v3284 = vsel %vm1384, %v3278, %v3280
        %v3285 = vsel %vm1384, %v3280, %v3282
        %v3288 = vsel %vm1396, %v3282, %v3276
        %3289 = vrot.lane.b32.xlu0 %v3212, 119
        %v3290 = vpop.permute.xlu0 %3289
        %3291 = vrot.lane.b32.xlu0 %v3213, 119
        %v3292 = vpop.permute.xlu0 %3291
        %3293 = vrot.lane.b32.xlu0 %v3214, 119
        %v3294 = vpop.permute.xlu0 %3293
        %3295 = vrot.lane.b32.xlu0 %v3205, 119
        %v3296 = vpop.permute.xlu0 %3295
        %vm3297 = vcmask 973824
        %v3298 = vsel %vm3297, %v3290, %v3292
        %v3299 = vsel %vm3297, %v3292, %v3294
        %v3300 = vsel %vm3297, %v3294, %v3296
        %vm3301 = vcmask 973824
        %v3304 = vsel %vm3301, %v3296, %v3290
        %3305 = vrot.lane.b32.xlu0 %v3212, 118
        %v3306 = vpop.permute.xlu0 %3305
        %3307 = vrot.lane.b32.xlu0 %v3213, 118
        %v3308 = vpop.permute.xlu0 %3307
        %3309 = vrot.lane.b32.xlu0 %v3214, 118
        %v3310 = vpop.permute.xlu0 %3309
        %3311 = vrot.lane.b32.xlu0 %v3205, 118
        %v3312 = vpop.permute.xlu0 %3311
        %vm3313 = vcmask 965632
        %v3314 = vsel %vm3313, %v3306, %v3308
        %v3315 = vsel %vm3313, %v3308, %v3310
        %v3316 = vsel %vm3313, %v3310, %v3312
        %vm3317 = vcmask 965632
        %v3320 = vsel %vm3317, %v3312, %v3306
        %3321 = vrot.lane.b32.xlu0 %v3212, 117
        %v3322 = vpop.permute.xlu0 %3321
        %3323 = vrot.lane.b32.xlu0 %v3213, 117
        %v3324 = vpop.permute.xlu0 %3323
        %3325 = vrot.lane.b32.xlu0 %v3214, 117
        %v3326 = vpop.permute.xlu0 %3325
        %3327 = vrot.lane.b32.xlu0 %v3205, 117
        %v3328 = vpop.permute.xlu0 %3327
        %vm3329 = vcmask 957440
        %v3330 = vsel %vm3329, %v3322, %v3324
        %v3331 = vsel %vm3329, %v3324, %v3326
        %v3332 = vsel %vm3329, %v3326, %v3328
        %vm3333 = vcmask 957440
        %v3336 = vsel %vm3333, %v3328, %v3322
        %v3338 = vrot.slane %v3244, 4
        %v3339 = vrot.slane %v3238, 4
        %v3340 = vrot.slane %v3239, 4
        %v3341 = vrot.slane %v3240, 4
        %v3343 = vrot.slane %v3274, 4
        %v3344 = vrot.slane %v3269, 4
        %v3345 = vrot.slane %v3270, 4
        %v3346 = vrot.slane %v3271, 4
        %v3348 = vrot.slane %v3283, 4
        %v3349 = vrot.slane %v3284, 4
        %v3350 = vrot.slane %v3285, 4
        %v3351 = vrot.slane %v3288, 4
        %v3353 = vrot.slane %v3314, 4
        %v3354 = vrot.slane %v3315, 4
        %v3355 = vrot.slane %v3316, 4
        %v3356 = vrot.slane %v3320, 4
        %v3358 = vsel %vm931, %v3228, %v3338
        %v3362 = vsel %vm931, %v3222, %v3339
        %v3366 = vsel %vm931, %v3223, %v3340
        %v3370 = vsel %vm931, %v3224, %v3341
        %v3373 = vsel %vm931, %v3260, %v3343
        %v3377 = vsel %vm931, %v3254, %v3344
        %v3381 = vsel %vm931, %v3255, %v3345
        %v3385 = vsel %vm931, %v3256, %v3346
        %v3389 = vsel %vm931, %v3212, %v3348
        %v3393 = vsel %vm931, %v3213, %v3349
        %v3397 = vsel %vm931, %v3214, %v3350
        %v3401 = vsel %vm931, %v3205, %v3351
        %v3405 = vsel %vm931, %v3298, %v3353
        %v3409 = vsel %vm931, %v3299, %v3354
        %v3413 = vsel %vm931, %v3300, %v3355
        %v3416 = vsel %vm931, %v3304, %v3356
        %v3418 = vld [vmem:[#allocation10] sm:$0xf]
        %v3419 = vld [vmem:[#allocation10 + $0x4] sm:$0xf]
        %v3420 = vld [vmem:[%s9] sm:$0xff]
        %v3421 = vld [vmem:[%s9 + $0x8] sm:$0xff]
        %3423 = vset.pattern.permute.xlu0 0
        %3424 = vperm.xlu0 %3423, %v3420
        %v3425 = vpop.permute.xlu0 %3424
        %3428 = vset.pattern.permute.xlu0 0
        %3429 = vperm.xlu0 %3428, %v3421
        %v3430 = vpop.permute.xlu0 %3429
        %v3434 = vunpack.c.l.b16 %v3418
        %v3435 = vunpack.c.l.b16 %v3419
        %v3436 = vpack.c.b16 %v3435, %v3434
        %v3438 = vsel %vm1768, %v3436, 0
        %v3441 = vsel %vm931, %v3330, 0
        %v3444 = vsel %vm931, %v3331, 0
        %v3447 = vsel %vm931, %v3332, 0
        %v3449 = vsel %vm931, %v3336, 0
        %3451 = vmatpush.bf16.msra.mxu0 0
        %3452 = vmatpush.bf16.msra.mxu0 0
        %3453 = vmatpush.bf16.msra.mxu0 0
        %3454 = vmatpush.bf16.msra.mxu0 %v3441
        %3455 = vmatpush.bf16.msra.mxu0 %v3405
        %3456 = vmatpush.bf16.msra.mxu0 %v3389
        %3457 = vmatpush.bf16.msra.mxu0 %v3373
        %3458 = vmatpush.bf16.msra.mxu0 %v3358
        %3459 = vmatmul.bf16.gmra.mxu0 %v3438
        %v3460 = vpop.f32.mrf.mxu0
        %v3461 = vadd.f32 %v3425, %v3460
        %v3462 = vpop.f32.mrf.mxu0
        %v3463 = vadd.f32 %v3430, %v3462
        %3464 = vdwg.mxu0
        %3465 = vmatpush.bf16.msra.mxu0 0
        %3466 = vmatpush.bf16.msra.mxu0 0
        %3467 = vmatpush.bf16.msra.mxu0 0
        %3468 = vmatpush.bf16.msra.mxu0 %v3444
        %3469 = vmatpush.bf16.msra.mxu0 %v3409
        %3470 = vmatpush.bf16.msra.mxu0 %v3393
        %3471 = vmatpush.bf16.msra.mxu0 %v3377
        %3472 = vmatpush.bf16.msra.mxu0 %v3362
        %3473 = vmatmul.bf16.gmra.mxu0 %v3438
        %v3474 = vpop.f32.mrf.mxu0
        %v3475 = vadd.f32 %v3425, %v3474
        %v3476 = vpop.f32.mrf.mxu0
        %v3477 = vadd.f32 %v3430, %v3476
        %3478 = vdwg.mxu0
        %3479 = vmatpush.bf16.msra.mxu0 0
        %3480 = vmatpush.bf16.msra.mxu0 0
        %3481 = vmatpush.bf16.msra.mxu0 0
        %3482 = vmatpush.bf16.msra.mxu0 %v3447
        %3483 = vmatpush.bf16.msra.mxu0 %v3413
        %3484 = vmatpush.bf16.msra.mxu0 %v3397
        %3485 = vmatpush.bf16.msra.mxu0 %v3381
        %3486 = vmatpush.bf16.msra.mxu0 %v3366
        %3487 = vmatmul.bf16.gmra.mxu0 %v3438
        %v3488 = vpop.f32.mrf.mxu0
        %v3489 = vadd.f32 %v3425, %v3488
        %v3490 = vpop.f32.mrf.mxu0
        %v3491 = vadd.f32 %v3430, %v3490
        %3492 = vdwg.mxu0
        %3493 = vmatpush.bf16.msra.mxu0 0
        %3494 = vmatpush.bf16.msra.mxu0 0
        %3495 = vmatpush.bf16.msra.mxu0 0
        %3496 = vmatpush.bf16.msra.mxu0 %v3449
        %3497 = vmatpush.bf16.msra.mxu0 %v3416
        %3498 = vmatpush.bf16.msra.mxu0 %v3401
        %3499 = vmatpush.bf16.msra.mxu0 %v3385
        %3500 = vmatpush.bf16.msra.mxu0 %v3370
        %3501 = vmatmul.bf16.gmra.mxu0 %v3438
        %v3502 = vpop.f32.mrf.mxu0
        %v3503 = vadd.f32 %v3425, %v3502
        %v3504 = vpop.f32.mrf.mxu0
        %v3505 = vadd.f32 %v3430, %v3504
        %3506 = vdwg.mxu0
        %vm3507 = vcmp.ge.f32.partialorder %v3461, 0.0
        %vm3508 = vcmp.ge.f32.partialorder %v3475, 0.0
        %vm3509 = vcmp.ge.f32.partialorder %v3489, 0.0
        %vm3510 = vcmp.ge.f32.partialorder %v3503, 0.0
        %vm3511 = vcmp.ge.f32.partialorder %v3463, 0.0
        %vm3512 = vcmp.ge.f32.partialorder %v3477, 0.0
        %vm3513 = vcmp.ge.f32.partialorder %v3491, 0.0
        %vm3514 = vcmp.ge.f32.partialorder %v3505, 0.0
        %v3515 = vmul.f32 %v3461, 0.01
        %v3516 = vmul.f32 %v3475, 0.01
        %v3517 = vmul.f32 %v3489, 0.01
        %v3518 = vmul.f32 %v3503, 0.01
        %v3519 = vmul.f32 %v3463, 0.01
        %v3520 = vmul.f32 %v3477, 0.01
        %v3521 = vmul.f32 %v3491, 0.01
        %v3522 = vmul.f32 %v3505, 0.01
        %v3523 = vsel %vm3507, %v3461, %v3515
        %v3524 = vsel %vm3508, %v3475, %v3516
        %v3525 = vsel %vm3509, %v3489, %v3517
        %v3526 = vsel %vm3510, %v3503, %v3518
        %v3527 = vsel %vm3511, %v3463, %v3519
        %v3528 = vsel %vm3512, %v3477, %v3520
        %v3529 = vsel %vm3513, %v3491, %v3521
        %v3530 = vsel %vm3514, %v3505, %v3522
        %v3531 = vld [vmem:[%s18] sm:$0xf]
        %v3533 = vperm.slane %v3531, 0
        %v3534 = vperm.slane %v3531, 1
        %v3535 = vperm.slane %v3531, 2
        %v3536 = vperm.slane %v3531, 3
        %v3541 = vmul.f32 %v3523, %v3533
        %v3542 = vmul.f32 %v3524, %v3534
        %v3543 = vmul.f32 %v3525, %v3535
        %v3544 = vmul.f32 %v3526, %v3536
        %v3545 = vmul.f32 %v3527, %v3533
        %v3546 = vmul.f32 %v3528, %v3534
        %v3547 = vmul.f32 %v3529, %v3535
        %v3548 = vmul.f32 %v3530, %v3536
        %v3549 = vpack.c.bf16 %v3542, %v3541
        %v3550 = vpack.c.bf16 %v3544, %v3543
        %v3551 = vpack.c.bf16 %v3546, %v3545
        %v3552 = vpack.c.bf16 %v3548, %v3547
        %v3555 = vunpack.c.h.b16 %v3550
        %v3556 = vunpack.c.h.b16 %v3552
        %v3557 = vpack.c.b16 %v3556, %v3555
        %3558 = vrot.lane.b32.xlu0 %v3557, 11
        %v3559 = vpop.permute.xlu0 %3558
        %v3562 = vunpack.c.l.b16 %v3549
        %v3563 = vunpack.c.h.b16 %v3549
        %v3564 = vunpack.c.l.b16 %v3550
        %v3565 = vunpack.c.l.b16 %v3551
        %v3566 = vunpack.c.h.b16 %v3551
        %v3567 = vunpack.c.l.b16 %v3552
        %v3568 = vpack.c.b16 %v3565, %v3562
        %v3569 = vpack.c.b16 %v3566, %v3563
        %v3570 = vpack.c.b16 %v3567, %v3564
        %3571 = vrot.lane.b32.xlu0 %v3568, 11
        %v3572 = vpop.permute.xlu0 %3571
        %3573 = vrot.lane.b32.xlu0 %v3569, 11
        %v3574 = vpop.permute.xlu0 %3573
        %3575 = vrot.lane.b32.xlu0 %v3570, 11
        %v3576 = vpop.permute.xlu0 %3575
        %v3577 = vsel %vm3221, %v3572, %v3574
        %v3578 = vsel %vm3221, %v3574, %v3576
        %v3579 = vsel %vm3221, %v3576, %v3559
        %v3585 = vsel %vm3225, %v3559, %v3572
        %3587 = vrot.lane.b32.xlu0 %v3557, 10
        %v3588 = vpop.permute.xlu0 %3587
        %3589 = vrot.lane.b32.xlu0 %v3568, 10
        %v3590 = vpop.permute.xlu0 %3589
        %3591 = vrot.lane.b32.xlu0 %v3569, 10
        %v3592 = vpop.permute.xlu0 %3591
        %3593 = vrot.lane.b32.xlu0 %v3570, 10
        %v3594 = vpop.permute.xlu0 %3593
        %v3595 = vsel %vm3237, %v3590, %v3592
        %v3596 = vsel %vm3237, %v3592, %v3594
        %v3597 = vsel %vm3237, %v3594, %v3588
        %v3603 = vsel %vm3241, %v3588, %v3590
        %3605 = vrot.lane.b32.xlu0 %v3557, 9
        %v3606 = vpop.permute.xlu0 %3605
        %3607 = vrot.lane.b32.xlu0 %v3568, 9
        %v3608 = vpop.permute.xlu0 %3607
        %3609 = vrot.lane.b32.xlu0 %v3569, 9
        %v3610 = vpop.permute.xlu0 %3609
        %3611 = vrot.lane.b32.xlu0 %v3570, 9
        %v3612 = vpop.permute.xlu0 %3611
        %v3613 = vsel %vm3253, %v3608, %v3610
        %v3614 = vsel %vm3253, %v3610, %v3612
        %v3615 = vsel %vm3253, %v3612, %v3606
        %v3621 = vsel %vm3257, %v3606, %v3608
        %3623 = vrot.lane.b32.xlu0 %v3557, 1
        %v3624 = vpop.permute.xlu0 %3623
        %3625 = vrot.lane.b32.xlu0 %v3568, 1
        %v3626 = vpop.permute.xlu0 %3625
        %3627 = vrot.lane.b32.xlu0 %v3569, 1
        %v3628 = vpop.permute.xlu0 %3627
        %3629 = vrot.lane.b32.xlu0 %v3570, 1
        %v3630 = vpop.permute.xlu0 %3629
        %v3631 = vsel %vm1344, %v3626, %v3628
        %v3632 = vsel %vm1344, %v3628, %v3630
        %v3633 = vsel %vm1344, %v3630, %v3624
        %v3639 = vsel %vm1356, %v3624, %v3626
        %3641 = vrot.lane.b32.xlu0 %v3568, 127
        %v3642 = vpop.permute.xlu0 %3641
        %3643 = vrot.lane.b32.xlu0 %v3569, 127
        %v3644 = vpop.permute.xlu0 %3643
        %3645 = vrot.lane.b32.xlu0 %v3570, 127
        %v3646 = vpop.permute.xlu0 %3645
        %3647 = vrot.lane.b32.xlu0 %v3557, 127
        %v3648 = vpop.permute.xlu0 %3647
        %v3649 = vsel %vm1384, %v3642, %v3644
        %v3650 = vsel %vm1384, %v3644, %v3646
        %v3651 = vsel %vm1384, %v3646, %v3648
        %v3657 = vsel %vm1396, %v3648, %v3642
        %3659 = vrot.lane.b32.xlu0 %v3568, 119
        %v3660 = vpop.permute.xlu0 %3659
        %3661 = vrot.lane.b32.xlu0 %v3569, 119
        %v3662 = vpop.permute.xlu0 %3661
        %3663 = vrot.lane.b32.xlu0 %v3570, 119
        %v3664 = vpop.permute.xlu0 %3663
        %3665 = vrot.lane.b32.xlu0 %v3557, 119
        %v3666 = vpop.permute.xlu0 %3665
        %v3667 = vsel %vm3297, %v3660, %v3662
        %v3668 = vsel %vm3297, %v3662, %v3664
        %v3669 = vsel %vm3297, %v3664, %v3666
        %v3675 = vsel %vm3301, %v3666, %v3660
        %3677 = vrot.lane.b32.xlu0 %v3568, 118
        %v3678 = vpop.permute.xlu0 %3677
        %3679 = vrot.lane.b32.xlu0 %v3569, 118
        %v3680 = vpop.permute.xlu0 %3679
        %3681 = vrot.lane.b32.xlu0 %v3570, 118
        %v3682 = vpop.permute.xlu0 %3681
        %3683 = vrot.lane.b32.xlu0 %v3557, 118
        %v3684 = vpop.permute.xlu0 %3683
        %v3685 = vsel %vm3313, %v3678, %v3680
        %v3686 = vsel %vm3313, %v3680, %v3682
        %v3687 = vsel %vm3313, %v3682, %v3684
        %v3693 = vsel %vm3317, %v3684, %v3678
        %3695 = vrot.lane.b32.xlu0 %v3568, 117
        %v3696 = vpop.permute.xlu0 %3695
        %3697 = vrot.lane.b32.xlu0 %v3569, 117
        %v3698 = vpop.permute.xlu0 %3697
        %3699 = vrot.lane.b32.xlu0 %v3570, 117
        %v3700 = vpop.permute.xlu0 %3699
        %3701 = vrot.lane.b32.xlu0 %v3557, 117
        %v3702 = vpop.permute.xlu0 %3701
        %v3703 = vsel %vm3329, %v3696, %v3698
        %v3704 = vsel %vm3329, %v3698, %v3700
        %v3705 = vsel %vm3329, %v3700, %v3702
        %v3711 = vsel %vm3333, %v3702, %v3696
        %v3717 = vld [vmem:[%s10] sm:$0xff]
        %v3718 = vld [vmem:[%s10 + $0x8] sm:$0xff]
        %v3719 = vld [vmem:[%s11] sm:$0xff]
        %v3720 = vld [vmem:[%s11 + $0x8] sm:$0xff]
        %3722 = vset.pattern.permute.xlu0 0
        %3723 = vperm.xlu0 %3722, %v3719
        %v3724 = vpop.permute.xlu0 %3723
        %3727 = vset.pattern.permute.xlu0 0
        %3728 = vperm.xlu0 %3727, %v3720
        %v3729 = vpop.permute.xlu0 %3728
        %v3733 = vunpack.c.l.b16 %v3717
        %v3734 = vunpack.c.h.b16 %v3717
        %v3735 = vunpack.c.l.b16 %v3718
        %v3736 = vunpack.c.h.b16 %v3718
        %v3737 = vpack.c.b16 %v3735, %v3733
        %v3738 = vpack.c.b16 %v3736, %v3734
        %vm3740 = vcmask 130048
        %v3742 = vsel %vm3740, %v3738, 0
        %3744 = vmatpush.bf16.msra.mxu0 %v3685
        %3745 = vmatpush.bf16.msra.mxu0 %v3667
        %3746 = vmatpush.bf16.msra.mxu0 %v3649
        %3747 = vmatpush.bf16.msra.mxu0 %v3568
        %3748 = vmatpush.bf16.msra.mxu0 %v3639
        %3749 = vmatpush.bf16.msra.mxu0 %v3621
        %3750 = vmatpush.bf16.msra.mxu0 %v3603
        %3751 = vmatpush.bf16.msra.mxu0 %v3585
        %3752 = vmatmul.bf16.gmra.mxu0 %v3737
        %v3753 = vpop.f32.mrf.mxu0
        %v3754 = vadd.f32 %v3724, %v3753
        %v3755 = vpop.f32.mrf.mxu0
        %v3756 = vadd.f32 %v3729, %v3755
        %3757 = vdwg.mxu0
        %3758 = vmatpush.bf16.msra.mxu0 0
        %3759 = vmatpush.bf16.msra.mxu0 0
        %3760 = vmatpush.bf16.msra.mxu0 0
        %3761 = vmatpush.bf16.msra.mxu0 0
        %3762 = vmatpush.bf16.msra.mxu0 0
        %3763 = vmatpush.bf16.msra.mxu0 0
        %3764 = vmatpush.bf16.msra.mxu0 0
        %3765 = vmatpush.bf16.msra.mxu0 %v3703
        %3766 = vmatmul.bf16.gmra.mxu0 %v3742
        %v3767 = vpop.f32.mrf.mxu0
        %v3768 = vadd.f32 %v3754, %v3767
        %v3769 = vpop.f32.mrf.mxu0
        %v3770 = vadd.f32 %v3756, %v3769
        %3771 = vdwg.mxu0
        %3772 = vmatpush.bf16.msra.mxu0 %v3686
        %3773 = vmatpush.bf16.msra.mxu0 %v3668
        %3774 = vmatpush.bf16.msra.mxu0 %v3650
        %3775 = vmatpush.bf16.msra.mxu0 %v3569
        %3776 = vmatpush.bf16.msra.mxu0 %v3631
        %3777 = vmatpush.bf16.msra.mxu0 %v3613
        %3778 = vmatpush.bf16.msra.mxu0 %v3595
        %3779 = vmatpush.bf16.msra.mxu0 %v3577
        %3780 = vmatmul.bf16.gmra.mxu0 %v3737
        %v3781 = vpop.f32.mrf.mxu0
        %v3782 = vadd.f32 %v3724, %v3781
        %v3783 = vpop.f32.mrf.mxu0
        %v3784 = vadd.f32 %v3729, %v3783
        %3785 = vdwg.mxu0
        %3786 = vmatpush.bf16.msra.mxu0 0
        %3787 = vmatpush.bf16.msra.mxu0 0
        %3788 = vmatpush.bf16.msra.mxu0 0
        %3789 = vmatpush.bf16.msra.mxu0 0
        %3790 = vmatpush.bf16.msra.mxu0 0
        %3791 = vmatpush.bf16.msra.mxu0 0
        %3792 = vmatpush.bf16.msra.mxu0 0
        %3793 = vmatpush.bf16.msra.mxu0 %v3704
        %3794 = vmatmul.bf16.gmra.mxu0 %v3742
        %v3795 = vpop.f32.mrf.mxu0
        %v3796 = vadd.f32 %v3782, %v3795
        %v3797 = vpop.f32.mrf.mxu0
        %v3798 = vadd.f32 %v3784, %v3797
        %3799 = vdwg.mxu0
        %3800 = vmatpush.bf16.msra.mxu0 %v3687
        %3801 = vmatpush.bf16.msra.mxu0 %v3669
        %3802 = vmatpush.bf16.msra.mxu0 %v3651
        %3803 = vmatpush.bf16.msra.mxu0 %v3570
        %3804 = vmatpush.bf16.msra.mxu0 %v3632
        %3805 = vmatpush.bf16.msra.mxu0 %v3614
        %3806 = vmatpush.bf16.msra.mxu0 %v3596
        %3807 = vmatpush.bf16.msra.mxu0 %v3578
        %3808 = vmatmul.bf16.gmra.mxu0 %v3737
        %v3809 = vpop.f32.mrf.mxu0
        %v3810 = vadd.f32 %v3724, %v3809
        %v3811 = vpop.f32.mrf.mxu0
        %v3812 = vadd.f32 %v3729, %v3811
        %3813 = vdwg.mxu0
        %3814 = vmatpush.bf16.msra.mxu0 0
        %3815 = vmatpush.bf16.msra.mxu0 0
        %3816 = vmatpush.bf16.msra.mxu0 0
        %3817 = vmatpush.bf16.msra.mxu0 0
        %3818 = vmatpush.bf16.msra.mxu0 0
        %3819 = vmatpush.bf16.msra.mxu0 0
        %3820 = vmatpush.bf16.msra.mxu0 0
        %3821 = vmatpush.bf16.msra.mxu0 %v3705
        %3822 = vmatmul.bf16.gmra.mxu0 %v3742
        %v3823 = vpop.f32.mrf.mxu0
        %v3824 = vadd.f32 %v3810, %v3823
        %v3825 = vpop.f32.mrf.mxu0
        %v3826 = vadd.f32 %v3812, %v3825
        %3827 = vdwg.mxu0
        %3828 = vmatpush.bf16.msra.mxu0 %v3693
        %3829 = vmatpush.bf16.msra.mxu0 %v3675
        %3830 = vmatpush.bf16.msra.mxu0 %v3657
        %3831 = vmatpush.bf16.msra.mxu0 %v3557
        %3832 = vmatpush.bf16.msra.mxu0 %v3633
        %3833 = vmatpush.bf16.msra.mxu0 %v3615
        %3834 = vmatpush.bf16.msra.mxu0 %v3597
        %3835 = vmatpush.bf16.msra.mxu0 %v3579
        %3836 = vmatmul.bf16.gmra.mxu0 %v3737
        %v3837 = vpop.f32.mrf.mxu0
        %v3838 = vadd.f32 %v3724, %v3837
        %v3839 = vpop.f32.mrf.mxu0
        %v3840 = vadd.f32 %v3729, %v3839
        %3841 = vdwg.mxu0
        %3842 = vmatpush.bf16.msra.mxu0 0
        %3843 = vmatpush.bf16.msra.mxu0 0
        %3844 = vmatpush.bf16.msra.mxu0 0
        %3845 = vmatpush.bf16.msra.mxu0 0
        %3846 = vmatpush.bf16.msra.mxu0 0
        %3847 = vmatpush.bf16.msra.mxu0 0
        %3848 = vmatpush.bf16.msra.mxu0 0
        %3849 = vmatpush.bf16.msra.mxu0 %v3711
        %3850 = vmatmul.bf16.gmra.mxu0 %v3742
        %v3851 = vpop.f32.mrf.mxu0
        %v3852 = vadd.f32 %v3838, %v3851
        %v3853 = vpop.f32.mrf.mxu0
        %v3854 = vadd.f32 %v3840, %v3853
        %3855 = vdwg.mxu0
        %vm3856 = vcmp.ge.f32.partialorder %v3768, 0.0
        %vm3857 = vcmp.ge.f32.partialorder %v3796, 0.0
        %vm3858 = vcmp.ge.f32.partialorder %v3824, 0.0
        %vm3859 = vcmp.ge.f32.partialorder %v3852, 0.0
        %vm3860 = vcmp.ge.f32.partialorder %v3770, 0.0
        %vm3861 = vcmp.ge.f32.partialorder %v3798, 0.0
        %vm3862 = vcmp.ge.f32.partialorder %v3826, 0.0
        %vm3863 = vcmp.ge.f32.partialorder %v3854, 0.0
        %v3864 = vmul.f32 %v3768, 0.01
        %v3865 = vmul.f32 %v3796, 0.01
        %v3866 = vmul.f32 %v3824, 0.01
        %v3867 = vmul.f32 %v3852, 0.01
        %v3868 = vmul.f32 %v3770, 0.01
        %v3869 = vmul.f32 %v3798, 0.01
        %v3870 = vmul.f32 %v3826, 0.01
        %v3871 = vmul.f32 %v3854, 0.01
        %v3872 = vsel %vm3856, %v3768, %v3864
        %v3873 = vsel %vm3857, %v3796, %v3865
        %v3874 = vsel %vm3858, %v3824, %v3866
        %v3875 = vsel %vm3859, %v3852, %v3867
        %v3876 = vsel %vm3860, %v3770, %v3868
        %v3877 = vsel %vm3861, %v3798, %v3869
        %v3878 = vsel %vm3862, %v3826, %v3870
        %v3879 = vsel %vm3863, %v3854, %v3871
        %v3880 = vmul.f32 %v3872, %v3533
        %v3881 = vmul.f32 %v3873, %v3534
        %v3882 = vmul.f32 %v3874, %v3535
        %v3883 = vmul.f32 %v3875, %v3536
        %v3884 = vmul.f32 %v3876, %v3533
        %v3885 = vmul.f32 %v3877, %v3534
        %v3886 = vmul.f32 %v3878, %v3535
        %v3887 = vmul.f32 %v3879, %v3536
        %v3888 = vld [vmem:[#allocation11] sm:$0xf]
        %v3889 = vld [vmem:[#allocation11 + $0x4] sm:$0xf]
        %v3890 = vld [vmem:[#allocation11 + $0x8] sm:$0xf]
        %v3891 = vld [vmem:[#allocation11 + $0xc] sm:$0xf]
        %v3892 = vld [vmem:[#allocation11 + $0x10] sm:$0xf]
        %v3893 = vld [vmem:[#allocation11 + $0x14] sm:$0xf]
        %v3894 = vld [vmem:[#allocation11 + $0x18] sm:$0xf]
        %v3895 = vld [vmem:[#allocation11 + $0x1c] sm:$0xf]
        %v3896 = vld [vmem:[#allocation11 + $0x20] sm:$0xf]
        %v3897 = vld [vmem:[#allocation11 + $0x24] sm:$0xf]
        %v3898 = vld [vmem:[#allocation11 + $0x28] sm:$0xf]
        %v3899 = vld [vmem:[#allocation11 + $0x2c] sm:$0xf]
        %v3900 = vld [vmem:[#allocation11 + $0x30] sm:$0xf]
        %v3901 = vld [vmem:[#allocation11 + $0x34] sm:$0xf]
        %v3902 = vld [vmem:[#allocation11 + $0x38] sm:$0xf]
        %v3903 = vld [vmem:[#allocation11 + $0x3c] sm:$0xf]
        %v3904 = vpack.c.bf16 %v3884, %v3880
        %v3921 = vunpack.c.l.b16 %v3888
        %v3922 = vunpack.c.l.b16 %v3889
        %v3923 = vunpack.c.l.b16 %v3890
        %v3924 = vunpack.c.l.b16 %v3891
        %v3925 = vunpack.c.l.b16 %v3892
        %v3926 = vunpack.c.l.b16 %v3893
        %v3927 = vunpack.c.l.b16 %v3894
        %v3928 = vunpack.c.l.b16 %v3895
        %v3929 = vunpack.c.l.b16 %v3896
        %v3930 = vunpack.c.l.b16 %v3897
        %v3931 = vunpack.c.l.b16 %v3898
        %v3932 = vunpack.c.l.b16 %v3899
        %v3933 = vunpack.c.l.b16 %v3900
        %v3934 = vunpack.c.l.b16 %v3901
        %v3935 = vunpack.c.l.b16 %v3902
        %v3936 = vunpack.c.l.b16 %v3903
        %v3937 = vpack.c.b16 %v3922, %v3921
        %v3938 = vpack.c.b16 %v3924, %v3923
        %v3939 = vpack.c.b16 %v3926, %v3925
        %v3940 = vpack.c.b16 %v3928, %v3927
        %v3941 = vpack.c.b16 %v3930, %v3929
        %v3942 = vpack.c.b16 %v3932, %v3931
        %v3943 = vpack.c.b16 %v3934, %v3933
        %v3944 = vpack.c.b16 %v3936, %v3935
        %3953 = vmatpush.bf16.msra.mxu0 %v3944
        %3954 = vmatpush.bf16.msra.mxu0 %v3943
        %3955 = vmatpush.bf16.msra.mxu0 %v3942
        %3956 = vmatpush.bf16.msra.mxu0 %v3941
        %3957 = vmatpush.bf16.msra.mxu0 %v3940
        %3958 = vmatpush.bf16.msra.mxu0 %v3939
        %3959 = vmatpush.bf16.msra.mxu0 %v3938
        %3960 = vmatpush.bf16.msra.mxu0 %v3937
        %3961 = vmatmul.bf16.gmra.mxu0 %v3904
        %v3962 = vpop.f32.mrf.mxu0
        %v3963 = vadd.f32 0.0, %v3962
        %v3964 = vpop.f32.mrf.mxu0
        %v3965 = vadd.f32 0.0, %v3964
        %3966 = vdwg.mxu0
        %v3967 = vpack.c.bf16 %v3885, %v3881
        %3968 = vmatpush.bf16.msra.mxu0 %v3944
        %3969 = vmatpush.bf16.msra.mxu0 %v3943
        %3970 = vmatpush.bf16.msra.mxu0 %v3942
        %3971 = vmatpush.bf16.msra.mxu0 %v3941
        %3972 = vmatpush.bf16.msra.mxu0 %v3940
        %3973 = vmatpush.bf16.msra.mxu0 %v3939
        %3974 = vmatpush.bf16.msra.mxu0 %v3938
        %3975 = vmatpush.bf16.msra.mxu0 %v3937
        %3976 = vmatmul.bf16.gmra.mxu0 %v3967
        %v3977 = vpop.f32.mrf.mxu0
        %v3978 = vadd.f32 0.0, %v3977
        %v3979 = vpop.f32.mrf.mxu0
        %v3980 = vadd.f32 0.0, %v3979
        %3981 = vdwg.mxu0
        %v3982 = vpack.c.bf16 %v3886, %v3882
        %3983 = vmatpush.bf16.msra.mxu0 %v3944
        %3984 = vmatpush.bf16.msra.mxu0 %v3943
        %3985 = vmatpush.bf16.msra.mxu0 %v3942
        %3986 = vmatpush.bf16.msra.mxu0 %v3941
        %3987 = vmatpush.bf16.msra.mxu0 %v3940
        %3988 = vmatpush.bf16.msra.mxu0 %v3939
        %3989 = vmatpush.bf16.msra.mxu0 %v3938
        %3990 = vmatpush.bf16.msra.mxu0 %v3937
        %3991 = vmatmul.bf16.gmra.mxu0 %v3982
        %v3992 = vpop.f32.mrf.mxu0
        %v3993 = vadd.f32 0.0, %v3992
        %v3994 = vpop.f32.mrf.mxu0
        %v3995 = vadd.f32 0.0, %v3994
        %3996 = vdwg.mxu0
        %v3997 = vpack.c.bf16 %v3887, %v3883
        %3998 = vmatpush.bf16.msra.mxu0 %v3944
        %3999 = vmatpush.bf16.msra.mxu0 %v3943
        %4000 = vmatpush.bf16.msra.mxu0 %v3942
        %4001 = vmatpush.bf16.msra.mxu0 %v3941
        %4002 = vmatpush.bf16.msra.mxu0 %v3940
        %4003 = vmatpush.bf16.msra.mxu0 %v3939
        %4004 = vmatpush.bf16.msra.mxu0 %v3938
        %4005 = vmatpush.bf16.msra.mxu0 %v3937
        %4006 = vmatmul.bf16.gmra.mxu0 %v3997
        %v4007 = vpop.f32.mrf.mxu0
        %v4008 = vadd.f32 0.0, %v4007
        %v4009 = vpop.f32.mrf.mxu0
        %v4010 = vadd.f32 0.0, %v4009
        %4011 = vdwg.mxu0
        %v4012 = vpack.c.bf16 %v3978, %v3963
        %v4013 = vpack.c.bf16 %v4008, %v3993
        %v4014 = vpack.c.bf16 %v3980, %v3965
        %v4015 = vpack.c.bf16 %v4010, %v3995
        %v4018 = vunpack.c.h.b16 %v4013
        %v4019 = vunpack.c.h.b16 %v4015
        %v4020 = vpack.c.b16 %v4019, %v4018
        %4021 = vrot.lane.b32.xlu0 %v4020, 7
        %v4022 = vpop.permute.xlu0 %4021
        %v4025 = vunpack.c.l.b16 %v4012
        %v4026 = vunpack.c.h.b16 %v4012
        %v4027 = vunpack.c.l.b16 %v4013
        %v4028 = vunpack.c.l.b16 %v4014
        %v4029 = vunpack.c.h.b16 %v4014
        %v4030 = vunpack.c.l.b16 %v4015
        %v4031 = vpack.c.b16 %v4028, %v4025
        %v4032 = vpack.c.b16 %v4029, %v4026
        %v4033 = vpack.c.b16 %v4030, %v4027
        %4034 = vrot.lane.b32.xlu0 %v4031, 7
        %v4035 = vpop.permute.xlu0 %4034
        %4036 = vrot.lane.b32.xlu0 %v4032, 7
        %v4037 = vpop.permute.xlu0 %4036
        %4038 = vrot.lane.b32.xlu0 %v4033, 7
        %v4039 = vpop.permute.xlu0 %4038
        %vm4040 = vcmask 56320
        %v4041 = vsel %vm4040, %v4035, %v4037
        %v4042 = vsel %vm4040, %v4037, %v4039
        %v4043 = vsel %vm4040, %v4039, %v4022
        %vm4047 = vcmask 56320
        %v4050 = vsel %vm4047, %v4022, %v4035
        %4052 = vrot.lane.b32.xlu0 %v4020, 6
        %v4053 = vpop.permute.xlu0 %4052
        %4054 = vrot.lane.b32.xlu0 %v4031, 6
        %v4055 = vpop.permute.xlu0 %4054
        %4056 = vrot.lane.b32.xlu0 %v4032, 6
        %v4057 = vpop.permute.xlu0 %4056
        %4058 = vrot.lane.b32.xlu0 %v4033, 6
        %v4059 = vpop.permute.xlu0 %4058
        %vm4060 = vcmask 48128
        %v4061 = vsel %vm4060, %v4055, %v4057
        %v4062 = vsel %vm4060, %v4057, %v4059
        %v4063 = vsel %vm4060, %v4059, %v4053
        %vm4067 = vcmask 48128
        %v4070 = vsel %vm4067, %v4053, %v4055
        %4072 = vrot.lane.b32.xlu0 %v4020, 5
        %v4073 = vpop.permute.xlu0 %4072
        %4074 = vrot.lane.b32.xlu0 %v4031, 5
        %v4075 = vpop.permute.xlu0 %4074
        %4076 = vrot.lane.b32.xlu0 %v4032, 5
        %v4077 = vpop.permute.xlu0 %4076
        %4078 = vrot.lane.b32.xlu0 %v4033, 5
        %v4079 = vpop.permute.xlu0 %4078
        %vm4080 = vcmask 39936
        %v4081 = vsel %vm4080, %v4075, %v4077
        %v4082 = vsel %vm4080, %v4077, %v4079
        %v4083 = vsel %vm4080, %v4079, %v4073
        %vm4087 = vcmask 39936
        %v4090 = vsel %vm4087, %v4073, %v4075
        %4092 = vrot.lane.b32.xlu0 %v4020, 1
        %v4093 = vpop.permute.xlu0 %4092
        %4094 = vrot.lane.b32.xlu0 %v4031, 1
        %v4095 = vpop.permute.xlu0 %4094
        %4096 = vrot.lane.b32.xlu0 %v4032, 1
        %v4097 = vpop.permute.xlu0 %4096
        %4098 = vrot.lane.b32.xlu0 %v4033, 1
        %v4099 = vpop.permute.xlu0 %4098
        %v4100 = vsel %vm1344, %v4095, %v4097
        %v4101 = vsel %vm1344, %v4097, %v4099
        %v4102 = vsel %vm1344, %v4099, %v4093
        %v4108 = vsel %vm1356, %v4093, %v4095
        %4110 = vrot.lane.b32.xlu0 %v4031, 127
        %v4111 = vpop.permute.xlu0 %4110
        %4112 = vrot.lane.b32.xlu0 %v4032, 127
        %v4113 = vpop.permute.xlu0 %4112
        %4114 = vrot.lane.b32.xlu0 %v4033, 127
        %v4115 = vpop.permute.xlu0 %4114
        %4116 = vrot.lane.b32.xlu0 %v4020, 127
        %v4117 = vpop.permute.xlu0 %4116
        %v4118 = vsel %vm1384, %v4111, %v4113
        %v4119 = vsel %vm1384, %v4113, %v4115
        %v4120 = vsel %vm1384, %v4115, %v4117
        %v4126 = vsel %vm1396, %v4117, %v4111
        %4128 = vrot.lane.b32.xlu0 %v4031, 123
        %v4129 = vpop.permute.xlu0 %4128
        %4130 = vrot.lane.b32.xlu0 %v4032, 123
        %v4131 = vpop.permute.xlu0 %4130
        %4132 = vrot.lane.b32.xlu0 %v4033, 123
        %v4133 = vpop.permute.xlu0 %4132
        %4134 = vrot.lane.b32.xlu0 %v4020, 123
        %v4135 = vpop.permute.xlu0 %4134
        %vm4136 = vcmask 1006592
        %v4137 = vsel %vm4136, %v4129, %v4131
        %v4138 = vsel %vm4136, %v4131, %v4133
        %v4139 = vsel %vm4136, %v4133, %v4135
        %vm4143 = vcmask 1006592
        %v4146 = vsel %vm4143, %v4135, %v4129
        %4148 = vrot.lane.b32.xlu0 %v4031, 122
        %v4149 = vpop.permute.xlu0 %4148
        %4150 = vrot.lane.b32.xlu0 %v4032, 122
        %v4151 = vpop.permute.xlu0 %4150
        %4152 = vrot.lane.b32.xlu0 %v4033, 122
        %v4153 = vpop.permute.xlu0 %4152
        %4154 = vrot.lane.b32.xlu0 %v4020, 122
        %v4155 = vpop.permute.xlu0 %4154
        %vm4156 = vcmask 998400
        %v4157 = vsel %vm4156, %v4149, %v4151
        %v4158 = vsel %vm4156, %v4151, %v4153
        %v4159 = vsel %vm4156, %v4153, %v4155
        %vm4163 = vcmask 998400
        %v4166 = vsel %vm4163, %v4155, %v4149
        %4168 = vrot.lane.b32.xlu0 %v4031, 121
        %v4169 = vpop.permute.xlu0 %4168
        %4170 = vrot.lane.b32.xlu0 %v4032, 121
        %v4171 = vpop.permute.xlu0 %4170
        %4172 = vrot.lane.b32.xlu0 %v4033, 121
        %v4173 = vpop.permute.xlu0 %4172
        %4174 = vrot.lane.b32.xlu0 %v4020, 121
        %v4175 = vpop.permute.xlu0 %4174
        %vm4176 = vcmask 990208
        %v4177 = vsel %vm4176, %v4169, %v4171
        %v4178 = vsel %vm4176, %v4171, %v4173
        %v4179 = vsel %vm4176, %v4173, %v4175
        %vm4183 = vcmask 990208
        %v4186 = vsel %vm4183, %v4175, %v4169
        %v4192 = vld [vmem:[#allocation13] sm:$0xff]
        %v4193 = vld [vmem:[#allocation13 + $0x8] sm:$0xff]
        %v4194 = vld [vmem:[#allocation13 + $0x10] sm:$0xff]
        %v4195 = vld [vmem:[#allocation13 + $0x18] sm:$0xff]
        %v4196 = vld [vmem:[%s14] sm:$0xff]
        %v4197 = vld [vmem:[%s14 + $0x8] sm:$0xff]
        %v4198 = vld [vmem:[%s14 + $0x10] sm:$0xff]
        %v4199 = vld [vmem:[%s14 + $0x18] sm:$0xff]
        %4201 = vset.pattern.permute.xlu0 0
        %4202 = vperm.xlu0 %4201, %v4196
        %v4203 = vpop.permute.xlu0 %4202
        %4206 = vset.pattern.permute.xlu0 0
        %4207 = vperm.xlu0 %4206, %v4197
        %v4208 = vpop.permute.xlu0 %4207
        %4211 = vset.pattern.permute.xlu0 0
        %4212 = vperm.xlu0 %4211, %v4198
        %v4213 = vpop.permute.xlu0 %4212
        %4216 = vset.pattern.permute.xlu0 0
        %4217 = vperm.xlu0 %4216, %v4199
        %v4218 = vpop.permute.xlu0 %4217
        %v4224 = vunpack.c.l.b16 %v4192
        %v4225 = vunpack.c.h.b16 %v4192
        %v4226 = vunpack.c.l.b16 %v4193
        %v4227 = vunpack.c.h.b16 %v4193
        %v4228 = vunpack.c.l.b16 %v4194
        %v4229 = vunpack.c.h.b16 %v4194
        %v4230 = vunpack.c.l.b16 %v4195
        %v4231 = vunpack.c.h.b16 %v4195
        %v4232 = vpack.c.b16 %v4226, %v4224
        %v4233 = vpack.c.b16 %v4227, %v4225
        %v4234 = vpack.c.b16 %v4230, %v4228
        %v4235 = vpack.c.b16 %v4231, %v4229
        %v4239 = vsel %vm3740, %v4233, 0
        %v4242 = vsel %vm3740, %v4235, 0
        %4244 = vmatpush.bf16.msra.mxu0 %v4157
        %4245 = vmatpush.bf16.msra.mxu0 %v4137
        %4246 = vmatpush.bf16.msra.mxu0 %v4118
        %4247 = vmatpush.bf16.msra.mxu0 %v4031
        %4248 = vmatpush.bf16.msra.mxu0 %v4108
        %4249 = vmatpush.bf16.msra.mxu0 %v4090
        %4250 = vmatpush.bf16.msra.mxu0 %v4070
        %4251 = vmatpush.bf16.msra.mxu0 %v4050
        %4252 = vmatmul.bf16.gmra.mxu0 %v4232
        %v4253 = vpop.f32.mrf.mxu0
        %v4254 = vadd.f32 %v4203, %v4253
        %v4255 = vpop.f32.mrf.mxu0
        %v4256 = vadd.f32 %v4208, %v4255
        %4257 = vmatmul.bf16.gmra.mxu0 %v4234
        %v4258 = vpop.f32.mrf.mxu0
        %v4259 = vadd.f32 %v4213, %v4258
        %v4260 = vpop.f32.mrf.mxu0
        %v4261 = vadd.f32 %v4218, %v4260
        %4262 = vdwg.mxu0
        %4263 = vmatpush.bf16.msra.mxu0 0
        %4264 = vmatpush.bf16.msra.mxu0 0
        %4265 = vmatpush.bf16.msra.mxu0 0
        %4266 = vmatpush.bf16.msra.mxu0 0
        %4267 = vmatpush.bf16.msra.mxu0 0
        %4268 = vmatpush.bf16.msra.mxu0 0
        %4269 = vmatpush.bf16.msra.mxu0 0
        %4270 = vmatpush.bf16.msra.mxu0 %v4177
        %4271 = vmatmul.bf16.gmra.mxu0 %v4239
        %v4272 = vpop.f32.mrf.mxu0
        %v4273 = vadd.f32 %v4254, %v4272
        %v4274 = vpop.f32.mrf.mxu0
        %v4275 = vadd.f32 %v4256, %v4274
        %4276 = vmatmul.bf16.gmra.mxu0 %v4242
        %v4277 = vpop.f32.mrf.mxu0
        %v4278 = vadd.f32 %v4259, %v4277
        %v4279 = vpop.f32.mrf.mxu0
        %v4280 = vadd.f32 %v4261, %v4279
        %4281 = vdwg.mxu0
        %4282 = vmatpush.bf16.msra.mxu0 %v4158
        %4283 = vmatpush.bf16.msra.mxu0 %v4138
        %4284 = vmatpush.bf16.msra.mxu0 %v4119
        %4285 = vmatpush.bf16.msra.mxu0 %v4032
        %4286 = vmatpush.bf16.msra.mxu0 %v4100
        %4287 = vmatpush.bf16.msra.mxu0 %v4081
        %4288 = vmatpush.bf16.msra.mxu0 %v4061
        %4289 = vmatpush.bf16.msra.mxu0 %v4041
        %4290 = vmatmul.bf16.gmra.mxu0 %v4232
        %v4291 = vpop.f32.mrf.mxu0
        %v4292 = vadd.f32 %v4203, %v4291
        %v4293 = vpop.f32.mrf.mxu0
        %v4294 = vadd.f32 %v4208, %v4293
        %4295 = vmatmul.bf16.gmra.mxu0 %v4234
        %v4296 = vpop.f32.mrf.mxu0
        %v4297 = vadd.f32 %v4213, %v4296
        %v4298 = vpop.f32.mrf.mxu0
        %v4299 = vadd.f32 %v4218, %v4298
        %4300 = vdwg.mxu0
        %4301 = vmatpush.bf16.msra.mxu0 0
        %4302 = vmatpush.bf16.msra.mxu0 0
        %4303 = vmatpush.bf16.msra.mxu0 0
        %4304 = vmatpush.bf16.msra.mxu0 0
        %4305 = vmatpush.bf16.msra.mxu0 0
        %4306 = vmatpush.bf16.msra.mxu0 0
        %4307 = vmatpush.bf16.msra.mxu0 0
        %4308 = vmatpush.bf16.msra.mxu0 %v4178
        %4309 = vmatmul.bf16.gmra.mxu0 %v4239
        %v4310 = vpop.f32.mrf.mxu0
        %v4311 = vadd.f32 %v4292, %v4310
        %v4312 = vpop.f32.mrf.mxu0
        %v4313 = vadd.f32 %v4294, %v4312
        %4314 = vmatmul.bf16.gmra.mxu0 %v4242
        %v4315 = vpop.f32.mrf.mxu0
        %v4316 = vadd.f32 %v4297, %v4315
        %v4317 = vpop.f32.mrf.mxu0
        %v4318 = vadd.f32 %v4299, %v4317
        %4319 = vdwg.mxu0
        %4320 = vmatpush.bf16.msra.mxu0 %v4159
        %4321 = vmatpush.bf16.msra.mxu0 %v4139
        %4322 = vmatpush.bf16.msra.mxu0 %v4120
        %4323 = vmatpush.bf16.msra.mxu0 %v4033
        %4324 = vmatpush.bf16.msra.mxu0 %v4101
        %4325 = vmatpush.bf16.msra.mxu0 %v4082
        %4326 = vmatpush.bf16.msra.mxu0 %v4062
        %4327 = vmatpush.bf16.msra.mxu0 %v4042
        %4328 = vmatmul.bf16.gmra.mxu0 %v4232
        %v4329 = vpop.f32.mrf.mxu0
        %v4330 = vadd.f32 %v4203, %v4329
        %v4331 = vpop.f32.mrf.mxu0
        %v4332 = vadd.f32 %v4208, %v4331
        %4333 = vmatmul.bf16.gmra.mxu0 %v4234
        %v4334 = vpop.f32.mrf.mxu0
        %v4335 = vadd.f32 %v4213, %v4334
        %v4336 = vpop.f32.mrf.mxu0
        %v4337 = vadd.f32 %v4218, %v4336
        %4338 = vdwg.mxu0
        %4339 = vmatpush.bf16.msra.mxu0 0
        %4340 = vmatpush.bf16.msra.mxu0 0
        %4341 = vmatpush.bf16.msra.mxu0 0
        %4342 = vmatpush.bf16.msra.mxu0 0
        %4343 = vmatpush.bf16.msra.mxu0 0
        %4344 = vmatpush.bf16.msra.mxu0 0
        %4345 = vmatpush.bf16.msra.mxu0 0
        %4346 = vmatpush.bf16.msra.mxu0 %v4179
        %4347 = vmatmul.bf16.gmra.mxu0 %v4239
        %v4348 = vpop.f32.mrf.mxu0
        %v4349 = vadd.f32 %v4330, %v4348
        %v4350 = vpop.f32.mrf.mxu0
        %v4351 = vadd.f32 %v4332, %v4350
        %4352 = vmatmul.bf16.gmra.mxu0 %v4242
        %v4353 = vpop.f32.mrf.mxu0
        %v4354 = vadd.f32 %v4335, %v4353
        %v4355 = vpop.f32.mrf.mxu0
        %v4356 = vadd.f32 %v4337, %v4355
        %4357 = vdwg.mxu0
        %4358 = vmatpush.bf16.msra.mxu0 %v4166
        %4359 = vmatpush.bf16.msra.mxu0 %v4146
        %4360 = vmatpush.bf16.msra.mxu0 %v4126
        %4361 = vmatpush.bf16.msra.mxu0 %v4020
        %4362 = vmatpush.bf16.msra.mxu0 %v4102
        %4363 = vmatpush.bf16.msra.mxu0 %v4083
        %4364 = vmatpush.bf16.msra.mxu0 %v4063
        %4365 = vmatpush.bf16.msra.mxu0 %v4043
        %4366 = vmatmul.bf16.gmra.mxu0 %v4232
        %v4367 = vpop.f32.mrf.mxu0
        %v4368 = vadd.f32 %v4203, %v4367
        %v4369 = vpop.f32.mrf.mxu0
        %v4370 = vadd.f32 %v4208, %v4369
        %4371 = vmatmul.bf16.gmra.mxu0 %v4234
        %v4372 = vpop.f32.mrf.mxu0
        %v4373 = vadd.f32 %v4213, %v4372
        %v4374 = vpop.f32.mrf.mxu0
        %v4375 = vadd.f32 %v4218, %v4374
        %4376 = vdwg.mxu0
        %4377 = vmatpush.bf16.msra.mxu0 0
        %4378 = vmatpush.bf16.msra.mxu0 0
        %4379 = vmatpush.bf16.msra.mxu0 0
        %4380 = vmatpush.bf16.msra.mxu0 0
        %4381 = vmatpush.bf16.msra.mxu0 0
        %4382 = vmatpush.bf16.msra.mxu0 0
        %4383 = vmatpush.bf16.msra.mxu0 0
        %4384 = vmatpush.bf16.msra.mxu0 %v4186
        %4385 = vmatmul.bf16.gmra.mxu0 %v4239
        %v4386 = vpop.f32.mrf.mxu0
        %v4387 = vadd.f32 %v4368, %v4386
        %v4388 = vpop.f32.mrf.mxu0
        %v4389 = vadd.f32 %v4370, %v4388
        %4390 = vmatmul.bf16.gmra.mxu0 %v4242
        %v4391 = vpop.f32.mrf.mxu0
        %v4392 = vadd.f32 %v4373, %v4391
        %v4393 = vpop.f32.mrf.mxu0
        %v4394 = vadd.f32 %v4375, %v4393
        %4395 = vdwg.mxu0
        %vm4396 = vcmp.ge.f32.partialorder %v4273, 0.0
        %vm4397 = vcmp.ge.f32.partialorder %v4311, 0.0
        %vm4398 = vcmp.ge.f32.partialorder %v4349, 0.0
        %vm4399 = vcmp.ge.f32.partialorder %v4387, 0.0
        %vm4400 = vcmp.ge.f32.partialorder %v4275, 0.0
        %vm4401 = vcmp.ge.f32.partialorder %v4313, 0.0
        %vm4402 = vcmp.ge.f32.partialorder %v4351, 0.0
        %vm4403 = vcmp.ge.f32.partialorder %v4389, 0.0
        %vm4404 = vcmp.ge.f32.partialorder %v4278, 0.0
        %vm4405 = vcmp.ge.f32.partialorder %v4316, 0.0
        %vm4406 = vcmp.ge.f32.partialorder %v4354, 0.0
        %vm4407 = vcmp.ge.f32.partialorder %v4392, 0.0
        %vm4408 = vcmp.ge.f32.partialorder %v4280, 0.0
        %vm4409 = vcmp.ge.f32.partialorder %v4318, 0.0
        %vm4410 = vcmp.ge.f32.partialorder %v4356, 0.0
        %vm4411 = vcmp.ge.f32.partialorder %v4394, 0.0
        %v4412 = vmul.f32 %v4273, 0.01
        %v4413 = vmul.f32 %v4311, 0.01
        %v4414 = vmul.f32 %v4349, 0.01
        %v4415 = vmul.f32 %v4387, 0.01
        %v4416 = vmul.f32 %v4275, 0.01
        %v4417 = vmul.f32 %v4313, 0.01
        %v4418 = vmul.f32 %v4351, 0.01
        %v4419 = vmul.f32 %v4389, 0.01
        %v4420 = vmul.f32 %v4278, 0.01
        %v4421 = vmul.f32 %v4316, 0.01
        %v4422 = vmul.f32 %v4354, 0.01
        %v4423 = vmul.f32 %v4392, 0.01
        %v4424 = vmul.f32 %v4280, 0.01
        %v4425 = vmul.f32 %v4318, 0.01
        %v4426 = vmul.f32 %v4356, 0.01
        %v4427 = vmul.f32 %v4394, 0.01
        %v4428 = vsel %vm4396, %v4273, %v4412
        %v4429 = vsel %vm4397, %v4311, %v4413
        %v4430 = vsel %vm4398, %v4349, %v4414
        %v4431 = vsel %vm4399, %v4387, %v4415
        %v4432 = vsel %vm4400, %v4275, %v4416
        %v4433 = vsel %vm4401, %v4313, %v4417
        %v4434 = vsel %vm4402, %v4351, %v4418
        %v4435 = vsel %vm4403, %v4389, %v4419
        %v4436 = vsel %vm4404, %v4278, %v4420
        %v4437 = vsel %vm4405, %v4316, %v4421
        %v4438 = vsel %vm4406, %v4354, %v4422
        %v4439 = vsel %vm4407, %v4392, %v4423
        %v4440 = vsel %vm4408, %v4280, %v4424
        %v4441 = vsel %vm4409, %v4318, %v4425
        %v4442 = vsel %vm4410, %v4356, %v4426
        %v4443 = vsel %vm4411, %v4394, %v4427
        %v4444 = vld [vmem:[%s19] sm:$0xf]
        %v4446 = vperm.slane %v4444, 0
        %v4447 = vperm.slane %v4444, 1
        %v4448 = vperm.slane %v4444, 2
        %v4449 = vperm.slane %v4444, 3
        %v4454 = vmul.f32 %v4428, %v4446
        %v4455 = vmul.f32 %v4429, %v4447
        %v4456 = vmul.f32 %v4430, %v4448
        %v4457 = vmul.f32 %v4431, %v4449
        %v4458 = vmul.f32 %v4432, %v4446
        %v4459 = vmul.f32 %v4433, %v4447
        %v4460 = vmul.f32 %v4434, %v4448
        %v4461 = vmul.f32 %v4435, %v4449
        %v4462 = vmul.f32 %v4436, %v4446
        %v4463 = vmul.f32 %v4437, %v4447
        %v4464 = vmul.f32 %v4438, %v4448
        %v4465 = vmul.f32 %v4439, %v4449
        %v4466 = vmul.f32 %v4440, %v4446
        %v4467 = vmul.f32 %v4441, %v4447
        %v4468 = vmul.f32 %v4442, %v4448
        %v4469 = vmul.f32 %v4443, %v4449
        %v4470 = vpack.c.bf16 %v4455, %v4454
        %v4471 = vpack.c.bf16 %v4457, %v4456
        %v4472 = vpack.c.bf16 %v4459, %v4458
        %v4473 = vpack.c.bf16 %v4461, %v4460
        %v4474 = vpack.c.bf16 %v4463, %v4462
        %v4475 = vpack.c.bf16 %v4465, %v4464
        %v4476 = vpack.c.bf16 %v4467, %v4466
        %v4477 = vpack.c.bf16 %v4469, %v4468
        %v4482 = vunpack.c.h.b16 %v4471
        %v4483 = vunpack.c.h.b16 %v4473
        %v4484 = vunpack.c.h.b16 %v4475
        %v4485 = vunpack.c.h.b16 %v4477
        %v4486 = vpack.c.b16 %v4483, %v4482
        %v4487 = vpack.c.b16 %v4485, %v4484
        %4488 = vrot.lane.b32.xlu0 %v4486, 7
        %v4489 = vpop.permute.xlu0 %4488
        %4490 = vrot.lane.b32.xlu0 %v4487, 7
        %v4491 = vpop.permute.xlu0 %4490
        %v4496 = vunpack.c.l.b16 %v4470
        %v4497 = vunpack.c.h.b16 %v4470
        %v4498 = vunpack.c.l.b16 %v4471
        %v4499 = vunpack.c.l.b16 %v4472
        %v4500 = vunpack.c.h.b16 %v4472
        %v4501 = vunpack.c.l.b16 %v4473
        %v4502 = vunpack.c.l.b16 %v4474
        %v4503 = vunpack.c.h.b16 %v4474
        %v4504 = vunpack.c.l.b16 %v4475
        %v4505 = vunpack.c.l.b16 %v4476
        %v4506 = vunpack.c.h.b16 %v4476
        %v4507 = vunpack.c.l.b16 %v4477
        %v4508 = vpack.c.b16 %v4499, %v4496
        %v4509 = vpack.c.b16 %v4500, %v4497
        %v4510 = vpack.c.b16 %v4501, %v4498
        %v4511 = vpack.c.b16 %v4505, %v4502
        %v4512 = vpack.c.b16 %v4506, %v4503
        %v4513 = vpack.c.b16 %v4507, %v4504
        %4514 = vrot.lane.b32.xlu0 %v4508, 7
        %v4515 = vpop.permute.xlu0 %4514
        %4516 = vrot.lane.b32.xlu0 %v4509, 7
        %v4517 = vpop.permute.xlu0 %4516
        %4518 = vrot.lane.b32.xlu0 %v4510, 7
        %v4519 = vpop.permute.xlu0 %4518
        %4520 = vrot.lane.b32.xlu0 %v4511, 7
        %v4521 = vpop.permute.xlu0 %4520
        %4522 = vrot.lane.b32.xlu0 %v4512, 7
        %v4523 = vpop.permute.xlu0 %4522
        %4524 = vrot.lane.b32.xlu0 %v4513, 7
        %v4525 = vpop.permute.xlu0 %4524
        %v4526 = vsel %vm4040, %v4515, %v4517
        %v4527 = vsel %vm4040, %v4517, %v4519
        %v4528 = vsel %vm4040, %v4519, %v4489
        %v4529 = vsel %vm4040, %v4521, %v4523
        %v4530 = vsel %vm4040, %v4523, %v4525
        %v4531 = vsel %vm4040, %v4525, %v4491
        %v4540 = vsel %vm4047, %v4489, %v4515
        %v4544 = vsel %vm4047, %v4491, %v4521
        %4546 = vrot.lane.b32.xlu0 %v4486, 6
        %v4547 = vpop.permute.xlu0 %4546
        %4548 = vrot.lane.b32.xlu0 %v4487, 6
        %v4549 = vpop.permute.xlu0 %4548
        %4550 = vrot.lane.b32.xlu0 %v4508, 6
        %v4551 = vpop.permute.xlu0 %4550
        %4552 = vrot.lane.b32.xlu0 %v4509, 6
        %v4553 = vpop.permute.xlu0 %4552
        %4554 = vrot.lane.b32.xlu0 %v4510, 6
        %v4555 = vpop.permute.xlu0 %4554
        %4556 = vrot.lane.b32.xlu0 %v4511, 6
        %v4557 = vpop.permute.xlu0 %4556
        %4558 = vrot.lane.b32.xlu0 %v4512, 6
        %v4559 = vpop.permute.xlu0 %4558
        %4560 = vrot.lane.b32.xlu0 %v4513, 6
        %v4561 = vpop.permute.xlu0 %4560
        %v4562 = vsel %vm4060, %v4551, %v4553
        %v4563 = vsel %vm4060, %v4553, %v4555
        %v4564 = vsel %vm4060, %v4555, %v4547
        %v4565 = vsel %vm4060, %v4557, %v4559
        %v4566 = vsel %vm4060, %v4559, %v4561
        %v4567 = vsel %vm4060, %v4561, %v4549
        %v4576 = vsel %vm4067, %v4547, %v4551
        %v4580 = vsel %vm4067, %v4549, %v4557
        %4582 = vrot.lane.b32.xlu0 %v4486, 5
        %v4583 = vpop.permute.xlu0 %4582
        %4584 = vrot.lane.b32.xlu0 %v4487, 5
        %v4585 = vpop.permute.xlu0 %4584
        %4586 = vrot.lane.b32.xlu0 %v4508, 5
        %v4587 = vpop.permute.xlu0 %4586
        %4588 = vrot.lane.b32.xlu0 %v4509, 5
        %v4589 = vpop.permute.xlu0 %4588
        %4590 = vrot.lane.b32.xlu0 %v4510, 5
        %v4591 = vpop.permute.xlu0 %4590
        %4592 = vrot.lane.b32.xlu0 %v4511, 5
        %v4593 = vpop.permute.xlu0 %4592
        %4594 = vrot.lane.b32.xlu0 %v4512, 5
        %v4595 = vpop.permute.xlu0 %4594
        %4596 = vrot.lane.b32.xlu0 %v4513, 5
        %v4597 = vpop.permute.xlu0 %4596
        %v4598 = vsel %vm4080, %v4587, %v4589
        %v4599 = vsel %vm4080, %v4589, %v4591
        %v4600 = vsel %vm4080, %v4591, %v4583
        %v4601 = vsel %vm4080, %v4593, %v4595
        %v4602 = vsel %vm4080, %v4595, %v4597
        %v4603 = vsel %vm4080, %v4597, %v4585
        %v4612 = vsel %vm4087, %v4583, %v4587
        %v4616 = vsel %vm4087, %v4585, %v4593
        %4618 = vrot.lane.b32.xlu0 %v4486, 1
        %v4619 = vpop.permute.xlu0 %4618
        %4620 = vrot.lane.b32.xlu0 %v4487, 1
        %v4621 = vpop.permute.xlu0 %4620
        %4622 = vrot.lane.b32.xlu0 %v4508, 1
        %v4623 = vpop.permute.xlu0 %4622
        %4624 = vrot.lane.b32.xlu0 %v4509, 1
        %v4625 = vpop.permute.xlu0 %4624
        %4626 = vrot.lane.b32.xlu0 %v4510, 1
        %v4627 = vpop.permute.xlu0 %4626
        %4628 = vrot.lane.b32.xlu0 %v4511, 1
        %v4629 = vpop.permute.xlu0 %4628
        %4630 = vrot.lane.b32.xlu0 %v4512, 1
        %v4631 = vpop.permute.xlu0 %4630
        %4632 = vrot.lane.b32.xlu0 %v4513, 1
        %v4633 = vpop.permute.xlu0 %4632
        %v4634 = vsel %vm1344, %v4623, %v4625
        %v4635 = vsel %vm1344, %v4625, %v4627
        %v4636 = vsel %vm1344, %v4627, %v4619
        %v4637 = vsel %vm1344, %v4629, %v4631
        %v4638 = vsel %vm1344, %v4631, %v4633
        %v4639 = vsel %vm1344, %v4633, %v4621
        %v4648 = vsel %vm1356, %v4619, %v4623
        %v4652 = vsel %vm1356, %v4621, %v4629
        %4654 = vrot.lane.b32.xlu0 %v4508, 127
        %v4655 = vpop.permute.xlu0 %4654
        %4656 = vrot.lane.b32.xlu0 %v4509, 127
        %v4657 = vpop.permute.xlu0 %4656
        %4658 = vrot.lane.b32.xlu0 %v4510, 127
        %v4659 = vpop.permute.xlu0 %4658
        %4660 = vrot.lane.b32.xlu0 %v4486, 127
        %v4661 = vpop.permute.xlu0 %4660
        %4662 = vrot.lane.b32.xlu0 %v4511, 127
        %v4663 = vpop.permute.xlu0 %4662
        %4664 = vrot.lane.b32.xlu0 %v4512, 127
        %v4665 = vpop.permute.xlu0 %4664
        %4666 = vrot.lane.b32.xlu0 %v4513, 127
        %v4667 = vpop.permute.xlu0 %4666
        %4668 = vrot.lane.b32.xlu0 %v4487, 127
        %v4669 = vpop.permute.xlu0 %4668
        %v4670 = vsel %vm1384, %v4655, %v4657
        %v4671 = vsel %vm1384, %v4657, %v4659
        %v4672 = vsel %vm1384, %v4659, %v4661
        %v4673 = vsel %vm1384, %v4663, %v4665
        %v4674 = vsel %vm1384, %v4665, %v4667
        %v4675 = vsel %vm1384, %v4667, %v4669
        %v4684 = vsel %vm1396, %v4661, %v4655
        %v4688 = vsel %vm1396, %v4669, %v4663
        %4690 = vrot.lane.b32.xlu0 %v4508, 123
        %v4691 = vpop.permute.xlu0 %4690
        %4692 = vrot.lane.b32.xlu0 %v4509, 123
        %v4693 = vpop.permute.xlu0 %4692
        %4694 = vrot.lane.b32.xlu0 %v4510, 123
        %v4695 = vpop.permute.xlu0 %4694
        %4696 = vrot.lane.b32.xlu0 %v4486, 123
        %v4697 = vpop.permute.xlu0 %4696
        %4698 = vrot.lane.b32.xlu0 %v4511, 123
        %v4699 = vpop.permute.xlu0 %4698
        %4700 = vrot.lane.b32.xlu0 %v4512, 123
        %v4701 = vpop.permute.xlu0 %4700
        %4702 = vrot.lane.b32.xlu0 %v4513, 123
        %v4703 = vpop.permute.xlu0 %4702
        %4704 = vrot.lane.b32.xlu0 %v4487, 123
        %v4705 = vpop.permute.xlu0 %4704
        %v4706 = vsel %vm4136, %v4691, %v4693
        %v4707 = vsel %vm4136, %v4693, %v4695
        %v4708 = vsel %vm4136, %v4695, %v4697
        %v4709 = vsel %vm4136, %v4699, %v4701
        %v4710 = vsel %vm4136, %v4701, %v4703
        %v4711 = vsel %vm4136, %v4703, %v4705
        %v4720 = vsel %vm4143, %v4697, %v4691
        %v4724 = vsel %vm4143, %v4705, %v4699
        %4726 = vrot.lane.b32.xlu0 %v4508, 122
        %v4727 = vpop.permute.xlu0 %4726
        %4728 = vrot.lane.b32.xlu0 %v4509, 122
        %v4729 = vpop.permute.xlu0 %4728
        %4730 = vrot.lane.b32.xlu0 %v4510, 122
        %v4731 = vpop.permute.xlu0 %4730
        %4732 = vrot.lane.b32.xlu0 %v4486, 122
        %v4733 = vpop.permute.xlu0 %4732
        %4734 = vrot.lane.b32.xlu0 %v4511, 122
        %v4735 = vpop.permute.xlu0 %4734
        %4736 = vrot.lane.b32.xlu0 %v4512, 122
        %v4737 = vpop.permute.xlu0 %4736
        %4738 = vrot.lane.b32.xlu0 %v4513, 122
        %v4739 = vpop.permute.xlu0 %4738
        %4740 = vrot.lane.b32.xlu0 %v4487, 122
        %v4741 = vpop.permute.xlu0 %4740
        %v4742 = vsel %vm4156, %v4727, %v4729
        %v4743 = vsel %vm4156, %v4729, %v4731
        %v4744 = vsel %vm4156, %v4731, %v4733
        %v4745 = vsel %vm4156, %v4735, %v4737
        %v4746 = vsel %vm4156, %v4737, %v4739
        %v4747 = vsel %vm4156, %v4739, %v4741
        %v4756 = vsel %vm4163, %v4733, %v4727
        %v4760 = vsel %vm4163, %v4741, %v4735
        %4762 = vrot.lane.b32.xlu0 %v4508, 121
        %v4763 = vpop.permute.xlu0 %4762
        %4764 = vrot.lane.b32.xlu0 %v4509, 121
        %v4765 = vpop.permute.xlu0 %4764
        %4766 = vrot.lane.b32.xlu0 %v4510, 121
        %v4767 = vpop.permute.xlu0 %4766
        %4768 = vrot.lane.b32.xlu0 %v4486, 121
        %v4769 = vpop.permute.xlu0 %4768
        %4770 = vrot.lane.b32.xlu0 %v4511, 121
        %v4771 = vpop.permute.xlu0 %4770
        %4772 = vrot.lane.b32.xlu0 %v4512, 121
        %v4773 = vpop.permute.xlu0 %4772
        %4774 = vrot.lane.b32.xlu0 %v4513, 121
        %v4775 = vpop.permute.xlu0 %4774
        %4776 = vrot.lane.b32.xlu0 %v4487, 121
        %v4777 = vpop.permute.xlu0 %4776
        %v4778 = vsel %vm4176, %v4763, %v4765
        %v4779 = vsel %vm4176, %v4765, %v4767
        %v4780 = vsel %vm4176, %v4767, %v4769
        %v4781 = vsel %vm4176, %v4771, %v4773
        %v4782 = vsel %vm4176, %v4773, %v4775
        %v4783 = vsel %vm4176, %v4775, %v4777
        %v4792 = vsel %vm4183, %v4769, %v4763
        %v4796 = vsel %vm4183, %v4777, %v4771
        %v4806 = vld [vmem:[#allocation14] sm:$0xff]
        %v4807 = vld [vmem:[#allocation14 + $0x8] sm:$0xf]
        %v4808 = vld [vmem:[%s16] sm:$0xff]
        %4810 = vset.pattern.permute.xlu0 0
        %4811 = vperm.xlu0 %4810, %v4808
        %v4812 = vpop.permute.xlu0 %4811
        %v4816 = vunpack.c.l.b16 %v4806
        %v4817 = vunpack.c.h.b16 %v4806
        %v4818 = vunpack.c.l.b16 %v4807
        %v4819 = vpack.c.b16 %v4816, %v4816
        %v4820 = vpack.c.b16 %v4817, %v4817
        %v4821 = vpack.c.b16 %v4818, %v4818
        %vm4824 = vcmask 261120
        %v4826 = vsel %vm4824, %v4821, 0
        %4828 = vmatpush.bf16.msra.mxu0 %v4652
        %4829 = vmatpush.bf16.msra.mxu0 %v4648
        %4830 = vmatpush.bf16.msra.mxu0 %v4616
        %4831 = vmatpush.bf16.msra.mxu0 %v4612
        %4832 = vmatpush.bf16.msra.mxu0 %v4580
        %4833 = vmatpush.bf16.msra.mxu0 %v4576
        %4834 = vmatpush.bf16.msra.mxu0 %v4544
        %4835 = vmatpush.bf16.msra.mxu0 %v4540
        %4836 = vmatmul.bf16.gmra.mxu0 %v4819
        %v4837 = vpop.f32.mrf.mxu0
        %v4838 = vadd.f32 %v4812, %v4837
        %v4839 = vpop.f32.mrf.mxu0
        %4840 = vdwg.mxu0
        %4841 = vmatpush.bf16.msra.mxu0 %v4745
        %4842 = vmatpush.bf16.msra.mxu0 %v4742
        %4843 = vmatpush.bf16.msra.mxu0 %v4709
        %4844 = vmatpush.bf16.msra.mxu0 %v4706
        %4845 = vmatpush.bf16.msra.mxu0 %v4673
        %4846 = vmatpush.bf16.msra.mxu0 %v4670
        %4847 = vmatpush.bf16.msra.mxu0 %v4511
        %4848 = vmatpush.bf16.msra.mxu0 %v4508
        %4849 = vmatmul.bf16.gmra.mxu0 %v4820
        %v4850 = vpop.f32.mrf.mxu0
        %v4851 = vadd.f32 %v4838, %v4850
        %v4852 = vpop.f32.mrf.mxu0
        %4853 = vdwg.mxu0
        %4854 = vmatpush.bf16.msra.mxu0 0
        %4855 = vmatpush.bf16.msra.mxu0 0
        %4856 = vmatpush.bf16.msra.mxu0 0
        %4857 = vmatpush.bf16.msra.mxu0 0
        %4858 = vmatpush.bf16.msra.mxu0 0
        %4859 = vmatpush.bf16.msra.mxu0 0
        %4860 = vmatpush.bf16.msra.mxu0 %v4781
        %4861 = vmatpush.bf16.msra.mxu0 %v4778
        %4862 = vmatmul.bf16.gmra.mxu0 %v4826
        %v4863 = vpop.f32.mrf.mxu0
        %v4864 = vadd.f32 %v4851, %v4863
        %v4865 = vpop.f32.mrf.mxu0
        %4866 = vdwg.mxu0
        %4867 = vmatpush.bf16.msra.mxu0 %v4637
        %4868 = vmatpush.bf16.msra.mxu0 %v4634
        %4869 = vmatpush.bf16.msra.mxu0 %v4601
        %4870 = vmatpush.bf16.msra.mxu0 %v4598
        %4871 = vmatpush.bf16.msra.mxu0 %v4565
        %4872 = vmatpush.bf16.msra.mxu0 %v4562
        %4873 = vmatpush.bf16.msra.mxu0 %v4529
        %4874 = vmatpush.bf16.msra.mxu0 %v4526
        %4875 = vmatmul.bf16.gmra.mxu0 %v4819
        %v4876 = vpop.f32.mrf.mxu0
        %v4877 = vadd.f32 %v4812, %v4876
        %v4878 = vpop.f32.mrf.mxu0
        %4879 = vdwg.mxu0
        %4880 = vmatpush.bf16.msra.mxu0 %v4746
        %4881 = vmatpush.bf16.msra.mxu0 %v4743
        %4882 = vmatpush.bf16.msra.mxu0 %v4710
        %4883 = vmatpush.bf16.msra.mxu0 %v4707
        %4884 = vmatpush.bf16.msra.mxu0 %v4674
        %4885 = vmatpush.bf16.msra.mxu0 %v4671
        %4886 = vmatpush.bf16.msra.mxu0 %v4512
        %4887 = vmatpush.bf16.msra.mxu0 %v4509
        %4888 = vmatmul.bf16.gmra.mxu0 %v4820
        %v4889 = vpop.f32.mrf.mxu0
        %v4890 = vadd.f32 %v4877, %v4889
        %v4891 = vpop.f32.mrf.mxu0
        %4892 = vdwg.mxu0
        %4893 = vmatpush.bf16.msra.mxu0 0
        %4894 = vmatpush.bf16.msra.mxu0 0
        %4895 = vmatpush.bf16.msra.mxu0 0
        %4896 = vmatpush.bf16.msra.mxu0 0
        %4897 = vmatpush.bf16.msra.mxu0 0
        %4898 = vmatpush.bf16.msra.mxu0 0
        %4899 = vmatpush.bf16.msra.mxu0 %v4782
        %4900 = vmatpush.bf16.msra.mxu0 %v4779
        %4901 = vmatmul.bf16.gmra.mxu0 %v4826
        %v4902 = vpop.f32.mrf.mxu0
        %v4903 = vadd.f32 %v4890, %v4902
        %v4904 = vpop.f32.mrf.mxu0
        %4905 = vdwg.mxu0
        %4906 = vmatpush.bf16.msra.mxu0 %v4638
        %4907 = vmatpush.bf16.msra.mxu0 %v4635
        %4908 = vmatpush.bf16.msra.mxu0 %v4602
        %4909 = vmatpush.bf16.msra.mxu0 %v4599
        %4910 = vmatpush.bf16.msra.mxu0 %v4566
        %4911 = vmatpush.bf16.msra.mxu0 %v4563
        %4912 = vmatpush.bf16.msra.mxu0 %v4530
        %4913 = vmatpush.bf16.msra.mxu0 %v4527
        %4914 = vmatmul.bf16.gmra.mxu0 %v4819
        %v4915 = vpop.f32.mrf.mxu0
        %v4916 = vadd.f32 %v4812, %v4915
        %v4917 = vpop.f32.mrf.mxu0
        %4918 = vdwg.mxu0
        %4919 = vmatpush.bf16.msra.mxu0 %v4747
        %4920 = vmatpush.bf16.msra.mxu0 %v4744
        %4921 = vmatpush.bf16.msra.mxu0 %v4711
        %4922 = vmatpush.bf16.msra.mxu0 %v4708
        %4923 = vmatpush.bf16.msra.mxu0 %v4675
        %4924 = vmatpush.bf16.msra.mxu0 %v4672
        %4925 = vmatpush.bf16.msra.mxu0 %v4513
        %4926 = vmatpush.bf16.msra.mxu0 %v4510
        %4927 = vmatmul.bf16.gmra.mxu0 %v4820
        %v4928 = vpop.f32.mrf.mxu0
        %v4929 = vadd.f32 %v4916, %v4928
        %v4930 = vpop.f32.mrf.mxu0
        %4931 = vdwg.mxu0
        %4932 = vmatpush.bf16.msra.mxu0 0
        %4933 = vmatpush.bf16.msra.mxu0 0
        %4934 = vmatpush.bf16.msra.mxu0 0
        %4935 = vmatpush.bf16.msra.mxu0 0
        %4936 = vmatpush.bf16.msra.mxu0 0
        %4937 = vmatpush.bf16.msra.mxu0 0
        %4938 = vmatpush.bf16.msra.mxu0 %v4783
        %4939 = vmatpush.bf16.msra.mxu0 %v4780
        %4940 = vmatmul.bf16.gmra.mxu0 %v4826
        %v4941 = vpop.f32.mrf.mxu0
        %v4942 = vadd.f32 %v4929, %v4941
        %v4943 = vpop.f32.mrf.mxu0
        %4944 = vdwg.mxu0
        %4945 = vmatpush.bf16.msra.mxu0 %v4639
        %4946 = vmatpush.bf16.msra.mxu0 %v4636
        %4947 = vmatpush.bf16.msra.mxu0 %v4603
        %4948 = vmatpush.bf16.msra.mxu0 %v4600
        %4949 = vmatpush.bf16.msra.mxu0 %v4567
        %4950 = vmatpush.bf16.msra.mxu0 %v4564
        %4951 = vmatpush.bf16.msra.mxu0 %v4531
        %4952 = vmatpush.bf16.msra.mxu0 %v4528
        %4953 = vmatmul.bf16.gmra.mxu0 %v4819
        %v4954 = vpop.f32.mrf.mxu0
        %v4955 = vadd.f32 %v4812, %v4954
        %v4956 = vpop.f32.mrf.mxu0
        %4957 = vdwg.mxu0
        %4958 = vmatpush.bf16.msra.mxu0 %v4760
        %4959 = vmatpush.bf16.msra.mxu0 %v4756
        %4960 = vmatpush.bf16.msra.mxu0 %v4724
        %4961 = vmatpush.bf16.msra.mxu0 %v4720
        %4962 = vmatpush.bf16.msra.mxu0 %v4688
        %4963 = vmatpush.bf16.msra.mxu0 %v4684
        %4964 = vmatpush.bf16.msra.mxu0 %v4487
        %4965 = vmatpush.bf16.msra.mxu0 %v4486
        %4966 = vmatmul.bf16.gmra.mxu0 %v4820
        %v4967 = vpop.f32.mrf.mxu0
        %v4968 = vadd.f32 %v4955, %v4967
        %v4969 = vpop.f32.mrf.mxu0
        %4970 = vdwg.mxu0
        %4971 = vmatpush.bf16.msra.mxu0 0
        %4972 = vmatpush.bf16.msra.mxu0 0
        %4973 = vmatpush.bf16.msra.mxu0 0
        %4974 = vmatpush.bf16.msra.mxu0 0
        %4975 = vmatpush.bf16.msra.mxu0 0
        %4976 = vmatpush.bf16.msra.mxu0 0
        %4977 = vmatpush.bf16.msra.mxu0 %v4796
        %4978 = vmatpush.bf16.msra.mxu0 %v4792
        %4979 = vmatmul.bf16.gmra.mxu0 %v4826
        %v4980 = vpop.f32.mrf.mxu0
        %v4981 = vadd.f32 %v4968, %v4980
        %v4982 = vpop.f32.mrf.mxu0
        %4983 = vdwg.mxu0
        %v4984 = vmul.f32 %v4864, %v4446
        %v4985 = vmul.f32 %v4903, %v4447
        %v4986 = vmul.f32 %v4942, %v4448
        %v4987 = vmul.f32 %v4981, %v4449
        %v4988 = vld [vmem:[#allocation17] sm:$0xff]
        %v4989 = vld [vmem:[#allocation17 + $0x8] sm:$0xff]
        %v4990 = vld [vmem:[#allocation17 + $0x10] sm:$0xff]
        %v4991 = vld [vmem:[#allocation17 + $0x18] sm:$0xff]
        %v4992 = vmul.f32 %v4984, %v4988
        %v4993 = vmul.f32 %v4985, %v4989
        %v4994 = vmul.f32 %v4986, %v4990
        %v4995 = vmul.f32 %v4987, %v4991
        %v4996 = vrot.slane %v4992, 4
        %v4997 = vadd.f32 %v4992, %v4996
        %v4998 = vrot.slane %v4997, 2
        %v4999 = vadd.f32 %v4997, %v4998
        %v5000 = vrot.slane %v4999, 1
        %v5001 = vadd.f32 %v4999, %v5000
        %v5002 = vrot.slane %v4993, 4
        %v5003 = vadd.f32 %v4993, %v5002
        %v5004 = vrot.slane %v5003, 2
        %v5005 = vadd.f32 %v5003, %v5004
        %v5006 = vrot.slane %v5005, 1
        %v5007 = vadd.f32 %v5005, %v5006
        %v5008 = vrot.slane %v4994, 4
        %v5009 = vadd.f32 %v4994, %v5008
        %v5010 = vrot.slane %v5009, 2
        %v5011 = vadd.f32 %v5009, %v5010
        %v5012 = vrot.slane %v5011, 1
        %v5013 = vadd.f32 %v5011, %v5012
        %v5014 = vrot.slane %v4995, 4
        %v5015 = vadd.f32 %v4995, %v5014
        %v5016 = vrot.slane %v5015, 2
        %v5017 = vadd.f32 %v5015, %v5016
        %v5018 = vrot.slane %v5017, 1
        %v5019 = vadd.f32 %v5017, %v5018
        %s5020 = scalar_lea.vmem [#allocation17], 32
        %v5021 = vld [vmem:[%s5020] sm:$0xff]
        %v5022 = vld [vmem:[%s5020 + $0x8] sm:$0xff]
        %v5023 = vld [vmem:[%s5020 + $0x10] sm:$0xff]
        %v5024 = vld [vmem:[%s5020 + $0x18] sm:$0xff]
        %v5025 = vmul.f32 %v4984, %v5021
        %v5026 = vmul.f32 %v4985, %v5022
        %v5027 = vmul.f32 %v4986, %v5023
        %v5028 = vmul.f32 %v4987, %v5024
        %v5029 = vrot.slane %v5025, 4
        %v5030 = vadd.f32 %v5025, %v5029
        %v5031 = vrot.slane %v5030, 2
        %v5032 = vadd.f32 %v5030, %v5031
        %v5033 = vrot.slane %v5032, 1
        %v5034 = vadd.f32 %v5032, %v5033
        %v5035 = vrot.slane %v5026, 4
        %v5036 = vadd.f32 %v5026, %v5035
        %v5037 = vrot.slane %v5036, 2
        %v5038 = vadd.f32 %v5036, %v5037
        %v5039 = vrot.slane %v5038, 1
        %v5040 = vadd.f32 %v5038, %v5039
        %v5041 = vrot.slane %v5027, 4
        %v5042 = vadd.f32 %v5027, %v5041
        %v5043 = vrot.slane %v5042, 2
        %v5044 = vadd.f32 %v5042, %v5043
        %v5045 = vrot.slane %v5044, 1
        %v5046 = vadd.f32 %v5044, %v5045
        %v5047 = vrot.slane %v5028, 4
        %v5048 = vadd.f32 %v5028, %v5047
        %v5049 = vrot.slane %v5048, 2
        %v5050 = vadd.f32 %v5048, %v5049
        %v5051 = vrot.slane %v5050, 1
        %v5052 = vadd.f32 %v5050, %v5051
        %vm5053 = vcmask 1040384
        %v5054 = vsel %vm5053, %v5001, %v5034
        %v5055 = vsel %vm5053, %v5007, %v5040
        %v5056 = vsel %vm5053, %v5013, %v5046
        %v5057 = vsel %vm5053, %v5019, %v5052
        %v5058 = vld [vmem:[#allocation19] sm:$0xff]
        %v5059 = vld [vmem:[#allocation19 + $0x8] sm:$0xff]
        %v5060 = vld [vmem:[#allocation19 + $0x10] sm:$0xff]
        %v5061 = vld [vmem:[#allocation19 + $0x18] sm:$0xff]
        %v5062 = vld [vmem:[#allocation19 + $0x20] sm:$0xff]
        %v5063 = vld [vmem:[#allocation19 + $0x28] sm:$0xff]
        %v5064 = vld [vmem:[#allocation19 + $0x30] sm:$0xff]
        %v5065 = vld [vmem:[#allocation19 + $0x38] sm:$0xff]
        %v5066 = vld [vmem:[#allocation19 + $0x40] sm:$0xff]
        %v5067 = vld [vmem:[#allocation19 + $0x48] sm:$0xff]
        %v5068 = vld [vmem:[#allocation19 + $0x50] sm:$0xff]
        %v5069 = vld [vmem:[#allocation19 + $0x58] sm:$0xff]
        %v5070 = vld [vmem:[#allocation19 + $0x60] sm:$0xff]
        %v5071 = vld [vmem:[#allocation19 + $0x68] sm:$0xff]
        %v5072 = vld [vmem:[#allocation19 + $0x70] sm:$0xff]
        %v5073 = vld [vmem:[#allocation19 + $0x78] sm:$0xff]
        %v5074 = vld [vmem:[#allocation19 + $0x80] sm:$0xff]
        %v5075 = vld [vmem:[#allocation19 + $0x88] sm:$0xff]
        %v5076 = vld [vmem:[#allocation19 + $0x90] sm:$0xff]
        %v5077 = vld [vmem:[#allocation19 + $0x98] sm:$0xff]
        %v5078 = vld [vmem:[#allocation19 + $0xa0] sm:$0xff]
        %v5079 = vld [vmem:[#allocation19 + $0xa8] sm:$0xff]
        %v5080 = vld [vmem:[#allocation19 + $0xb0] sm:$0xff]
        %v5081 = vld [vmem:[#allocation19 + $0xb8] sm:$0xff]
        %v5082 = vld [vmem:[#allocation19 + $0xc0] sm:$0xff]
        %v5083 = vld [vmem:[#allocation19 + $0xc8] sm:$0xff]
        %v5084 = vld [vmem:[#allocation19 + $0xd0] sm:$0xff]
        %v5085 = vld [vmem:[#allocation19 + $0xd8] sm:$0xff]
        %v5086 = vld [vmem:[#allocation19 + $0xe0] sm:$0xff]
        %v5087 = vld [vmem:[#allocation19 + $0xe8] sm:$0xff]
        %v5088 = vld [vmem:[#allocation19 + $0xf0] sm:$0xff]
        %v5089 = vld [vmem:[#allocation19 + $0xf8] sm:$0xff]
        %v5090 = vld [vmem:[#allocation19 + $0x100] sm:$0xff]
        %v5091 = vld [vmem:[#allocation19 + $0x108] sm:$0xff]
        %v5092 = vld [vmem:[#allocation19 + $0x110] sm:$0xff]
        %v5093 = vld [vmem:[#allocation19 + $0x118] sm:$0xff]
        %v5094 = vld [vmem:[#allocation19 + $0x120] sm:$0xff]
        %v5095 = vld [vmem:[#allocation19 + $0x128] sm:$0xff]
        %v5096 = vld [vmem:[#allocation19 + $0x130] sm:$0xff]
        %v5097 = vld [vmem:[#allocation19 + $0x138] sm:$0xff]
        %v5098 = vld [vmem:[#allocation19 + $0x140] sm:$0xff]
        %v5099 = vld [vmem:[#allocation19 + $0x148] sm:$0xff]
        %v5100 = vld [vmem:[#allocation19 + $0x150] sm:$0xff]
        %v5101 = vld [vmem:[#allocation19 + $0x158] sm:$0xff]
        %v5102 = vld [vmem:[#allocation19 + $0x160] sm:$0xff]
        %v5103 = vld [vmem:[#allocation19 + $0x168] sm:$0xff]
        %v5104 = vld [vmem:[#allocation19 + $0x170] sm:$0xff]
        %v5105 = vld [vmem:[#allocation19 + $0x178] sm:$0xff]
        %v5106 = vld [vmem:[#allocation19 + $0x180] sm:$0xff]
        %v5107 = vld [vmem:[#allocation19 + $0x188] sm:$0xff]
        %v5108 = vld [vmem:[#allocation19 + $0x190] sm:$0xff]
        %v5109 = vld [vmem:[#allocation19 + $0x198] sm:$0xff]
        %v5110 = vld [vmem:[#allocation19 + $0x1a0] sm:$0xff]
        %v5111 = vld [vmem:[#allocation19 + $0x1a8] sm:$0xff]
        %v5112 = vld [vmem:[#allocation19 + $0x1b0] sm:$0xff]
        %v5113 = vld [vmem:[#allocation19 + $0x1b8] sm:$0xff]
        %v5114 = vld [vmem:[#allocation19 + $0x1c0] sm:$0xff]
        %v5115 = vld [vmem:[#allocation19 + $0x1c8] sm:$0xff]
        %v5116 = vld [vmem:[#allocation19 + $0x1d0] sm:$0xff]
        %v5117 = vld [vmem:[#allocation19 + $0x1d8] sm:$0xff]
        %v5118 = vld [vmem:[#allocation19 + $0x1e0] sm:$0xff]
        %v5119 = vld [vmem:[#allocation19 + $0x1e8] sm:$0xff]
        %v5120 = vld [vmem:[#allocation19 + $0x1f0] sm:$0xff]
        %v5121 = vld [vmem:[#allocation19 + $0x1f8] sm:$0xff]
        %v5122 = vld [vmem:[%s22] sm:$0x3]
        %5124 = vset.pattern.permute.xlu0 0
        %5125 = vperm.xlu0 %5124, %v5122
        %v5126 = vpop.permute.xlu0 %5125
        %5128 = vmatpush.msra.mxu0 %v5073
        %5129 = vmatpush.msra.mxu0 %v5072
        %5130 = vmatpush.msra.mxu0 %v5071
        %5131 = vmatpush.msra.mxu0 %v5070
        %5132 = vmatpush.msra.mxu0 %v5069
        %5133 = vmatpush.msra.mxu0 %v5068
        %5134 = vmatpush.msra.mxu0 %v5067
        %5135 = vmatpush.msra.mxu0 %v5066
        %5136 = vmatpush.msra.mxu0 %v5065
        %5137 = vmatpush.msra.mxu0 %v5064
        %5138 = vmatpush.msra.mxu0 %v5063
        %5139 = vmatpush.msra.mxu0 %v5062
        %5140 = vmatpush.msra.mxu0 %v5061
        %5141 = vmatpush.msra.mxu0 %v5060
        %5142 = vmatpush.msra.mxu0 %v5059
        %5143 = vmatpush.msra.mxu0 %v5058
        %5144 = vmatmul.f32.gmra.mxu0 %v5054
        %v5145 = vpop.f32.mrf.mxu0
        %v5146 = vadd.f32 %v5126, %v5145
        %5147 = vdwg.mxu0
        %5148 = vmatpush.msra.mxu0 %v5089
        %5149 = vmatpush.msra.mxu0 %v5088
        %5150 = vmatpush.msra.mxu0 %v5087
        %5151 = vmatpush.msra.mxu0 %v5086
        %5152 = vmatpush.msra.mxu0 %v5085
        %5153 = vmatpush.msra.mxu0 %v5084
        %5154 = vmatpush.msra.mxu0 %v5083
        %5155 = vmatpush.msra.mxu0 %v5082
        %5156 = vmatpush.msra.mxu0 %v5081
        %5157 = vmatpush.msra.mxu0 %v5080
        %5158 = vmatpush.msra.mxu0 %v5079
        %5159 = vmatpush.msra.mxu0 %v5078
        %5160 = vmatpush.msra.mxu0 %v5077
        %5161 = vmatpush.msra.mxu0 %v5076
        %5162 = vmatpush.msra.mxu0 %v5075
        %5163 = vmatpush.msra.mxu0 %v5074
        %5164 = vmatmul.f32.gmra.mxu0 %v5055
        %v5165 = vpop.f32.mrf.mxu0
        %v5166 = vadd.f32 %v5146, %v5165
        %5167 = vdwg.mxu0
        %5168 = vmatpush.msra.mxu0 %v5105
        %5169 = vmatpush.msra.mxu0 %v5104
        %5170 = vmatpush.msra.mxu0 %v5103
        %5171 = vmatpush.msra.mxu0 %v5102
        %5172 = vmatpush.msra.mxu0 %v5101
        %5173 = vmatpush.msra.mxu0 %v5100
        %5174 = vmatpush.msra.mxu0 %v5099
        %5175 = vmatpush.msra.mxu0 %v5098
        %5176 = vmatpush.msra.mxu0 %v5097
        %5177 = vmatpush.msra.mxu0 %v5096
        %5178 = vmatpush.msra.mxu0 %v5095
        %5179 = vmatpush.msra.mxu0 %v5094
        %5180 = vmatpush.msra.mxu0 %v5093
        %5181 = vmatpush.msra.mxu0 %v5092
        %5182 = vmatpush.msra.mxu0 %v5091
        %5183 = vmatpush.msra.mxu0 %v5090
        %5184 = vmatmul.f32.gmra.mxu0 %v5056
        %v5185 = vpop.f32.mrf.mxu0
        %v5186 = vadd.f32 %v5166, %v5185
        %5187 = vdwg.mxu0
        %5188 = vmatpush.msra.mxu0 %v5121
        %5189 = vmatpush.msra.mxu0 %v5120
        %5190 = vmatpush.msra.mxu0 %v5119
        %5191 = vmatpush.msra.mxu0 %v5118
        %5192 = vmatpush.msra.mxu0 %v5117
        %5193 = vmatpush.msra.mxu0 %v5116
        %5194 = vmatpush.msra.mxu0 %v5115
        %5195 = vmatpush.msra.mxu0 %v5114
        %5196 = vmatpush.msra.mxu0 %v5113
        %5197 = vmatpush.msra.mxu0 %v5112
        %5198 = vmatpush.msra.mxu0 %v5111
        %5199 = vmatpush.msra.mxu0 %v5110
        %5200 = vmatpush.msra.mxu0 %v5109
        %5201 = vmatpush.msra.mxu0 %v5108
        %5202 = vmatpush.msra.mxu0 %v5107
        %5203 = vmatpush.msra.mxu0 %v5106
        %5204 = vmatmul.f32.gmra.mxu0 %v5057
        %v5205 = vpop.f32.mrf.mxu0
        %v5206 = vadd.f32 %v5186, %v5205
        %5207 = vdwg.mxu0
        %v5209 = vrot.slane %v5206, 1
        %v5211 = vmax.f32 %v5206, %v5209
        %v5212 = vsub.f32 %v5206, %v5211
        %v5213 = vmul.f32 %v5212, 1.442695
        %v5214 = vpow.pop %v5213
        %v5216 = vrot.slane %v5211, 7
        %v5218 = vsub.f32 %v5206, %v5216
        %v5219 = vmul.f32 %v5218, 1.442695
        %v5220 = vpow.pop %v5219
        %v5222 = vrot.slane %v5220, 1
        %v5224 = vadd.f32 %v5214, %v5222
        %v5225 = vlog2.pop %v5224
        %v5226 = vmul.f32 %v5225, 0.6931472
        %v5227 = vadd.f32 %v5211, %v5226
        %v5228 = vsub.f32 %v5206, %v5227
        %v5230 = vrot.slane %v5227, 7
        %v5232 = vsub.f32 %v5206, %v5230
        %v5233 = vsel %vm5053, %v5228, %v5232
        %5234 = vst [vmem:[%s876] sm:$0x3] %v5233
        %s5235 = sand.u32 %s539, 1
        %s5236 = scalar_lea.sflag [#allocation4], %s5235
        %s5237 = sand.u32 %s539, 1
        %s5238 = smul.addr %s5237, 2
        %s5239 = scalar_lea.vmem [#allocation20], %s5238
        // Predicated region
        $region157: #{tpu_custom_call.1} parent=111 // pred_check
          %p5240 = pneg %p549
        $region158: #{tpu_custom_call.1} parent=111 // pred_check_branch
          %5242 = sbr.rel (%p5240) target = $region160
        $region159: #{tpu_custom_call.1} parent=111 // pred_region
          %5244 = vsyncadd %s5236, 0
          %s5245 = smul.addr %s43, 2
          %s5246 = scalar_lea.hbm %s23, %s5245
          %s5248 = sshll.u32 %s5239, 4
          %s5249 = int_to_ptr.vmem [resolvable:$true] %s5248
          %s5250 = sshll.u32 %s5246, 4
          %s5251 = int_to_ptr.hbm [resolvable:$true] %s5250
          %5253 = dma.vmem_to_hbm [thread:$0]  %s5249, 32, %s5251, %s5236
        $region160: #{tpu_custom_call.1} parent=111 // pred_fallthru
          _
      $region112: #{tpu_custom_call.1} parent=5 // pred_fallthru
        _
      %p5254 = scmp.le.s32.totalorder 2, %s38
      // Predicated region
      $region161: #{tpu_custom_call.1} parent=5 // pred_check
        %p5255 = pneg %p5254
      $region162: #{tpu_custom_call.1} parent=5 // pred_check_branch
        %5257 = sbr.rel (%p5255) target = $region164
      $region163: #{tpu_custom_call.1} parent=5 // pred_region
        %s5258 = ssub.s32 %s38, 2
        // Predicated region
        $region165: #{tpu_custom_call.1} parent=163 // pred_check
          %p5259 = pneg %p555
        $region166: #{tpu_custom_call.1} parent=163 // pred_check_branch
          %5261 = sbr.rel (%p5259) target = $region168
        $region167: #{tpu_custom_call.1} parent=163 // pred_region
          %s5262 = sand.u32 %s540, 1
          %s5263 = scalar_lea.sflag [#allocation4], %s5262
          %s5264 = sand.u32 %s540, 1
          %s5265 = smul.addr %s5264, 2
          %s5266 = scalar_lea.vmem [#allocation20], %s5265
          %5268 = dma.done %s5263, 32
        $region168: #{tpu_custom_call.1} parent=163 // pred_fallthru
          _
      $region164: #{tpu_custom_call.1} parent=5 // pred_fallthru
        _
    $region6: #{tpu_custom_call.1} parent=1 // loop_footer
      %s42 = sadd.s32 1, %s38
    $region7: #{tpu_custom_call.1} parent=1 // loop_footer_branch
      %37 = sbr.rel target = $region3
    $region8: #{tpu_custom_call.1} parent=1 // loop_exit
      _
    %5269 = vsyncpa [#allocation3], 1
    %s5270 = scalar_lea.sflag [#allocation3], 1
    %5271 = vsyncpa %s5270, 1
    %5272 = vsyncpa [#allocation6], 1
    %5273 = vsyncpa [#allocation9], 1
    %5274 = vsyncpa [#allocation12], 1
    %5275 = vsyncpa [#allocation15], 1
    %5276 = vsyncpa [#allocation18], 1
    %5277 = vsyncpa [#allocation4], 1
    %s5278 = scalar_lea.sflag [#allocation4], 1
    %5279 = vsyncpa %s5278, 1

</llo_original>
